<compile_context>
chip_gen: v6e
topology: v6e:2x2x1
jax: 0.10.0
libtpu: 0.0.40
codegen_flags: <defaults>
</compile_context>

<pallas_src>
import functools

import jax
import jax.numpy as jnp
from jax.experimental import pallas as pl
from jax.experimental.pallas import tpu as pltpu

LN_EPS = 1e-5  # PyTorch nn.LayerNorm default
LANE = 128


def _round_up(a, b):
    return ((a + b - 1) // b) * b


def _is_v7x():
    try:
        kind = jax.devices()[0].device_kind.lower()
    except Exception:  # pragma: no cover - defensive
        return False
    return ("v7" in kind) or ("7x" in kind)


def mlp_kernel(x_ref, w1_ref, w2_ref, wo_ref, misc_ref, o_ref, *, hid_p, out_dim):
    # Bias / LayerNorm parameter slab (8, slab_w) f32:
    #   row 0: b1[:hid_p], row 1: b2[:hid_p],
    #   row 2: bo[:out_dim], row 3: gamma[:out_dim], row 4: beta[:out_dim]
    misc = misc_ref[...]
    b1 = misc[0:1, :hid_p]
    b2 = misc[1:2, :hid_p]
    bo = misc[2:3, :out_dim]
    gamma = misc[3:4, :out_dim]
    beta = misc[4:5, :out_dim]

    # ---- Linear(in, hid) + ReLU : bf16 operands, f32 accumulate ----
    x = x_ref[...].astype(jnp.bfloat16)          # cast in-kernel (no host pre-pass)
    h = jnp.dot(x, w1_ref[...], preferred_element_type=jnp.float32)
    h = jnp.maximum(h + b1, 0.0)
    # ---- Linear(hid, hid) + ReLU ----
    h = jnp.dot(h.astype(jnp.bfloat16), w2_ref[...],
                preferred_element_type=jnp.float32)
    h = jnp.maximum(h + b2, 0.0)
    # ---- Linear(hid, out), no final activation ----
    y = jnp.dot(h.astype(jnp.bfloat16), wo_ref[...],
                preferred_element_type=jnp.float32)
    y = y + bo

    # ---- LayerNorm over out_dim (all lanes of y are real: no mask needed) ----
    inv_d = 1.0 / out_dim
    mean = jnp.sum(y, axis=-1, keepdims=True) * inv_d
    mean_sq = jnp.sum(y * y, axis=-1, keepdims=True) * inv_d
    var = jnp.maximum(mean_sq - mean * mean, 0.0)
    y_norm = (y - mean) * jax.lax.rsqrt(var + LN_EPS)
    o_ref[...] = (y_norm * gamma + beta).astype(o_ref.dtype)


def pack_params(params):
    """One-time host-side packing: pad hidden axis to 128 lanes, cast matmul
    operands to bf16, and fold the five small bias/LN vectors into one slab.
    Call ONCE and reuse across forward calls."""
    in_dim, hid = params["w1"].shape
    out_dim = params["wo"].shape[1]
    hid_p = _round_up(hid, LANE)
    slab_w = max(hid_p, out_dim)

    w1 = jnp.pad(params["w1"], ((0, 0), (0, hid_p - hid))).astype(jnp.bfloat16)
    w2 = jnp.pad(params["w2"], ((0, hid_p - hid), (0, hid_p - hid))).astype(jnp.bfloat16)
    wo = jnp.pad(params["wo"], ((0, hid_p - hid), (0, 0))).astype(jnp.bfloat16)  # narrow out

    def row(a):
        a = a.astype(jnp.float32)
        return jnp.pad(a, ((0, 0), (0, slab_w - a.shape[1])))

    misc = jnp.concatenate(
        [row(params["b1"]), row(params["b2"]), row(params["bo"]),
         row(params["gamma"]), row(params["beta"]),
         jnp.zeros((3, slab_w), jnp.float32)],  # pad to 8 sublanes
        axis=0)

    return {"w1": w1, "w2": w2, "wo": wo, "misc": misc}


def mlp_pallas(x, packed, *, tile_m=None, out_dtype=None):
    """x: [N, input_dim] float32. packed: output of pack_params()."""
    n, in_dim = x.shape
    hid_p = packed["w1"].shape[1]
    out_dim = packed["wo"].shape[1]
    slab_w = packed["misc"].shape[1]
    out_dtype = x.dtype if out_dtype is None else out_dtype

    # --- per-generation tiling: v7x has 2 TCs but only 64 MiB VMEM ------------
    is_v7 = _is_v7x()
    if tile_m is None:
        tile_m = 4096 if is_v7 else 8192
    vmem_limit = (48 << 20) if is_v7 else (96 << 20)

    n8 = _round_up(n, 8)
    tile = _round_up(min(tile_m, n8), 8)
    # Force >=2 grid steps ONLY on v7x (megacore sharding). On 1-TC chips the
    # grid is a serial loop, so a single step is strictly cheaper.
    if is_v7 and n8 >= 16 and pl.cdiv(n8, tile) < 2:
        tile = _round_up(pl.cdiv(n8, 2), 8)
    n_pad = _round_up(n, tile)
    grid = n_pad // tile

    x_p = jnp.pad(x, ((0, n_pad - n), (0, 0))) if n_pad != n else x

    flops = (2 * n_pad * (in_dim * hid_p + hid_p * hid_p + hid_p * out_dim)
             + 8 * n_pad * out_dim)
    bytes_accessed = int(
        x_p.size * x_p.dtype.itemsize
        + sum(a.size * a.dtype.itemsize for a in packed.values())
        + n_pad * out_dim * jnp.dtype(out_dtype).itemsize)

    full = lambda shape: pl.BlockSpec(shape, lambda i: (0, 0))

    out = pl.pallas_call(
        functools.partial(mlp_kernel, hid_p=hid_p, out_dim=out_dim),
        out_shape=jax.ShapeDtypeStruct((n_pad, out_dim), out_dtype),
        grid_spec=pltpu.PrefetchScalarGridSpec(
            num_scalar_prefetch=0,
            grid=(grid,),
            in_specs=[
                pl.BlockSpec((tile, in_dim), lambda i: (i, 0)),  # x tile (f32)
                full((in_dim, hid_p)),    # w1 (bf16)
                full((hid_p, hid_p)),     # w2 (bf16)
                full((hid_p, out_dim)),   # wo (bf16, narrow output width)
                full((8, slab_w)),        # packed biases + LN params (f32)
            ],
            out_specs=pl.BlockSpec((tile, out_dim), lambda i: (i, 0)),
        ),
        compiler_params=pltpu.CompilerParams(
            dimension_semantics=("parallel",),
            vmem_limit_bytes=vmem_limit),
        cost_estimate=pl.CostEstimate(
            flops=flops, transcendentals=n_pad, bytes_accessed=bytes_accessed),
    )(x_p, packed["w1"], packed["w2"], packed["wo"], packed["misc"])

    # Output is already narrow (out_dim lanes); only strip row padding if any.
    return out[:n] if n_pad != n else out


def init_params(key, input_dim, hidden_dim, output_dim):
    """Deterministic synthetic init (shapes follow the nn.Module __init__)."""
    ks = jax.random.split(key, 6)
    scale = 0.1
    return {
        "w1": scale * jax.random.normal(ks[0], (input_dim, hidden_dim), jnp.float32),
        "b1": scale * jax.random.normal(ks[1], (1, hidden_dim), jnp.float32),
        "w2": scale * jax.random.normal(ks[2], (hidden_dim, hidden_dim), jnp.float32),
        "b2": scale * jax.random.normal(ks[3], (1, hidden_dim), jnp.float32),
        "wo": scale * jax.random.normal(ks[4], (hidden_dim, output_dim), jnp.float32),
        "bo": scale * jax.random.normal(ks[5], (1, output_dim), jnp.float32),
        "gamma": jnp.ones((1, output_dim), jnp.float32),   # LayerNorm weight
        "beta": jnp.zeros((1, output_dim), jnp.float32),   # LayerNorm bias
    }


def mlp_ref(x, p):
    """Plain-JAX f32 reference for correctness check."""
    h = jnp.maximum(x @ p["w1"] + p["b1"], 0.0)
    h = jnp.maximum(h @ p["w2"] + p["b2"], 0.0)
    y = h @ p["wo"] + p["bo"]
    mean = jnp.mean(y, axis=-1, keepdims=True)
    var = jnp.mean((y - mean) ** 2, axis=-1, keepdims=True)
    return (y - mean) * jax.lax.rsqrt(var + LN_EPS) * p["gamma"] + p["beta"]


if __name__ == "__main__":
    # Meshgraphnet-like shapes: arbitrary node count, small feature dims.
    N, INPUT_DIM, HIDDEN_DIM, OUTPUT_DIM = 1000, 12, 32, 8

    key = jax.random.PRNGKey(0)
    kx, kp = jax.random.split(key)
    x = jax.random.normal(kx, (N, INPUT_DIM), jnp.float32)
    params = init_params(kp, INPUT_DIM, HIDDEN_DIM, OUTPUT_DIM)

    packed = pack_params(params)            # one-time packing (cached across calls)
    fwd = jax.jit(mlp_pallas)

    out = jax.block_until_ready(fwd(x, packed))
    ref = mlp_ref(x, params)

    assert out.shape == (N, OUTPUT_DIM)
    # bf16 dot operands with f32 accumulation: allow ~1e-2 level deviation.
    assert jnp.allclose(out, ref, atol=5e-2, rtol=5e-2), "mismatch vs reference"

    print("KERNEL_OK")
</pallas_src>

<mosaic_0001>
module attributes {stable_mosaic.version = 11 : i64} {
  func.func @mlp_kernel(%arg0: i32, %arg1: memref<1000x12xf32, #tpu.memory_space<vmem>>, %arg2: memref<12x128xbf16, #tpu.memory_space<vmem>>, %arg3: memref<128x128xbf16, #tpu.memory_space<vmem>>, %arg4: memref<128x8xbf16, #tpu.memory_space<vmem>>, %arg5: memref<8x128xf32, #tpu.memory_space<vmem>>, %arg6: memref<1000x8xf32, #tpu.memory_space<vmem>>) attributes {dimension_semantics = [#tpu.dimension_semantics<parallel>], iteration_bounds = array<i64: 1>, scalar_prefetch = 0 : i64, scratch_operands = 0 : i64, tpu.core_type = #tpu.core_type<tc>, window_params = [{transform_indices = @transform_0, window_bounds = array<i64: 1000, 12>}, {pipeline_mode = #tpu.pipeline_mode<synchronous>, transform_indices = @transform_1, window_bounds = array<i64: 12, 128>}, {pipeline_mode = #tpu.pipeline_mode<synchronous>, transform_indices = @transform_2, window_bounds = array<i64: 128, 128>}, {pipeline_mode = #tpu.pipeline_mode<synchronous>, transform_indices = @transform_3, window_bounds = array<i64: 128, 8>}, {pipeline_mode = #tpu.pipeline_mode<synchronous>, transform_indices = @transform_4, window_bounds = array<i64: 8, 128>}, {transform_indices = @transform_5, window_bounds = array<i64: 1000, 8>}]} {
    %c0 = arith.constant 0 : index
    %c0_0 = arith.constant 0 : index
    %0 = vector.load %arg5[%c0, %c0_0] : memref<8x128xf32, #tpu.memory_space<vmem>>, vector<8x128xf32>
    %1 = vector.extract_strided_slice %0 {offsets = [0, 0], sizes = [1, 128], strides = [1, 1]} : vector<8x128xf32> to vector<1x128xf32>
    %2 = vector.extract_strided_slice %0 {offsets = [1, 0], sizes = [1, 128], strides = [1, 1]} : vector<8x128xf32> to vector<1x128xf32>
    %3 = vector.extract_strided_slice %0 {offsets = [2, 0], sizes = [1, 8], strides = [1, 1]} : vector<8x128xf32> to vector<1x8xf32>
    %4 = vector.extract_strided_slice %0 {offsets = [3, 0], sizes = [1, 8], strides = [1, 1]} : vector<8x128xf32> to vector<1x8xf32>
    %5 = vector.extract_strided_slice %0 {offsets = [4, 0], sizes = [1, 8], strides = [1, 1]} : vector<8x128xf32> to vector<1x8xf32>
    %c0_1 = arith.constant 0 : index
    %c0_2 = arith.constant 0 : index
    %6 = vector.load %arg1[%c0_1, %c0_2] : memref<1000x12xf32, #tpu.memory_space<vmem>>, vector<1000x12xf32>
    %7 = arith.truncf %6 : vector<1000x12xf32> to vector<1000x12xbf16>
    %c0_3 = arith.constant 0 : index
    %c0_4 = arith.constant 0 : index
    %8 = vector.load %arg2[%c0_3, %c0_4] : memref<12x128xbf16, #tpu.memory_space<vmem>>, vector<12x128xbf16>
    %cst = arith.constant dense<0.000000e+00> : vector<1000x128xf32>
    %9 = tpu.matmul %7, %8, %cst {dimension_numbers = #tpu.dot_dimension_numbers<[1], [0], [0], [1], [0, 0, 1, 1], [], []>} : vector<1000x12xbf16>, vector<12x128xbf16>, vector<1000x128xf32> -> vector<1000x128xf32>
    %10 = vector.broadcast %1 : vector<1x128xf32> to vector<1000x128xf32>
    %11 = arith.addf %9, %10 : vector<1000x128xf32>
    %cst_5 = arith.constant 0.000000e+00 : f32
    %12 = vector.broadcast %cst_5 : f32 to vector<1000x128xf32>
    %13 = arith.maximumf %11, %12 : vector<1000x128xf32>
    %14 = arith.truncf %13 : vector<1000x128xf32> to vector<1000x128xbf16>
    %c0_6 = arith.constant 0 : index
    %c0_7 = arith.constant 0 : index
    %15 = vector.load %arg3[%c0_6, %c0_7] : memref<128x128xbf16, #tpu.memory_space<vmem>>, vector<128x128xbf16>
    %cst_8 = arith.constant dense<0.000000e+00> : vector<1000x128xf32>
    %16 = tpu.matmul %14, %15, %cst_8 {dimension_numbers = #tpu.dot_dimension_numbers<[1], [0], [0], [1], [0, 0, 1, 1], [], []>} : vector<1000x128xbf16>, vector<128x128xbf16>, vector<1000x128xf32> -> vector<1000x128xf32>
    %17 = vector.broadcast %2 : vector<1x128xf32> to vector<1000x128xf32>
    %18 = arith.addf %16, %17 : vector<1000x128xf32>
    %cst_9 = arith.constant 0.000000e+00 : f32
    %19 = vector.broadcast %cst_9 : f32 to vector<1000x128xf32>
    %20 = arith.maximumf %18, %19 : vector<1000x128xf32>
    %21 = arith.truncf %20 : vector<1000x128xf32> to vector<1000x128xbf16>
    %c0_10 = arith.constant 0 : index
    %c0_11 = arith.constant 0 : index
    %22 = vector.load %arg4[%c0_10, %c0_11] : memref<128x8xbf16, #tpu.memory_space<vmem>>, vector<128x8xbf16>
    %cst_12 = arith.constant dense<0.000000e+00> : vector<1000x8xf32>
    %23 = tpu.matmul %21, %22, %cst_12 {dimension_numbers = #tpu.dot_dimension_numbers<[1], [0], [0], [1], [0, 0, 1, 1], [], []>} : vector<1000x128xbf16>, vector<128x8xbf16>, vector<1000x8xf32> -> vector<1000x8xf32>
    %24 = vector.broadcast %3 : vector<1x8xf32> to vector<1000x8xf32>
    %25 = arith.addf %23, %24 : vector<1000x8xf32>
    %cst_13 = arith.constant dense<0.000000e+00> : vector<1000xf32>
    %26 = vector.multi_reduction <add>, %25, %cst_13 [1] : vector<1000x8xf32> to vector<1000xf32>
    %27 = vector.shape_cast %26 : vector<1000xf32> to vector<1000x1xf32>
    %cst_14 = arith.constant 1.250000e-01 : f32
    %28 = vector.broadcast %cst_14 : f32 to vector<1000x1xf32>
    %29 = arith.mulf %27, %28 : vector<1000x1xf32>
    %30 = arith.mulf %25, %25 : vector<1000x8xf32>
    %cst_15 = arith.constant dense<0.000000e+00> : vector<1000xf32>
    %31 = vector.multi_reduction <add>, %30, %cst_15 [1] : vector<1000x8xf32> to vector<1000xf32>
    %32 = vector.shape_cast %31 : vector<1000xf32> to vector<1000x1xf32>
    %cst_16 = arith.constant 1.250000e-01 : f32
    %33 = vector.broadcast %cst_16 : f32 to vector<1000x1xf32>
    %34 = arith.mulf %32, %33 : vector<1000x1xf32>
    %35 = arith.mulf %29, %29 : vector<1000x1xf32>
    %36 = arith.subf %34, %35 : vector<1000x1xf32>
    %cst_17 = arith.constant 0.000000e+00 : f32
    %37 = vector.broadcast %cst_17 : f32 to vector<1000x1xf32>
    %38 = arith.maximumf %36, %37 : vector<1000x1xf32>
    %39 = vector.broadcast %29 : vector<1000x1xf32> to vector<1000x8xf32>
    %40 = arith.subf %25, %39 : vector<1000x8xf32>
    %cst_18 = arith.constant 9.99999974E-6 : f32
    %41 = vector.broadcast %cst_18 : f32 to vector<1000x1xf32>
    %42 = arith.addf %38, %41 : vector<1000x1xf32>
    %43 = math.rsqrt %42 : vector<1000x1xf32>
    %44 = vector.broadcast %43 : vector<1000x1xf32> to vector<1000x8xf32>
    %45 = arith.mulf %40, %44 : vector<1000x8xf32>
    %46 = vector.broadcast %4 : vector<1x8xf32> to vector<1000x8xf32>
    %47 = arith.mulf %45, %46 : vector<1000x8xf32>
    %48 = vector.broadcast %5 : vector<1x8xf32> to vector<1000x8xf32>
    %49 = arith.addf %47, %48 : vector<1000x8xf32>
    %c0_19 = arith.constant 0 : index
    %c0_20 = arith.constant 0 : index
    %50 = vector.load %arg6[%c0_19, %c0_20] : memref<1000x8xf32, #tpu.memory_space<vmem>>, vector<1000x8xf32>
    tpu.vector_store %arg6[%c0_19, %c0_20], %49 {strides = array<i32>} : memref<1000x8xf32, #tpu.memory_space<vmem>>, vector<1000x8xf32>,
    return
  }
  func.func @transform_0(%arg0: i32) -> (i32, i32) {
    %c0_i32 = arith.constant 0 : i32
    %c0_i32_0 = arith.constant 0 : i32
    return %arg0, %c0_i32 : i32, i32
  }
  func.func @transform_1(%arg0: i32) -> (i32, i32) {
    %c0_i32 = arith.constant 0 : i32
    %c0_i32_0 = arith.constant 0 : i32
    %c0_i32_1 = arith.constant 0 : i32
    return %c0_i32, %c0_i32_0 : i32, i32
  }
  func.func @transform_2(%arg0: i32) -> (i32, i32) {
    %c0_i32 = arith.constant 0 : i32
    %c0_i32_0 = arith.constant 0 : i32
    %c0_i32_1 = arith.constant 0 : i32
    return %c0_i32, %c0_i32_0 : i32, i32
  }
  func.func @transform_3(%arg0: i32) -> (i32, i32) {
    %c0_i32 = arith.constant 0 : i32
    %c0_i32_0 = arith.constant 0 : i32
    %c0_i32_1 = arith.constant 0 : i32
    return %c0_i32, %c0_i32_0 : i32, i32
  }
  func.func @transform_4(%arg0: i32) -> (i32, i32) {
    %c0_i32 = arith.constant 0 : i32
    %c0_i32_0 = arith.constant 0 : i32
    %c0_i32_1 = arith.constant 0 : i32
    return %c0_i32, %c0_i32_0 : i32, i32
  }
  func.func @transform_5(%arg0: i32) -> (i32, i32) {
    %c0_i32 = arith.constant 0 : i32
    %c0_i32_0 = arith.constant 0 : i32
    return %arg0, %c0_i32 : i32, i32
  }
}

</mosaic_0001>

<llo_original>
// kernel: mlp_pallas.1
$region0: #{mlp_pallas.1}
  #allocation0 [shape = 'u32[]', space=smem, size = 0x4, offset = 0x4, fixed_abs, tag = 'smem constant byte address 0x4 - core index']
  #allocation1 [shape = 'u32[144,128]{1,0:T(1,128)}', space=vmem, size = 0x12000, scoped, tag = 'internal scratch']
  %s0 = inlined_call_operand.vmem [shape: f32[1000,12], index: 0, kind: input, shape index: {}]
  %s1 = inlined_call_operand.vmem [shape: bf16[12,128], index: 1, kind: input, shape index: {}]
  %s2 = inlined_call_operand.vmem [shape: bf16[128,128], index: 2, kind: input, shape index: {}]
  %s3 = inlined_call_operand.vmem [shape: bf16[128,8], index: 3, kind: input, shape index: {}]
  %s4 = inlined_call_operand.vmem [shape: f32[8,128], index: 4, kind: input, shape index: {}]
  %s5 = inlined_call_operand.vmem [shape: f32[1000,8], index: 5, kind: output, shape index: {}]
  %s6 = sld [smem:[#allocation0]]
  $region30: #{mlp_pallas.1} parent=0
    _
  %s8 = ssub.s32 1, %s6
  %s9 = scalar_select 0, %s8, %s6
  // Predicated region
  $region2: #{mlp_pallas.1} parent=0 // pred_check
    _
  $region3: #{mlp_pallas.1} parent=0 // pred_check_branch
    %11 = sbr.rel (0) target = $region5
  $region4: #{mlp_pallas.1} parent=0 // pred_region
    _
  $region5: #{mlp_pallas.1} parent=0 // pred_fallthru
    _
  // Predicated region
  $region6: #{mlp_pallas.1} parent=0 // pred_check
    _
  $region7: #{mlp_pallas.1} parent=0 // pred_check_branch
    %13 = sbr.rel (0) target = $region9
  $region8: #{mlp_pallas.1} parent=0 // pred_region
    _
  $region9: #{mlp_pallas.1} parent=0 // pred_fallthru
    _
  // Predicated region
  $region10: #{mlp_pallas.1} parent=0 // pred_check
    _
  $region11: #{mlp_pallas.1} parent=0 // pred_check_branch
    %15 = sbr.rel (0) target = $region13
  $region12: #{mlp_pallas.1} parent=0 // pred_region
    _
  $region13: #{mlp_pallas.1} parent=0 // pred_fallthru
    _
  // Predicated region
  $region14: #{mlp_pallas.1} parent=0 // pred_check
    _
  $region15: #{mlp_pallas.1} parent=0 // pred_check_branch
    %17 = sbr.rel (0) target = $region17
  $region16: #{mlp_pallas.1} parent=0 // pred_region
    _
  $region17: #{mlp_pallas.1} parent=0 // pred_fallthru
    _
  // Predicated region
  $region18: #{mlp_pallas.1} parent=0 // pred_check
    _
  $region19: #{mlp_pallas.1} parent=0 // pred_check_branch
    %19 = sbr.rel (0) target = $region21
  $region20: #{mlp_pallas.1} parent=0 // pred_region
    _
  $region21: #{mlp_pallas.1} parent=0 // pred_fallthru
    _
  %v21 = vld [vmem:[%s4] sm:$0xff]
  %v22 = vld [vmem:[%s0] sm:$0xff]
  %v23 = vld [vmem:[%s0 + $0x8] sm:$0xff]
  %v24 = vld [vmem:[%s0 + $0x10] sm:$0xff]
  %v25 = vld [vmem:[%s0 + $0x18] sm:$0xff]
  %v26 = vld [vmem:[%s0 + $0x20] sm:$0xff]
  %v27 = vld [vmem:[%s0 + $0x28] sm:$0xff]
  %v28 = vld [vmem:[%s0 + $0x30] sm:$0xff]
  %v29 = vld [vmem:[%s0 + $0x38] sm:$0xff]
  %v30 = vld [vmem:[%s0 + $0x40] sm:$0xff]
  %v31 = vld [vmem:[%s0 + $0x48] sm:$0xff]
  %v32 = vld [vmem:[%s0 + $0x50] sm:$0xff]
  %v33 = vld [vmem:[%s0 + $0x58] sm:$0xff]
  %v34 = vld [vmem:[%s0 + $0x60] sm:$0xff]
  %v35 = vld [vmem:[%s0 + $0x68] sm:$0xff]
  %v36 = vld [vmem:[%s0 + $0x70] sm:$0xff]
  %v37 = vld [vmem:[%s0 + $0x78] sm:$0xff]
  %v38 = vld [vmem:[%s0 + $0x80] sm:$0xff]
  %v39 = vld [vmem:[%s0 + $0x88] sm:$0xff]
  %v40 = vld [vmem:[%s0 + $0x90] sm:$0xff]
  %v41 = vld [vmem:[%s0 + $0x98] sm:$0xff]
  %v42 = vld [vmem:[%s0 + $0xa0] sm:$0xff]
  %v43 = vld [vmem:[%s0 + $0xa8] sm:$0xff]
  %v44 = vld [vmem:[%s0 + $0xb0] sm:$0xff]
  %v45 = vld [vmem:[%s0 + $0xb8] sm:$0xff]
  %v46 = vld [vmem:[%s0 + $0xc0] sm:$0xff]
  %v47 = vld [vmem:[%s0 + $0xc8] sm:$0xff]
  %v48 = vld [vmem:[%s0 + $0xd0] sm:$0xff]
  %v49 = vld [vmem:[%s0 + $0xd8] sm:$0xff]
  %v50 = vld [vmem:[%s0 + $0xe0] sm:$0xff]
  %v51 = vld [vmem:[%s0 + $0xe8] sm:$0xff]
  %v52 = vld [vmem:[%s0 + $0xf0] sm:$0xff]
  %v53 = vld [vmem:[%s0 + $0xf8] sm:$0xff]
  %v54 = vld [vmem:[%s0 + $0x100] sm:$0xff]
  %v55 = vld [vmem:[%s0 + $0x108] sm:$0xff]
  %v56 = vld [vmem:[%s0 + $0x110] sm:$0xff]
  %v57 = vld [vmem:[%s0 + $0x118] sm:$0xff]
  %v58 = vld [vmem:[%s0 + $0x120] sm:$0xff]
  %v59 = vld [vmem:[%s0 + $0x128] sm:$0xff]
  %v60 = vld [vmem:[%s0 + $0x130] sm:$0xff]
  %v61 = vld [vmem:[%s0 + $0x138] sm:$0xff]
  %v62 = vld [vmem:[%s0 + $0x140] sm:$0xff]
  %v63 = vld [vmem:[%s0 + $0x148] sm:$0xff]
  %v64 = vld [vmem:[%s0 + $0x150] sm:$0xff]
  %v65 = vld [vmem:[%s0 + $0x158] sm:$0xff]
  %v66 = vld [vmem:[%s0 + $0x160] sm:$0xff]
  %v67 = vld [vmem:[%s0 + $0x168] sm:$0xff]
  %v68 = vld [vmem:[%s0 + $0x170] sm:$0xff]
  %v69 = vld [vmem:[%s0 + $0x178] sm:$0xff]
  %v70 = vld [vmem:[%s0 + $0x180] sm:$0xff]
  %v71 = vld [vmem:[%s0 + $0x188] sm:$0xff]
  %v72 = vld [vmem:[%s0 + $0x190] sm:$0xff]
  %v73 = vld [vmem:[%s0 + $0x198] sm:$0xff]
  %v74 = vld [vmem:[%s0 + $0x1a0] sm:$0xff]
  %v75 = vld [vmem:[%s0 + $0x1a8] sm:$0xff]
  %v76 = vld [vmem:[%s0 + $0x1b0] sm:$0xff]
  %v77 = vld [vmem:[%s0 + $0x1b8] sm:$0xff]
  %v78 = vld [vmem:[%s0 + $0x1c0] sm:$0xff]
  %v79 = vld [vmem:[%s0 + $0x1c8] sm:$0xff]
  %v80 = vld [vmem:[%s0 + $0x1d0] sm:$0xff]
  %v81 = vld [vmem:[%s0 + $0x1d8] sm:$0xff]
  %v82 = vld [vmem:[%s0 + $0x1e0] sm:$0xff]
  %v83 = vld [vmem:[%s0 + $0x1e8] sm:$0xff]
  %v84 = vld [vmem:[%s0 + $0x1f0] sm:$0xff]
  %v85 = vld [vmem:[%s0 + $0x1f8] sm:$0xff]
  %v86 = vld [vmem:[%s0 + $0x200] sm:$0xff]
  %v87 = vld [vmem:[%s0 + $0x208] sm:$0xff]
  %v88 = vld [vmem:[%s0 + $0x210] sm:$0xff]
  %v89 = vld [vmem:[%s0 + $0x218] sm:$0xff]
  %v90 = vld [vmem:[%s0 + $0x220] sm:$0xff]
  %v91 = vld [vmem:[%s0 + $0x228] sm:$0xff]
  %v92 = vld [vmem:[%s0 + $0x230] sm:$0xff]
  %v93 = vld [vmem:[%s0 + $0x238] sm:$0xff]
  %v94 = vld [vmem:[%s0 + $0x240] sm:$0xff]
  %v95 = vld [vmem:[%s0 + $0x248] sm:$0xff]
  %v96 = vld [vmem:[%s0 + $0x250] sm:$0xff]
  %v97 = vld [vmem:[%s0 + $0x258] sm:$0xff]
  %v98 = vld [vmem:[%s0 + $0x260] sm:$0xff]
  %v99 = vld [vmem:[%s0 + $0x268] sm:$0xff]
  %v100 = vld [vmem:[%s0 + $0x270] sm:$0xff]
  %v101 = vld [vmem:[%s0 + $0x278] sm:$0xff]
  %v102 = vld [vmem:[%s0 + $0x280] sm:$0xff]
  %v103 = vld [vmem:[%s0 + $0x288] sm:$0xff]
  %v104 = vld [vmem:[%s0 + $0x290] sm:$0xff]
  %v105 = vld [vmem:[%s0 + $0x298] sm:$0xff]
  %v106 = vld [vmem:[%s0 + $0x2a0] sm:$0xff]
  %v107 = vld [vmem:[%s0 + $0x2a8] sm:$0xff]
  %v108 = vld [vmem:[%s0 + $0x2b0] sm:$0xff]
  %v109 = vld [vmem:[%s0 + $0x2b8] sm:$0xff]
  %v110 = vld [vmem:[%s0 + $0x2c0] sm:$0xff]
  %v111 = vld [vmem:[%s0 + $0x2c8] sm:$0xff]
  %v112 = vld [vmem:[%s0 + $0x2d0] sm:$0xff]
  %v113 = vld [vmem:[%s0 + $0x2d8] sm:$0xff]
  %v114 = vld [vmem:[%s0 + $0x2e0] sm:$0xff]
  %v115 = vld [vmem:[%s0 + $0x2e8] sm:$0xff]
  %v116 = vld [vmem:[%s0 + $0x2f0] sm:$0xff]
  %v117 = vld [vmem:[%s0 + $0x2f8] sm:$0xff]
  %v118 = vld [vmem:[%s0 + $0x300] sm:$0xff]
  %v119 = vld [vmem:[%s0 + $0x308] sm:$0xff]
  %v120 = vld [vmem:[%s0 + $0x310] sm:$0xff]
  %v121 = vld [vmem:[%s0 + $0x318] sm:$0xff]
  %v122 = vld [vmem:[%s0 + $0x320] sm:$0xff]
  %v123 = vld [vmem:[%s0 + $0x328] sm:$0xff]
  %v124 = vld [vmem:[%s0 + $0x330] sm:$0xff]
  %v125 = vld [vmem:[%s0 + $0x338] sm:$0xff]
  %v126 = vld [vmem:[%s0 + $0x340] sm:$0xff]
  %v127 = vld [vmem:[%s0 + $0x348] sm:$0xff]
  %v128 = vld [vmem:[%s0 + $0x350] sm:$0xff]
  %v129 = vld [vmem:[%s0 + $0x358] sm:$0xff]
  %v130 = vld [vmem:[%s0 + $0x360] sm:$0xff]
  %v131 = vld [vmem:[%s0 + $0x368] sm:$0xff]
  %v132 = vld [vmem:[%s0 + $0x370] sm:$0xff]
  %v133 = vld [vmem:[%s0 + $0x378] sm:$0xff]
  %v134 = vld [vmem:[%s0 + $0x380] sm:$0xff]
  %v135 = vld [vmem:[%s0 + $0x388] sm:$0xff]
  %v136 = vld [vmem:[%s0 + $0x390] sm:$0xff]
  %v137 = vld [vmem:[%s0 + $0x398] sm:$0xff]
  %v138 = vld [vmem:[%s0 + $0x3a0] sm:$0xff]
  %v139 = vld [vmem:[%s0 + $0x3a8] sm:$0xff]
  %v140 = vld [vmem:[%s0 + $0x3b0] sm:$0xff]
  %v141 = vld [vmem:[%s0 + $0x3b8] sm:$0xff]
  %v142 = vld [vmem:[%s0 + $0x3c0] sm:$0xff]
  %v143 = vld [vmem:[%s0 + $0x3c8] sm:$0xff]
  %v144 = vld [vmem:[%s0 + $0x3d0] sm:$0xff]
  %v145 = vld [vmem:[%s0 + $0x3d8] sm:$0xff]
  %v146 = vld [vmem:[%s0 + $0x3e0] sm:$0xff]
  %v147 = vpack.c.bf16 %v23, %v22
  %v148 = vpack.c.bf16 %v25, %v24
  %v149 = vpack.c.bf16 %v27, %v26
  %v150 = vpack.c.bf16 %v29, %v28
  %v151 = vpack.c.bf16 %v31, %v30
  %v152 = vpack.c.bf16 %v33, %v32
  %v153 = vpack.c.bf16 %v35, %v34
  %v154 = vpack.c.bf16 %v37, %v36
  %v155 = vpack.c.bf16 %v39, %v38
  %v156 = vpack.c.bf16 %v41, %v40
  %v157 = vpack.c.bf16 %v43, %v42
  %v158 = vpack.c.bf16 %v45, %v44
  %v159 = vpack.c.bf16 %v47, %v46
  %v160 = vpack.c.bf16 %v49, %v48
  %v161 = vpack.c.bf16 %v51, %v50
  %v162 = vpack.c.bf16 %v53, %v52
  %v163 = vpack.c.bf16 %v55, %v54
  %v164 = vpack.c.bf16 %v57, %v56
  %v165 = vpack.c.bf16 %v59, %v58
  %v166 = vpack.c.bf16 %v61, %v60
  %v167 = vpack.c.bf16 %v63, %v62
  %v168 = vpack.c.bf16 %v65, %v64
  %v169 = vpack.c.bf16 %v67, %v66
  %v170 = vpack.c.bf16 %v69, %v68
  %v171 = vpack.c.bf16 %v71, %v70
  %v172 = vpack.c.bf16 %v73, %v72
  %v173 = vpack.c.bf16 %v75, %v74
  %v174 = vpack.c.bf16 %v77, %v76
  %v175 = vpack.c.bf16 %v79, %v78
  %v176 = vpack.c.bf16 %v81, %v80
  %v177 = vpack.c.bf16 %v83, %v82
  %v178 = vpack.c.bf16 %v85, %v84
  %v179 = vpack.c.bf16 %v87, %v86
  %v180 = vpack.c.bf16 %v89, %v88
  %v181 = vpack.c.bf16 %v91, %v90
  %v182 = vpack.c.bf16 %v93, %v92
  %v183 = vpack.c.bf16 %v95, %v94
  %v184 = vpack.c.bf16 %v97, %v96
  %v185 = vpack.c.bf16 %v99, %v98
  %v186 = vpack.c.bf16 %v101, %v100
  %v187 = vpack.c.bf16 %v103, %v102
  %v188 = vpack.c.bf16 %v105, %v104
  %v189 = vpack.c.bf16 %v107, %v106
  %v190 = vpack.c.bf16 %v109, %v108
  %v191 = vpack.c.bf16 %v111, %v110
  %v192 = vpack.c.bf16 %v113, %v112
  %v193 = vpack.c.bf16 %v115, %v114
  %v194 = vpack.c.bf16 %v117, %v116
  %v195 = vpack.c.bf16 %v119, %v118
  %v196 = vpack.c.bf16 %v121, %v120
  %v197 = vpack.c.bf16 %v123, %v122
  %v198 = vpack.c.bf16 %v125, %v124
  %v199 = vpack.c.bf16 %v127, %v126
  %v200 = vpack.c.bf16 %v129, %v128
  %v201 = vpack.c.bf16 %v131, %v130
  %v202 = vpack.c.bf16 %v133, %v132
  %v203 = vpack.c.bf16 %v135, %v134
  %v204 = vpack.c.bf16 %v137, %v136
  %v205 = vpack.c.bf16 %v139, %v138
  %v206 = vpack.c.bf16 %v141, %v140
  %v207 = vpack.c.bf16 %v143, %v142
  %v208 = vpack.c.bf16 %v145, %v144
  %v209 = vpack.c.bf16 %v146, %v146
  %v210 = vld [vmem:[%s1] sm:$0xf]
  %v211 = vld [vmem:[%s1 + $0x4] sm:$0x3]
  %v212 = vlaneseq
  %v213 = vshrl.u32 %v212, 7
  %v214 = vsub.s32 0, %v213
  %v215 = vrot.slane %v21, %v214
  %v218 = vunpack.c.l.b16 %v210
  %v219 = vunpack.c.l.b16 %v211
  %v220 = vpack.c.b16 %v219, %v218
  %vm221 = vcmask 97280
  %v223 = vsel %vm221, %v147, 0
  %v226 = vsel %vm221, %v148, 0
  %v229 = vsel %vm221, %v149, 0
  %v232 = vsel %vm221, %v150, 0
  %v235 = vsel %vm221, %v151, 0
  %v238 = vsel %vm221, %v152, 0
  %v241 = vsel %vm221, %v153, 0
  %v244 = vsel %vm221, %v154, 0
  %v247 = vsel %vm221, %v155, 0
  %v250 = vsel %vm221, %v156, 0
  %v253 = vsel %vm221, %v157, 0
  %v256 = vsel %vm221, %v158, 0
  %v259 = vsel %vm221, %v159, 0
  %v262 = vsel %vm221, %v160, 0
  %v265 = vsel %vm221, %v161, 0
  %v268 = vsel %vm221, %v162, 0
  %v271 = vsel %vm221, %v163, 0
  %v274 = vsel %vm221, %v164, 0
  %v277 = vsel %vm221, %v165, 0
  %v280 = vsel %vm221, %v166, 0
  %v283 = vsel %vm221, %v167, 0
  %v286 = vsel %vm221, %v168, 0
  %v289 = vsel %vm221, %v169, 0
  %v292 = vsel %vm221, %v170, 0
  %v295 = vsel %vm221, %v171, 0
  %v298 = vsel %vm221, %v172, 0
  %v301 = vsel %vm221, %v173, 0
  %v304 = vsel %vm221, %v174, 0
  %v307 = vsel %vm221, %v175, 0
  %v310 = vsel %vm221, %v176, 0
  %v313 = vsel %vm221, %v177, 0
  %v316 = vsel %vm221, %v178, 0
  %v319 = vsel %vm221, %v179, 0
  %v322 = vsel %vm221, %v180, 0
  %v325 = vsel %vm221, %v181, 0
  %v328 = vsel %vm221, %v182, 0
  %v331 = vsel %vm221, %v183, 0
  %v334 = vsel %vm221, %v184, 0
  %v337 = vsel %vm221, %v185, 0
  %v340 = vsel %vm221, %v186, 0
  %v343 = vsel %vm221, %v187, 0
  %v346 = vsel %vm221, %v188, 0
  %v349 = vsel %vm221, %v189, 0
  %v352 = vsel %vm221, %v190, 0
  %v355 = vsel %vm221, %v191, 0
  %v358 = vsel %vm221, %v192, 0
  %v361 = vsel %vm221, %v193, 0
  %v364 = vsel %vm221, %v194, 0
  %v367 = vsel %vm221, %v195, 0
  %v370 = vsel %vm221, %v196, 0
  %v373 = vsel %vm221, %v197, 0
  %v376 = vsel %vm221, %v198, 0
  %v379 = vsel %vm221, %v199, 0
  %v382 = vsel %vm221, %v200, 0
  %v385 = vsel %vm221, %v201, 0
  %v388 = vsel %vm221, %v202, 0
  %v391 = vsel %vm221, %v203, 0
  %v394 = vsel %vm221, %v204, 0
  %v397 = vsel %vm221, %v205, 0
  %v400 = vsel %vm221, %v206, 0
  %v403 = vsel %vm221, %v207, 0
  %v406 = vsel %vm221, %v208, 0
  %v409 = vsel %vm221, %v209, 0
  %vm411 = vcmask 1045504
  %v413 = vsel %vm411, %v220, 0
  %415 = vmatprep.subr.bf16.mxu0 0
  %416 = vmatpush1.bf16.msra.mxu0 0
  %417 = vmatprep.subr.bf16.mxu0 0
  %418 = vmatpush1.bf16.msra.mxu0 0
  %419 = vmatprep.subr.bf16.mxu0 0
  %420 = vmatpush1.bf16.msra.mxu0 0
  %421 = vmatprep.subr.bf16.mxu0 0
  %422 = vmatpush1.bf16.msra.mxu0 0
  %423 = vmatprep.subr.bf16.mxu0 0
  %424 = vmatpush1.bf16.msra.mxu0 0
  %425 = vmatprep.subr.bf16.mxu0 0
  %426 = vmatpush1.bf16.msra.mxu0 0
  %427 = vmatprep.subr.bf16.mxu0 0
  %428 = vmatpush1.bf16.msra.mxu0 0
  %429 = vmatprep.subr.bf16.mxu0 0
  %430 = vmatpush1.bf16.msra.mxu0 %v413
  %431 = vmatprep.subr.bf16.mxu0 0
  %432 = vmatpush2.bf16.msra.mxu0 0
  %433 = vmatprep.subr.bf16.mxu0 0
  %434 = vmatpush2.bf16.msra.mxu0 0
  %435 = vmatprep.subr.bf16.mxu0 0
  %436 = vmatpush2.bf16.msra.mxu0 0
  %437 = vmatprep.subr.bf16.mxu0 0
  %438 = vmatpush2.bf16.msra.mxu0 0
  %439 = vmatprep.subr.bf16.mxu0 0
  %440 = vmatpush2.bf16.msra.mxu0 0
  %441 = vmatprep.subr.bf16.mxu0 0
  %442 = vmatpush2.bf16.msra.mxu0 0
  %443 = vmatprep.subr.bf16.mxu0 0
  %444 = vmatpush2.bf16.msra.mxu0 0
  %445 = vmatprep.subr.bf16.mxu0 0
  %446 = vmatpush2.bf16.msra.mxu0 0
  %447 = vmatprep.mubr.bf16.mxu0 0
  %448 = vmatmul.mubr.bf16.gmra.mxu0 %v223
  %v449 = vpop.f32.mrf.mxu0
  %v450 = vadd.f32 %v215, %v449
  %v451 = vpop.f32.mrf.mxu0
  %v452 = vpop.f32.mrf.mxu0
  %v453 = vadd.f32 %v215, %v452
  %v454 = vpop.f32.mrf.mxu0
  %455 = vmatprep.mubr.bf16.mxu0 0
  %456 = vmatmul.mubr.bf16.gmra.mxu0 %v226
  %v457 = vpop.f32.mrf.mxu0
  %v458 = vadd.f32 %v215, %v457
  %v459 = vpop.f32.mrf.mxu0
  %v460 = vpop.f32.mrf.mxu0
  %v461 = vadd.f32 %v215, %v460
  %v462 = vpop.f32.mrf.mxu0
  %463 = vmatprep.mubr.bf16.mxu0 0
  %464 = vmatmul.mubr.bf16.gmra.mxu0 %v229
  %v465 = vpop.f32.mrf.mxu0
  %v466 = vadd.f32 %v215, %v465
  %v467 = vpop.f32.mrf.mxu0
  %v468 = vpop.f32.mrf.mxu0
  %v469 = vadd.f32 %v215, %v468
  %v470 = vpop.f32.mrf.mxu0
  %471 = vmatprep.mubr.bf16.mxu0 0
  %472 = vmatmul.mubr.bf16.gmra.mxu0 %v232
  %v473 = vpop.f32.mrf.mxu0
  %v474 = vadd.f32 %v215, %v473
  %v475 = vpop.f32.mrf.mxu0
  %v476 = vpop.f32.mrf.mxu0
  %v477 = vadd.f32 %v215, %v476
  %v478 = vpop.f32.mrf.mxu0
  %479 = vmatprep.mubr.bf16.mxu0 0
  %480 = vmatmul.mubr.bf16.gmra.mxu0 %v235
  %v481 = vpop.f32.mrf.mxu0
  %v482 = vadd.f32 %v215, %v481
  %v483 = vpop.f32.mrf.mxu0
  %v484 = vpop.f32.mrf.mxu0
  %v485 = vadd.f32 %v215, %v484
  %v486 = vpop.f32.mrf.mxu0
  %487 = vmatprep.mubr.bf16.mxu0 0
  %488 = vmatmul.mubr.bf16.gmra.mxu0 %v238
  %v489 = vpop.f32.mrf.mxu0
  %v490 = vadd.f32 %v215, %v489
  %v491 = vpop.f32.mrf.mxu0
  %v492 = vpop.f32.mrf.mxu0
  %v493 = vadd.f32 %v215, %v492
  %v494 = vpop.f32.mrf.mxu0
  %495 = vmatprep.mubr.bf16.mxu0 0
  %496 = vmatmul.mubr.bf16.gmra.mxu0 %v241
  %v497 = vpop.f32.mrf.mxu0
  %v498 = vadd.f32 %v215, %v497
  %v499 = vpop.f32.mrf.mxu0
  %v500 = vpop.f32.mrf.mxu0
  %v501 = vadd.f32 %v215, %v500
  %v502 = vpop.f32.mrf.mxu0
  %503 = vmatprep.mubr.bf16.mxu0 0
  %504 = vmatmul.mubr.bf16.gmra.mxu0 %v244
  %v505 = vpop.f32.mrf.mxu0
  %v506 = vadd.f32 %v215, %v505
  %v507 = vpop.f32.mrf.mxu0
  %v508 = vpop.f32.mrf.mxu0
  %v509 = vadd.f32 %v215, %v508
  %v510 = vpop.f32.mrf.mxu0
  %511 = vmatprep.mubr.bf16.mxu0 0
  %512 = vmatmul.mubr.bf16.gmra.mxu0 %v247
  %v513 = vpop.f32.mrf.mxu0
  %v514 = vadd.f32 %v215, %v513
  %v515 = vpop.f32.mrf.mxu0
  %v516 = vpop.f32.mrf.mxu0
  %v517 = vadd.f32 %v215, %v516
  %v518 = vpop.f32.mrf.mxu0
  %519 = vmatprep.mubr.bf16.mxu0 0
  %520 = vmatmul.mubr.bf16.gmra.mxu0 %v250
  %v521 = vpop.f32.mrf.mxu0
  %v522 = vadd.f32 %v215, %v521
  %v523 = vpop.f32.mrf.mxu0
  %v524 = vpop.f32.mrf.mxu0
  %v525 = vadd.f32 %v215, %v524
  %v526 = vpop.f32.mrf.mxu0
  %527 = vmatprep.mubr.bf16.mxu0 0
  %528 = vmatmul.mubr.bf16.gmra.mxu0 %v253
  %v529 = vpop.f32.mrf.mxu0
  %v530 = vadd.f32 %v215, %v529
  %v531 = vpop.f32.mrf.mxu0
  %v532 = vpop.f32.mrf.mxu0
  %v533 = vadd.f32 %v215, %v532
  %v534 = vpop.f32.mrf.mxu0
  %535 = vmatprep.mubr.bf16.mxu0 0
  %536 = vmatmul.mubr.bf16.gmra.mxu0 %v256
  %v537 = vpop.f32.mrf.mxu0
  %v538 = vadd.f32 %v215, %v537
  %v539 = vpop.f32.mrf.mxu0
  %v540 = vpop.f32.mrf.mxu0
  %v541 = vadd.f32 %v215, %v540
  %v542 = vpop.f32.mrf.mxu0
  %543 = vmatprep.mubr.bf16.mxu0 0
  %544 = vmatmul.mubr.bf16.gmra.mxu0 %v259
  %v545 = vpop.f32.mrf.mxu0
  %v546 = vadd.f32 %v215, %v545
  %v547 = vpop.f32.mrf.mxu0
  %v548 = vpop.f32.mrf.mxu0
  %v549 = vadd.f32 %v215, %v548
  %v550 = vpop.f32.mrf.mxu0
  %551 = vmatprep.mubr.bf16.mxu0 0
  %552 = vmatmul.mubr.bf16.gmra.mxu0 %v262
  %v553 = vpop.f32.mrf.mxu0
  %v554 = vadd.f32 %v215, %v553
  %v555 = vpop.f32.mrf.mxu0
  %v556 = vpop.f32.mrf.mxu0
  %v557 = vadd.f32 %v215, %v556
  %v558 = vpop.f32.mrf.mxu0
  %559 = vmatprep.mubr.bf16.mxu0 0
  %560 = vmatmul.mubr.bf16.gmra.mxu0 %v265
  %v561 = vpop.f32.mrf.mxu0
  %v562 = vadd.f32 %v215, %v561
  %v563 = vpop.f32.mrf.mxu0
  %v564 = vpop.f32.mrf.mxu0
  %v565 = vadd.f32 %v215, %v564
  %v566 = vpop.f32.mrf.mxu0
  %567 = vmatprep.mubr.bf16.mxu0 0
  %568 = vmatmul.mubr.bf16.gmra.mxu0 %v268
  %v569 = vpop.f32.mrf.mxu0
  %v570 = vadd.f32 %v215, %v569
  %v571 = vpop.f32.mrf.mxu0
  %v572 = vpop.f32.mrf.mxu0
  %v573 = vadd.f32 %v215, %v572
  %v574 = vpop.f32.mrf.mxu0
  %575 = vmatprep.mubr.bf16.mxu0 0
  %576 = vmatmul.mubr.bf16.gmra.mxu0 %v271
  %v577 = vpop.f32.mrf.mxu0
  %v578 = vadd.f32 %v215, %v577
  %v579 = vpop.f32.mrf.mxu0
  %v580 = vpop.f32.mrf.mxu0
  %v581 = vadd.f32 %v215, %v580
  %v582 = vpop.f32.mrf.mxu0
  %583 = vmatprep.mubr.bf16.mxu0 0
  %584 = vmatmul.mubr.bf16.gmra.mxu0 %v274
  %v585 = vpop.f32.mrf.mxu0
  %v586 = vadd.f32 %v215, %v585
  %v587 = vpop.f32.mrf.mxu0
  %v588 = vpop.f32.mrf.mxu0
  %v589 = vadd.f32 %v215, %v588
  %v590 = vpop.f32.mrf.mxu0
  %591 = vmatprep.mubr.bf16.mxu0 0
  %592 = vmatmul.mubr.bf16.gmra.mxu0 %v277
  %v593 = vpop.f32.mrf.mxu0
  %v594 = vadd.f32 %v215, %v593
  %v595 = vpop.f32.mrf.mxu0
  %v596 = vpop.f32.mrf.mxu0
  %v597 = vadd.f32 %v215, %v596
  %v598 = vpop.f32.mrf.mxu0
  %599 = vmatprep.mubr.bf16.mxu0 0
  %600 = vmatmul.mubr.bf16.gmra.mxu0 %v280
  %v601 = vpop.f32.mrf.mxu0
  %v602 = vadd.f32 %v215, %v601
  %v603 = vpop.f32.mrf.mxu0
  %v604 = vpop.f32.mrf.mxu0
  %v605 = vadd.f32 %v215, %v604
  %v606 = vpop.f32.mrf.mxu0
  %607 = vmatprep.mubr.bf16.mxu0 0
  %608 = vmatmul.mubr.bf16.gmra.mxu0 %v283
  %v609 = vpop.f32.mrf.mxu0
  %v610 = vadd.f32 %v215, %v609
  %v611 = vpop.f32.mrf.mxu0
  %v612 = vpop.f32.mrf.mxu0
  %v613 = vadd.f32 %v215, %v612
  %v614 = vpop.f32.mrf.mxu0
  %615 = vmatprep.mubr.bf16.mxu0 0
  %616 = vmatmul.mubr.bf16.gmra.mxu0 %v286
  %v617 = vpop.f32.mrf.mxu0
  %v618 = vadd.f32 %v215, %v617
  %v619 = vpop.f32.mrf.mxu0
  %v620 = vpop.f32.mrf.mxu0
  %v621 = vadd.f32 %v215, %v620
  %v622 = vpop.f32.mrf.mxu0
  %623 = vmatprep.mubr.bf16.mxu0 0
  %624 = vmatmul.mubr.bf16.gmra.mxu0 %v289
  %v625 = vpop.f32.mrf.mxu0
  %v626 = vadd.f32 %v215, %v625
  %v627 = vpop.f32.mrf.mxu0
  %v628 = vpop.f32.mrf.mxu0
  %v629 = vadd.f32 %v215, %v628
  %v630 = vpop.f32.mrf.mxu0
  %631 = vmatprep.mubr.bf16.mxu0 0
  %632 = vmatmul.mubr.bf16.gmra.mxu0 %v292
  %v633 = vpop.f32.mrf.mxu0
  %v634 = vadd.f32 %v215, %v633
  %v635 = vpop.f32.mrf.mxu0
  %v636 = vpop.f32.mrf.mxu0
  %v637 = vadd.f32 %v215, %v636
  %v638 = vpop.f32.mrf.mxu0
  %639 = vmatprep.mubr.bf16.mxu0 0
  %640 = vmatmul.mubr.bf16.gmra.mxu0 %v295
  %v641 = vpop.f32.mrf.mxu0
  %v642 = vadd.f32 %v215, %v641
  %v643 = vpop.f32.mrf.mxu0
  %v644 = vpop.f32.mrf.mxu0
  %v645 = vadd.f32 %v215, %v644
  %v646 = vpop.f32.mrf.mxu0
  %647 = vmatprep.mubr.bf16.mxu0 0
  %648 = vmatmul.mubr.bf16.gmra.mxu0 %v298
  %v649 = vpop.f32.mrf.mxu0
  %v650 = vadd.f32 %v215, %v649
  %v651 = vpop.f32.mrf.mxu0
  %v652 = vpop.f32.mrf.mxu0
  %v653 = vadd.f32 %v215, %v652
  %v654 = vpop.f32.mrf.mxu0
  %655 = vmatprep.mubr.bf16.mxu0 0
  %656 = vmatmul.mubr.bf16.gmra.mxu0 %v301
  %v657 = vpop.f32.mrf.mxu0
  %v658 = vadd.f32 %v215, %v657
  %v659 = vpop.f32.mrf.mxu0
  %v660 = vpop.f32.mrf.mxu0
  %v661 = vadd.f32 %v215, %v660
  %v662 = vpop.f32.mrf.mxu0
  %663 = vmatprep.mubr.bf16.mxu0 0
  %664 = vmatmul.mubr.bf16.gmra.mxu0 %v304
  %v665 = vpop.f32.mrf.mxu0
  %v666 = vadd.f32 %v215, %v665
  %v667 = vpop.f32.mrf.mxu0
  %v668 = vpop.f32.mrf.mxu0
  %v669 = vadd.f32 %v215, %v668
  %v670 = vpop.f32.mrf.mxu0
  %671 = vmatprep.mubr.bf16.mxu0 0
  %672 = vmatmul.mubr.bf16.gmra.mxu0 %v307
  %v673 = vpop.f32.mrf.mxu0
  %v674 = vadd.f32 %v215, %v673
  %v675 = vpop.f32.mrf.mxu0
  %v676 = vpop.f32.mrf.mxu0
  %v677 = vadd.f32 %v215, %v676
  %v678 = vpop.f32.mrf.mxu0
  %679 = vmatprep.mubr.bf16.mxu0 0
  %680 = vmatmul.mubr.bf16.gmra.mxu0 %v310
  %v681 = vpop.f32.mrf.mxu0
  %v682 = vadd.f32 %v215, %v681
  %v683 = vpop.f32.mrf.mxu0
  %v684 = vpop.f32.mrf.mxu0
  %v685 = vadd.f32 %v215, %v684
  %v686 = vpop.f32.mrf.mxu0
  %687 = vmatprep.mubr.bf16.mxu0 0
  %688 = vmatmul.mubr.bf16.gmra.mxu0 %v313
  %v689 = vpop.f32.mrf.mxu0
  %v690 = vadd.f32 %v215, %v689
  %v691 = vpop.f32.mrf.mxu0
  %v692 = vpop.f32.mrf.mxu0
  %v693 = vadd.f32 %v215, %v692
  %v694 = vpop.f32.mrf.mxu0
  %695 = vmatprep.mubr.bf16.mxu0 0
  %696 = vmatmul.mubr.bf16.gmra.mxu0 %v316
  %v697 = vpop.f32.mrf.mxu0
  %v698 = vadd.f32 %v215, %v697
  %v699 = vpop.f32.mrf.mxu0
  %v700 = vpop.f32.mrf.mxu0
  %v701 = vadd.f32 %v215, %v700
  %v702 = vpop.f32.mrf.mxu0
  %703 = vmatprep.mubr.bf16.mxu0 0
  %704 = vmatmul.mubr.bf16.gmra.mxu0 %v319
  %v705 = vpop.f32.mrf.mxu0
  %v706 = vadd.f32 %v215, %v705
  %v707 = vpop.f32.mrf.mxu0
  %v708 = vpop.f32.mrf.mxu0
  %v709 = vadd.f32 %v215, %v708
  %v710 = vpop.f32.mrf.mxu0
  %711 = vmatprep.mubr.bf16.mxu0 0
  %712 = vmatmul.mubr.bf16.gmra.mxu0 %v322
  %v713 = vpop.f32.mrf.mxu0
  %v714 = vadd.f32 %v215, %v713
  %v715 = vpop.f32.mrf.mxu0
  %v716 = vpop.f32.mrf.mxu0
  %v717 = vadd.f32 %v215, %v716
  %v718 = vpop.f32.mrf.mxu0
  %719 = vmatprep.mubr.bf16.mxu0 0
  %720 = vmatmul.mubr.bf16.gmra.mxu0 %v325
  %v721 = vpop.f32.mrf.mxu0
  %v722 = vadd.f32 %v215, %v721
  %v723 = vpop.f32.mrf.mxu0
  %v724 = vpop.f32.mrf.mxu0
  %v725 = vadd.f32 %v215, %v724
  %v726 = vpop.f32.mrf.mxu0
  %727 = vmatprep.mubr.bf16.mxu0 0
  %728 = vmatmul.mubr.bf16.gmra.mxu0 %v328
  %v729 = vpop.f32.mrf.mxu0
  %v730 = vadd.f32 %v215, %v729
  %v731 = vpop.f32.mrf.mxu0
  %v732 = vpop.f32.mrf.mxu0
  %v733 = vadd.f32 %v215, %v732
  %v734 = vpop.f32.mrf.mxu0
  %735 = vmatprep.mubr.bf16.mxu0 0
  %736 = vmatmul.mubr.bf16.gmra.mxu0 %v331
  %v737 = vpop.f32.mrf.mxu0
  %v738 = vadd.f32 %v215, %v737
  %v739 = vpop.f32.mrf.mxu0
  %v740 = vpop.f32.mrf.mxu0
  %v741 = vadd.f32 %v215, %v740
  %v742 = vpop.f32.mrf.mxu0
  %743 = vmatprep.mubr.bf16.mxu0 0
  %744 = vmatmul.mubr.bf16.gmra.mxu0 %v334
  %v745 = vpop.f32.mrf.mxu0
  %v746 = vadd.f32 %v215, %v745
  %v747 = vpop.f32.mrf.mxu0
  %v748 = vpop.f32.mrf.mxu0
  %v749 = vadd.f32 %v215, %v748
  %v750 = vpop.f32.mrf.mxu0
  %751 = vmatprep.mubr.bf16.mxu0 0
  %752 = vmatmul.mubr.bf16.gmra.mxu0 %v337
  %v753 = vpop.f32.mrf.mxu0
  %v754 = vadd.f32 %v215, %v753
  %v755 = vpop.f32.mrf.mxu0
  %v756 = vpop.f32.mrf.mxu0
  %v757 = vadd.f32 %v215, %v756
  %v758 = vpop.f32.mrf.mxu0
  %759 = vmatprep.mubr.bf16.mxu0 0
  %760 = vmatmul.mubr.bf16.gmra.mxu0 %v340
  %v761 = vpop.f32.mrf.mxu0
  %v762 = vadd.f32 %v215, %v761
  %v763 = vpop.f32.mrf.mxu0
  %v764 = vpop.f32.mrf.mxu0
  %v765 = vadd.f32 %v215, %v764
  %v766 = vpop.f32.mrf.mxu0
  %767 = vmatprep.mubr.bf16.mxu0 0
  %768 = vmatmul.mubr.bf16.gmra.mxu0 %v343
  %v769 = vpop.f32.mrf.mxu0
  %v770 = vadd.f32 %v215, %v769
  %v771 = vpop.f32.mrf.mxu0
  %v772 = vpop.f32.mrf.mxu0
  %v773 = vadd.f32 %v215, %v772
  %v774 = vpop.f32.mrf.mxu0
  %775 = vmatprep.mubr.bf16.mxu0 0
  %776 = vmatmul.mubr.bf16.gmra.mxu0 %v346
  %v777 = vpop.f32.mrf.mxu0
  %v778 = vadd.f32 %v215, %v777
  %v779 = vpop.f32.mrf.mxu0
  %v780 = vpop.f32.mrf.mxu0
  %v781 = vadd.f32 %v215, %v780
  %v782 = vpop.f32.mrf.mxu0
  %783 = vmatprep.mubr.bf16.mxu0 0
  %784 = vmatmul.mubr.bf16.gmra.mxu0 %v349
  %v785 = vpop.f32.mrf.mxu0
  %v786 = vadd.f32 %v215, %v785
  %v787 = vpop.f32.mrf.mxu0
  %v788 = vpop.f32.mrf.mxu0
  %v789 = vadd.f32 %v215, %v788
  %v790 = vpop.f32.mrf.mxu0
  %791 = vmatprep.mubr.bf16.mxu0 0
  %792 = vmatmul.mubr.bf16.gmra.mxu0 %v352
  %v793 = vpop.f32.mrf.mxu0
  %v794 = vadd.f32 %v215, %v793
  %v795 = vpop.f32.mrf.mxu0
  %v796 = vpop.f32.mrf.mxu0
  %v797 = vadd.f32 %v215, %v796
  %v798 = vpop.f32.mrf.mxu0
  %799 = vmatprep.mubr.bf16.mxu0 0
  %800 = vmatmul.mubr.bf16.gmra.mxu0 %v355
  %v801 = vpop.f32.mrf.mxu0
  %v802 = vadd.f32 %v215, %v801
  %v803 = vpop.f32.mrf.mxu0
  %v804 = vpop.f32.mrf.mxu0
  %v805 = vadd.f32 %v215, %v804
  %v806 = vpop.f32.mrf.mxu0
  %807 = vmatprep.mubr.bf16.mxu0 0
  %808 = vmatmul.mubr.bf16.gmra.mxu0 %v358
  %v809 = vpop.f32.mrf.mxu0
  %v810 = vadd.f32 %v215, %v809
  %v811 = vpop.f32.mrf.mxu0
  %v812 = vpop.f32.mrf.mxu0
  %v813 = vadd.f32 %v215, %v812
  %v814 = vpop.f32.mrf.mxu0
  %815 = vmatprep.mubr.bf16.mxu0 0
  %816 = vmatmul.mubr.bf16.gmra.mxu0 %v361
  %v817 = vpop.f32.mrf.mxu0
  %v818 = vadd.f32 %v215, %v817
  %v819 = vpop.f32.mrf.mxu0
  %v820 = vpop.f32.mrf.mxu0
  %v821 = vadd.f32 %v215, %v820
  %v822 = vpop.f32.mrf.mxu0
  %823 = vmatprep.mubr.bf16.mxu0 0
  %824 = vmatmul.mubr.bf16.gmra.mxu0 %v364
  %v825 = vpop.f32.mrf.mxu0
  %v826 = vadd.f32 %v215, %v825
  %v827 = vpop.f32.mrf.mxu0
  %v828 = vpop.f32.mrf.mxu0
  %v829 = vadd.f32 %v215, %v828
  %v830 = vpop.f32.mrf.mxu0
  %831 = vmatprep.mubr.bf16.mxu0 0
  %832 = vmatmul.mubr.bf16.gmra.mxu0 %v367
  %v833 = vpop.f32.mrf.mxu0
  %v834 = vadd.f32 %v215, %v833
  %v835 = vpop.f32.mrf.mxu0
  %v836 = vpop.f32.mrf.mxu0
  %v837 = vadd.f32 %v215, %v836
  %v838 = vpop.f32.mrf.mxu0
  %839 = vmatprep.mubr.bf16.mxu0 0
  %840 = vmatmul.mubr.bf16.gmra.mxu0 %v370
  %v841 = vpop.f32.mrf.mxu0
  %v842 = vadd.f32 %v215, %v841
  %v843 = vpop.f32.mrf.mxu0
  %v844 = vpop.f32.mrf.mxu0
  %v845 = vadd.f32 %v215, %v844
  %v846 = vpop.f32.mrf.mxu0
  %847 = vmatprep.mubr.bf16.mxu0 0
  %848 = vmatmul.mubr.bf16.gmra.mxu0 %v373
  %v849 = vpop.f32.mrf.mxu0
  %v850 = vadd.f32 %v215, %v849
  %v851 = vpop.f32.mrf.mxu0
  %v852 = vpop.f32.mrf.mxu0
  %v853 = vadd.f32 %v215, %v852
  %v854 = vpop.f32.mrf.mxu0
  %855 = vmatprep.mubr.bf16.mxu0 0
  %856 = vmatmul.mubr.bf16.gmra.mxu0 %v376
  %v857 = vpop.f32.mrf.mxu0
  %v858 = vadd.f32 %v215, %v857
  %v859 = vpop.f32.mrf.mxu0
  %v860 = vpop.f32.mrf.mxu0
  %v861 = vadd.f32 %v215, %v860
  %v862 = vpop.f32.mrf.mxu0
  %863 = vmatprep.mubr.bf16.mxu0 0
  %864 = vmatmul.mubr.bf16.gmra.mxu0 %v379
  %v865 = vpop.f32.mrf.mxu0
  %v866 = vadd.f32 %v215, %v865
  %v867 = vpop.f32.mrf.mxu0
  %v868 = vpop.f32.mrf.mxu0
  %v869 = vadd.f32 %v215, %v868
  %v870 = vpop.f32.mrf.mxu0
  %871 = vmatprep.mubr.bf16.mxu0 0
  %872 = vmatmul.mubr.bf16.gmra.mxu0 %v382
  %v873 = vpop.f32.mrf.mxu0
  %v874 = vadd.f32 %v215, %v873
  %v875 = vpop.f32.mrf.mxu0
  %v876 = vpop.f32.mrf.mxu0
  %v877 = vadd.f32 %v215, %v876
  %v878 = vpop.f32.mrf.mxu0
  %879 = vmatprep.mubr.bf16.mxu0 0
  %880 = vmatmul.mubr.bf16.gmra.mxu0 %v385
  %v881 = vpop.f32.mrf.mxu0
  %v882 = vadd.f32 %v215, %v881
  %v883 = vpop.f32.mrf.mxu0
  %v884 = vpop.f32.mrf.mxu0
  %v885 = vadd.f32 %v215, %v884
  %v886 = vpop.f32.mrf.mxu0
  %887 = vmatprep.mubr.bf16.mxu0 0
  %888 = vmatmul.mubr.bf16.gmra.mxu0 %v388
  %v889 = vpop.f32.mrf.mxu0
  %v890 = vadd.f32 %v215, %v889
  %v891 = vpop.f32.mrf.mxu0
  %v892 = vpop.f32.mrf.mxu0
  %v893 = vadd.f32 %v215, %v892
  %v894 = vpop.f32.mrf.mxu0
  %895 = vmatprep.mubr.bf16.mxu0 0
  %896 = vmatmul.mubr.bf16.gmra.mxu0 %v391
  %v897 = vpop.f32.mrf.mxu0
  %v898 = vadd.f32 %v215, %v897
  %v899 = vpop.f32.mrf.mxu0
  %v900 = vpop.f32.mrf.mxu0
  %v901 = vadd.f32 %v215, %v900
  %v902 = vpop.f32.mrf.mxu0
  %903 = vmatprep.mubr.bf16.mxu0 0
  %904 = vmatmul.mubr.bf16.gmra.mxu0 %v394
  %v905 = vpop.f32.mrf.mxu0
  %v906 = vadd.f32 %v215, %v905
  %v907 = vpop.f32.mrf.mxu0
  %v908 = vpop.f32.mrf.mxu0
  %v909 = vadd.f32 %v215, %v908
  %v910 = vpop.f32.mrf.mxu0
  %911 = vmatprep.mubr.bf16.mxu0 0
  %912 = vmatmul.mubr.bf16.gmra.mxu0 %v397
  %v913 = vpop.f32.mrf.mxu0
  %v914 = vadd.f32 %v215, %v913
  %v915 = vpop.f32.mrf.mxu0
  %v916 = vpop.f32.mrf.mxu0
  %v917 = vadd.f32 %v215, %v916
  %v918 = vpop.f32.mrf.mxu0
  %919 = vmatprep.mubr.bf16.mxu0 0
  %920 = vmatmul.mubr.bf16.gmra.mxu0 %v400
  %v921 = vpop.f32.mrf.mxu0
  %v922 = vadd.f32 %v215, %v921
  %v923 = vpop.f32.mrf.mxu0
  %v924 = vpop.f32.mrf.mxu0
  %v925 = vadd.f32 %v215, %v924
  %v926 = vpop.f32.mrf.mxu0
  %927 = vmatprep.mubr.bf16.mxu0 0
  %928 = vmatmul.mubr.bf16.gmra.mxu0 %v403
  %v929 = vpop.f32.mrf.mxu0
  %v930 = vadd.f32 %v215, %v929
  %v931 = vpop.f32.mrf.mxu0
  %v932 = vpop.f32.mrf.mxu0
  %v933 = vadd.f32 %v215, %v932
  %v934 = vpop.f32.mrf.mxu0
  %935 = vmatprep.mubr.bf16.mxu0 0
  %936 = vmatmul.mubr.bf16.gmra.mxu0 %v406
  %v937 = vpop.f32.mrf.mxu0
  %v938 = vadd.f32 %v215, %v937
  %v939 = vpop.f32.mrf.mxu0
  %v940 = vpop.f32.mrf.mxu0
  %v941 = vadd.f32 %v215, %v940
  %v942 = vpop.f32.mrf.mxu0
  %943 = vmatprep.mubr.bf16.mxu0 0
  %944 = vmatmul.mubr.bf16.gmra.mxu0 %v409
  %v945 = vpop.f32.mrf.mxu0
  %v946 = vadd.f32 %v215, %v945
  %v947 = vpop.f32.mrf.mxu0
  %v948 = vpop.f32.mrf.mxu0
  %v949 = vpop.f32.mrf.mxu0
  %950 = vdwg.mxu0
  %v951 = vmax.f32 %v450, 0.0
  %v952 = vmax.f32 %v453, 0.0
  %v953 = vmax.f32 %v458, 0.0
  %v954 = vmax.f32 %v461, 0.0
  %v955 = vmax.f32 %v466, 0.0
  %v956 = vmax.f32 %v469, 0.0
  %v957 = vmax.f32 %v474, 0.0
  %v958 = vmax.f32 %v477, 0.0
  %v959 = vmax.f32 %v482, 0.0
  %v960 = vmax.f32 %v485, 0.0
  %v961 = vmax.f32 %v490, 0.0
  %v962 = vmax.f32 %v493, 0.0
  %v963 = vmax.f32 %v498, 0.0
  %v964 = vmax.f32 %v501, 0.0
  %v965 = vmax.f32 %v506, 0.0
  %v966 = vmax.f32 %v509, 0.0
  %v967 = vmax.f32 %v514, 0.0
  %v968 = vmax.f32 %v517, 0.0
  %v969 = vmax.f32 %v522, 0.0
  %v970 = vmax.f32 %v525, 0.0
  %v971 = vmax.f32 %v530, 0.0
  %v972 = vmax.f32 %v533, 0.0
  %v973 = vmax.f32 %v538, 0.0
  %v974 = vmax.f32 %v541, 0.0
  %v975 = vmax.f32 %v546, 0.0
  %v976 = vmax.f32 %v549, 0.0
  %v977 = vmax.f32 %v554, 0.0
  %v978 = vmax.f32 %v557, 0.0
  %v979 = vmax.f32 %v562, 0.0
  %v980 = vmax.f32 %v565, 0.0
  %v981 = vmax.f32 %v570, 0.0
  %v982 = vmax.f32 %v573, 0.0
  %v983 = vmax.f32 %v578, 0.0
  %v984 = vmax.f32 %v581, 0.0
  %v985 = vmax.f32 %v586, 0.0
  %v986 = vmax.f32 %v589, 0.0
  %v987 = vmax.f32 %v594, 0.0
  %v988 = vmax.f32 %v597, 0.0
  %v989 = vmax.f32 %v602, 0.0
  %v990 = vmax.f32 %v605, 0.0
  %v991 = vmax.f32 %v610, 0.0
  %v992 = vmax.f32 %v613, 0.0
  %v993 = vmax.f32 %v618, 0.0
  %v994 = vmax.f32 %v621, 0.0
  %v995 = vmax.f32 %v626, 0.0
  %v996 = vmax.f32 %v629, 0.0
  %v997 = vmax.f32 %v634, 0.0
  %v998 = vmax.f32 %v637, 0.0
  %v999 = vmax.f32 %v642, 0.0
  %v1000 = vmax.f32 %v645, 0.0
  %v1001 = vmax.f32 %v650, 0.0
  %v1002 = vmax.f32 %v653, 0.0
  %v1003 = vmax.f32 %v658, 0.0
  %v1004 = vmax.f32 %v661, 0.0
  %v1005 = vmax.f32 %v666, 0.0
  %v1006 = vmax.f32 %v669, 0.0
  %v1007 = vmax.f32 %v674, 0.0
  %v1008 = vmax.f32 %v677, 0.0
  %v1009 = vmax.f32 %v682, 0.0
  %v1010 = vmax.f32 %v685, 0.0
  %v1011 = vmax.f32 %v690, 0.0
  %v1012 = vmax.f32 %v693, 0.0
  %v1013 = vmax.f32 %v698, 0.0
  %v1014 = vmax.f32 %v701, 0.0
  %v1015 = vmax.f32 %v706, 0.0
  %v1016 = vmax.f32 %v709, 0.0
  %v1017 = vmax.f32 %v714, 0.0
  %v1018 = vmax.f32 %v717, 0.0
  %v1019 = vmax.f32 %v722, 0.0
  %v1020 = vmax.f32 %v725, 0.0
  %v1021 = vmax.f32 %v730, 0.0
  %v1022 = vmax.f32 %v733, 0.0
  %v1023 = vmax.f32 %v738, 0.0
  %v1024 = vmax.f32 %v741, 0.0
  %v1025 = vmax.f32 %v746, 0.0
  %v1026 = vmax.f32 %v749, 0.0
  %v1027 = vmax.f32 %v754, 0.0
  %v1028 = vmax.f32 %v757, 0.0
  %v1029 = vmax.f32 %v762, 0.0
  %v1030 = vmax.f32 %v765, 0.0
  %v1031 = vmax.f32 %v770, 0.0
  %v1032 = vmax.f32 %v773, 0.0
  %v1033 = vmax.f32 %v778, 0.0
  %v1034 = vmax.f32 %v781, 0.0
  %v1035 = vmax.f32 %v786, 0.0
  %v1036 = vmax.f32 %v789, 0.0
  %v1037 = vmax.f32 %v794, 0.0
  %v1038 = vmax.f32 %v797, 0.0
  %v1039 = vmax.f32 %v802, 0.0
  %v1040 = vmax.f32 %v805, 0.0
  %v1041 = vmax.f32 %v810, 0.0
  %v1042 = vmax.f32 %v813, 0.0
  %v1043 = vmax.f32 %v818, 0.0
  %v1044 = vmax.f32 %v821, 0.0
  %v1045 = vmax.f32 %v826, 0.0
  %v1046 = vmax.f32 %v829, 0.0
  %v1047 = vmax.f32 %v834, 0.0
  %v1048 = vmax.f32 %v837, 0.0
  %v1049 = vmax.f32 %v842, 0.0
  %v1050 = vmax.f32 %v845, 0.0
  %v1051 = vmax.f32 %v850, 0.0
  %v1052 = vmax.f32 %v853, 0.0
  %v1053 = vmax.f32 %v858, 0.0
  %v1054 = vmax.f32 %v861, 0.0
  %v1055 = vmax.f32 %v866, 0.0
  %v1056 = vmax.f32 %v869, 0.0
  %v1057 = vmax.f32 %v874, 0.0
  %v1058 = vmax.f32 %v877, 0.0
  %v1059 = vmax.f32 %v882, 0.0
  %v1060 = vmax.f32 %v885, 0.0
  %v1061 = vmax.f32 %v890, 0.0
  %v1062 = vmax.f32 %v893, 0.0
  %v1063 = vmax.f32 %v898, 0.0
  %v1064 = vmax.f32 %v901, 0.0
  %v1065 = vmax.f32 %v906, 0.0
  %v1066 = vmax.f32 %v909, 0.0
  %v1067 = vmax.f32 %v914, 0.0
  %v1068 = vmax.f32 %v917, 0.0
  %v1069 = vmax.f32 %v922, 0.0
  %v1070 = vmax.f32 %v925, 0.0
  %v1071 = vmax.f32 %v930, 0.0
  %v1072 = vmax.f32 %v933, 0.0
  %v1073 = vmax.f32 %v938, 0.0
  %v1074 = vmax.f32 %v941, 0.0
  %v1075 = vmax.f32 %v946, 0.0
  %v1076 = vpack.c.bf16 %v952, %v951
  %v1077 = vpack.c.bf16 %v954, %v953
  %v1078 = vpack.c.bf16 %v956, %v955
  %v1079 = vpack.c.bf16 %v958, %v957
  %v1080 = vpack.c.bf16 %v960, %v959
  %v1081 = vpack.c.bf16 %v962, %v961
  %v1082 = vpack.c.bf16 %v964, %v963
  %v1083 = vpack.c.bf16 %v966, %v965
  %v1084 = vpack.c.bf16 %v968, %v967
  %v1085 = vpack.c.bf16 %v970, %v969
  %v1086 = vpack.c.bf16 %v972, %v971
  %v1087 = vpack.c.bf16 %v974, %v973
  %v1088 = vpack.c.bf16 %v976, %v975
  %v1089 = vpack.c.bf16 %v978, %v977
  %v1090 = vpack.c.bf16 %v980, %v979
  %v1091 = vpack.c.bf16 %v982, %v981
  %v1092 = vpack.c.bf16 %v984, %v983
  %v1093 = vpack.c.bf16 %v986, %v985
  %v1094 = vpack.c.bf16 %v988, %v987
  %v1095 = vpack.c.bf16 %v990, %v989
  %v1096 = vpack.c.bf16 %v992, %v991
  %v1097 = vpack.c.bf16 %v994, %v993
  %v1098 = vpack.c.bf16 %v996, %v995
  %v1099 = vpack.c.bf16 %v998, %v997
  %v1100 = vpack.c.bf16 %v1000, %v999
  %v1101 = vpack.c.bf16 %v1002, %v1001
  %v1102 = vpack.c.bf16 %v1004, %v1003
  %v1103 = vpack.c.bf16 %v1006, %v1005
  %v1104 = vpack.c.bf16 %v1008, %v1007
  %v1105 = vpack.c.bf16 %v1010, %v1009
  %v1106 = vpack.c.bf16 %v1012, %v1011
  %v1107 = vpack.c.bf16 %v1014, %v1013
  %v1108 = vpack.c.bf16 %v1016, %v1015
  %v1109 = vpack.c.bf16 %v1018, %v1017
  %v1110 = vpack.c.bf16 %v1020, %v1019
  %v1111 = vpack.c.bf16 %v1022, %v1021
  %v1112 = vpack.c.bf16 %v1024, %v1023
  %v1113 = vpack.c.bf16 %v1026, %v1025
  %v1114 = vpack.c.bf16 %v1028, %v1027
  %v1115 = vpack.c.bf16 %v1030, %v1029
  %v1116 = vpack.c.bf16 %v1032, %v1031
  %v1117 = vpack.c.bf16 %v1034, %v1033
  %v1118 = vpack.c.bf16 %v1036, %v1035
  %v1119 = vpack.c.bf16 %v1038, %v1037
  %v1120 = vpack.c.bf16 %v1040, %v1039
  %v1121 = vpack.c.bf16 %v1042, %v1041
  %v1122 = vpack.c.bf16 %v1044, %v1043
  %v1123 = vpack.c.bf16 %v1046, %v1045
  %v1124 = vpack.c.bf16 %v1048, %v1047
  %v1125 = vpack.c.bf16 %v1050, %v1049
  %v1126 = vpack.c.bf16 %v1052, %v1051
  %v1127 = vpack.c.bf16 %v1054, %v1053
  %v1128 = vpack.c.bf16 %v1056, %v1055
  %v1129 = vpack.c.bf16 %v1058, %v1057
  %v1130 = vpack.c.bf16 %v1060, %v1059
  %v1131 = vpack.c.bf16 %v1062, %v1061
  %v1132 = vpack.c.bf16 %v1064, %v1063
  %v1133 = vpack.c.bf16 %v1066, %v1065
  %v1134 = vpack.c.bf16 %v1068, %v1067
  %v1135 = vpack.c.bf16 %v1070, %v1069
  %v1136 = vpack.c.bf16 %v1072, %v1071
  %v1137 = vpack.c.bf16 %v1074, %v1073
  %v1138 = vpack.c.bf16 %v1075, %v1075
  %v1139 = vld [vmem:[%s2] sm:$0xf]
  %v1140 = vld [vmem:[%s2 + $0x4] sm:$0xf]
  %v1141 = vld [vmem:[%s2 + $0x8] sm:$0xf]
  %v1142 = vld [vmem:[%s2 + $0xc] sm:$0xf]
  %v1143 = vld [vmem:[%s2 + $0x10] sm:$0xf]
  %v1144 = vld [vmem:[%s2 + $0x14] sm:$0xf]
  %v1145 = vld [vmem:[%s2 + $0x18] sm:$0xf]
  %v1146 = vld [vmem:[%s2 + $0x1c] sm:$0xf]
  %v1147 = vld [vmem:[%s2 + $0x20] sm:$0xf]
  %v1148 = vld [vmem:[%s2 + $0x24] sm:$0xf]
  %v1149 = vld [vmem:[%s2 + $0x28] sm:$0xf]
  %v1150 = vld [vmem:[%s2 + $0x2c] sm:$0xf]
  %v1151 = vld [vmem:[%s2 + $0x30] sm:$0xf]
  %v1152 = vld [vmem:[%s2 + $0x34] sm:$0xf]
  %v1153 = vld [vmem:[%s2 + $0x38] sm:$0xf]
  %v1154 = vld [vmem:[%s2 + $0x3c] sm:$0xf]
  %v1155 = vlaneseq
  %v1156 = vshrl.u32 %v1155, 7
  %v1157 = vsub.s32 1, %v1156
  %v1158 = vrot.slane %v21, %v1157
  %v1175 = vunpack.c.l.b16 %v1139
  %v1176 = vunpack.c.l.b16 %v1140
  %v1177 = vunpack.c.l.b16 %v1141
  %v1178 = vunpack.c.l.b16 %v1142
  %v1179 = vunpack.c.l.b16 %v1143
  %v1180 = vunpack.c.l.b16 %v1144
  %v1181 = vunpack.c.l.b16 %v1145
  %v1182 = vunpack.c.l.b16 %v1146
  %v1183 = vunpack.c.l.b16 %v1147
  %v1184 = vunpack.c.l.b16 %v1148
  %v1185 = vunpack.c.l.b16 %v1149
  %v1186 = vunpack.c.l.b16 %v1150
  %v1187 = vunpack.c.l.b16 %v1151
  %v1188 = vunpack.c.l.b16 %v1152
  %v1189 = vunpack.c.l.b16 %v1153
  %v1190 = vunpack.c.l.b16 %v1154
  %v1191 = vpack.c.b16 %v1176, %v1175
  %v1192 = vpack.c.b16 %v1178, %v1177
  %v1193 = vpack.c.b16 %v1180, %v1179
  %v1194 = vpack.c.b16 %v1182, %v1181
  %v1195 = vpack.c.b16 %v1184, %v1183
  %v1196 = vpack.c.b16 %v1186, %v1185
  %v1197 = vpack.c.b16 %v1188, %v1187
  %v1198 = vpack.c.b16 %v1190, %v1189
  %1207 = vmatprep.subr.bf16.mxu0 0
  %1208 = vmatpush1.bf16.msra.mxu0 %v1198
  %1209 = vmatprep.subr.bf16.mxu0 0
  %1210 = vmatpush1.bf16.msra.mxu0 %v1197
  %1211 = vmatprep.subr.bf16.mxu0 0
  %1212 = vmatpush1.bf16.msra.mxu0 %v1196
  %1213 = vmatprep.subr.bf16.mxu0 0
  %1214 = vmatpush1.bf16.msra.mxu0 %v1195
  %1215 = vmatprep.subr.bf16.mxu0 0
  %1216 = vmatpush1.bf16.msra.mxu0 %v1194
  %1217 = vmatprep.subr.bf16.mxu0 0
  %1218 = vmatpush1.bf16.msra.mxu0 %v1193
  %1219 = vmatprep.subr.bf16.mxu0 0
  %1220 = vmatpush1.bf16.msra.mxu0 %v1192
  %1221 = vmatprep.subr.bf16.mxu0 0
  %1222 = vmatpush1.bf16.msra.mxu0 %v1191
  %1223 = vmatprep.subr.bf16.mxu0 0
  %1224 = vmatpush2.bf16.msra.mxu0 0
  %1225 = vmatprep.subr.bf16.mxu0 0
  %1226 = vmatpush2.bf16.msra.mxu0 0
  %1227 = vmatprep.subr.bf16.mxu0 0
  %1228 = vmatpush2.bf16.msra.mxu0 0
  %1229 = vmatprep.subr.bf16.mxu0 0
  %1230 = vmatpush2.bf16.msra.mxu0 0
  %1231 = vmatprep.subr.bf16.mxu0 0
  %1232 = vmatpush2.bf16.msra.mxu0 0
  %1233 = vmatprep.subr.bf16.mxu0 0
  %1234 = vmatpush2.bf16.msra.mxu0 0
  %1235 = vmatprep.subr.bf16.mxu0 0
  %1236 = vmatpush2.bf16.msra.mxu0 0
  %1237 = vmatprep.subr.bf16.mxu0 0
  %1238 = vmatpush2.bf16.msra.mxu0 0
  %1239 = vmatprep.mubr.bf16.mxu0 0
  %1240 = vmatmul.mubr.bf16.gmra.mxu0 %v1076
  %v1241 = vpop.f32.mrf.mxu0
  %v1242 = vadd.f32 %v1158, %v1241
  %v1243 = vpop.f32.mrf.mxu0
  %v1244 = vpop.f32.mrf.mxu0
  %v1245 = vadd.f32 %v1158, %v1244
  %v1246 = vpop.f32.mrf.mxu0
  %1247 = vmatprep.mubr.bf16.mxu0 0
  %1248 = vmatmul.mubr.bf16.gmra.mxu0 %v1077
  %v1249 = vpop.f32.mrf.mxu0
  %v1250 = vadd.f32 %v1158, %v1249
  %v1251 = vpop.f32.mrf.mxu0
  %v1252 = vpop.f32.mrf.mxu0
  %v1253 = vadd.f32 %v1158, %v1252
  %v1254 = vpop.f32.mrf.mxu0
  %1255 = vmatprep.mubr.bf16.mxu0 0
  %1256 = vmatmul.mubr.bf16.gmra.mxu0 %v1078
  %v1257 = vpop.f32.mrf.mxu0
  %v1258 = vadd.f32 %v1158, %v1257
  %v1259 = vpop.f32.mrf.mxu0
  %v1260 = vpop.f32.mrf.mxu0
  %v1261 = vadd.f32 %v1158, %v1260
  %v1262 = vpop.f32.mrf.mxu0
  %1263 = vmatprep.mubr.bf16.mxu0 0
  %1264 = vmatmul.mubr.bf16.gmra.mxu0 %v1079
  %v1265 = vpop.f32.mrf.mxu0
  %v1266 = vadd.f32 %v1158, %v1265
  %v1267 = vpop.f32.mrf.mxu0
  %v1268 = vpop.f32.mrf.mxu0
  %v1269 = vadd.f32 %v1158, %v1268
  %v1270 = vpop.f32.mrf.mxu0
  %1271 = vmatprep.mubr.bf16.mxu0 0
  %1272 = vmatmul.mubr.bf16.gmra.mxu0 %v1080
  %v1273 = vpop.f32.mrf.mxu0
  %v1274 = vadd.f32 %v1158, %v1273
  %v1275 = vpop.f32.mrf.mxu0
  %v1276 = vpop.f32.mrf.mxu0
  %v1277 = vadd.f32 %v1158, %v1276
  %v1278 = vpop.f32.mrf.mxu0
  %1279 = vmatprep.mubr.bf16.mxu0 0
  %1280 = vmatmul.mubr.bf16.gmra.mxu0 %v1081
  %v1281 = vpop.f32.mrf.mxu0
  %v1282 = vadd.f32 %v1158, %v1281
  %v1283 = vpop.f32.mrf.mxu0
  %v1284 = vpop.f32.mrf.mxu0
  %v1285 = vadd.f32 %v1158, %v1284
  %v1286 = vpop.f32.mrf.mxu0
  %1287 = vmatprep.mubr.bf16.mxu0 0
  %1288 = vmatmul.mubr.bf16.gmra.mxu0 %v1082
  %v1289 = vpop.f32.mrf.mxu0
  %v1290 = vadd.f32 %v1158, %v1289
  %v1291 = vpop.f32.mrf.mxu0
  %v1292 = vpop.f32.mrf.mxu0
  %v1293 = vadd.f32 %v1158, %v1292
  %v1294 = vpop.f32.mrf.mxu0
  %1295 = vmatprep.mubr.bf16.mxu0 0
  %1296 = vmatmul.mubr.bf16.gmra.mxu0 %v1083
  %v1297 = vpop.f32.mrf.mxu0
  %v1298 = vadd.f32 %v1158, %v1297
  %v1299 = vpop.f32.mrf.mxu0
  %v1300 = vpop.f32.mrf.mxu0
  %v1301 = vadd.f32 %v1158, %v1300
  %v1302 = vpop.f32.mrf.mxu0
  %1303 = vmatprep.mubr.bf16.mxu0 0
  %1304 = vmatmul.mubr.bf16.gmra.mxu0 %v1084
  %v1305 = vpop.f32.mrf.mxu0
  %v1306 = vadd.f32 %v1158, %v1305
  %v1307 = vpop.f32.mrf.mxu0
  %v1308 = vpop.f32.mrf.mxu0
  %v1309 = vadd.f32 %v1158, %v1308
  %v1310 = vpop.f32.mrf.mxu0
  %1311 = vmatprep.mubr.bf16.mxu0 0
  %1312 = vmatmul.mubr.bf16.gmra.mxu0 %v1085
  %v1313 = vpop.f32.mrf.mxu0
  %v1314 = vadd.f32 %v1158, %v1313
  %v1315 = vpop.f32.mrf.mxu0
  %v1316 = vpop.f32.mrf.mxu0
  %v1317 = vadd.f32 %v1158, %v1316
  %v1318 = vpop.f32.mrf.mxu0
  %1319 = vmatprep.mubr.bf16.mxu0 0
  %1320 = vmatmul.mubr.bf16.gmra.mxu0 %v1086
  %v1321 = vpop.f32.mrf.mxu0
  %v1322 = vadd.f32 %v1158, %v1321
  %v1323 = vpop.f32.mrf.mxu0
  %v1324 = vpop.f32.mrf.mxu0
  %v1325 = vadd.f32 %v1158, %v1324
  %v1326 = vpop.f32.mrf.mxu0
  %1327 = vmatprep.mubr.bf16.mxu0 0
  %1328 = vmatmul.mubr.bf16.gmra.mxu0 %v1087
  %v1329 = vpop.f32.mrf.mxu0
  %v1330 = vadd.f32 %v1158, %v1329
  %v1331 = vpop.f32.mrf.mxu0
  %v1332 = vpop.f32.mrf.mxu0
  %v1333 = vadd.f32 %v1158, %v1332
  %v1334 = vpop.f32.mrf.mxu0
  %1335 = vmatprep.mubr.bf16.mxu0 0
  %1336 = vmatmul.mubr.bf16.gmra.mxu0 %v1088
  %v1337 = vpop.f32.mrf.mxu0
  %v1338 = vadd.f32 %v1158, %v1337
  %v1339 = vpop.f32.mrf.mxu0
  %v1340 = vpop.f32.mrf.mxu0
  %v1341 = vadd.f32 %v1158, %v1340
  %v1342 = vpop.f32.mrf.mxu0
  %1343 = vmatprep.mubr.bf16.mxu0 0
  %1344 = vmatmul.mubr.bf16.gmra.mxu0 %v1089
  %v1345 = vpop.f32.mrf.mxu0
  %v1346 = vadd.f32 %v1158, %v1345
  %v1347 = vpop.f32.mrf.mxu0
  %v1348 = vpop.f32.mrf.mxu0
  %v1349 = vadd.f32 %v1158, %v1348
  %v1350 = vpop.f32.mrf.mxu0
  %1351 = vmatprep.mubr.bf16.mxu0 0
  %1352 = vmatmul.mubr.bf16.gmra.mxu0 %v1090
  %v1353 = vpop.f32.mrf.mxu0
  %v1354 = vadd.f32 %v1158, %v1353
  %v1355 = vpop.f32.mrf.mxu0
  %v1356 = vpop.f32.mrf.mxu0
  %v1357 = vadd.f32 %v1158, %v1356
  %v1358 = vpop.f32.mrf.mxu0
  %1359 = vmatprep.mubr.bf16.mxu0 0
  %1360 = vmatmul.mubr.bf16.gmra.mxu0 %v1091
  %v1361 = vpop.f32.mrf.mxu0
  %v1362 = vadd.f32 %v1158, %v1361
  %v1363 = vpop.f32.mrf.mxu0
  %v1364 = vpop.f32.mrf.mxu0
  %v1365 = vadd.f32 %v1158, %v1364
  %v1366 = vpop.f32.mrf.mxu0
  %1367 = vmatprep.mubr.bf16.mxu0 0
  %1368 = vmatmul.mubr.bf16.gmra.mxu0 %v1092
  %v1369 = vpop.f32.mrf.mxu0
  %v1370 = vadd.f32 %v1158, %v1369
  %v1371 = vpop.f32.mrf.mxu0
  %v1372 = vpop.f32.mrf.mxu0
  %v1373 = vadd.f32 %v1158, %v1372
  %v1374 = vpop.f32.mrf.mxu0
  %1375 = vmatprep.mubr.bf16.mxu0 0
  %1376 = vmatmul.mubr.bf16.gmra.mxu0 %v1093
  %v1377 = vpop.f32.mrf.mxu0
  %v1378 = vadd.f32 %v1158, %v1377
  %v1379 = vpop.f32.mrf.mxu0
  %v1380 = vpop.f32.mrf.mxu0
  %v1381 = vadd.f32 %v1158, %v1380
  %v1382 = vpop.f32.mrf.mxu0
  %1383 = vmatprep.mubr.bf16.mxu0 0
  %1384 = vmatmul.mubr.bf16.gmra.mxu0 %v1094
  %v1385 = vpop.f32.mrf.mxu0
  %v1386 = vadd.f32 %v1158, %v1385
  %v1387 = vpop.f32.mrf.mxu0
  %v1388 = vpop.f32.mrf.mxu0
  %v1389 = vadd.f32 %v1158, %v1388
  %v1390 = vpop.f32.mrf.mxu0
  %1391 = vmatprep.mubr.bf16.mxu0 0
  %1392 = vmatmul.mubr.bf16.gmra.mxu0 %v1095
  %v1393 = vpop.f32.mrf.mxu0
  %v1394 = vadd.f32 %v1158, %v1393
  %v1395 = vpop.f32.mrf.mxu0
  %v1396 = vpop.f32.mrf.mxu0
  %v1397 = vadd.f32 %v1158, %v1396
  %v1398 = vpop.f32.mrf.mxu0
  %1399 = vmatprep.mubr.bf16.mxu0 0
  %1400 = vmatmul.mubr.bf16.gmra.mxu0 %v1096
  %v1401 = vpop.f32.mrf.mxu0
  %v1402 = vadd.f32 %v1158, %v1401
  %v1403 = vpop.f32.mrf.mxu0
  %v1404 = vpop.f32.mrf.mxu0
  %v1405 = vadd.f32 %v1158, %v1404
  %v1406 = vpop.f32.mrf.mxu0
  %1407 = vmatprep.mubr.bf16.mxu0 0
  %1408 = vmatmul.mubr.bf16.gmra.mxu0 %v1097
  %v1409 = vpop.f32.mrf.mxu0
  %v1410 = vadd.f32 %v1158, %v1409
  %v1411 = vpop.f32.mrf.mxu0
  %v1412 = vpop.f32.mrf.mxu0
  %v1413 = vadd.f32 %v1158, %v1412
  %v1414 = vpop.f32.mrf.mxu0
  %1415 = vmatprep.mubr.bf16.mxu0 0
  %1416 = vmatmul.mubr.bf16.gmra.mxu0 %v1098
  %v1417 = vpop.f32.mrf.mxu0
  %v1418 = vadd.f32 %v1158, %v1417
  %v1419 = vpop.f32.mrf.mxu0
  %v1420 = vpop.f32.mrf.mxu0
  %v1421 = vadd.f32 %v1158, %v1420
  %v1422 = vpop.f32.mrf.mxu0
  %1423 = vmatprep.mubr.bf16.mxu0 0
  %1424 = vmatmul.mubr.bf16.gmra.mxu0 %v1099
  %v1425 = vpop.f32.mrf.mxu0
  %v1426 = vadd.f32 %v1158, %v1425
  %v1427 = vpop.f32.mrf.mxu0
  %v1428 = vpop.f32.mrf.mxu0
  %v1429 = vadd.f32 %v1158, %v1428
  %v1430 = vpop.f32.mrf.mxu0
  %1431 = vmatprep.mubr.bf16.mxu0 0
  %1432 = vmatmul.mubr.bf16.gmra.mxu0 %v1100
  %v1433 = vpop.f32.mrf.mxu0
  %v1434 = vadd.f32 %v1158, %v1433
  %v1435 = vpop.f32.mrf.mxu0
  %v1436 = vpop.f32.mrf.mxu0
  %v1437 = vadd.f32 %v1158, %v1436
  %v1438 = vpop.f32.mrf.mxu0
  %1439 = vmatprep.mubr.bf16.mxu0 0
  %1440 = vmatmul.mubr.bf16.gmra.mxu0 %v1101
  %v1441 = vpop.f32.mrf.mxu0
  %v1442 = vadd.f32 %v1158, %v1441
  %v1443 = vpop.f32.mrf.mxu0
  %v1444 = vpop.f32.mrf.mxu0
  %v1445 = vadd.f32 %v1158, %v1444
  %v1446 = vpop.f32.mrf.mxu0
  %1447 = vmatprep.mubr.bf16.mxu0 0
  %1448 = vmatmul.mubr.bf16.gmra.mxu0 %v1102
  %v1449 = vpop.f32.mrf.mxu0
  %v1450 = vadd.f32 %v1158, %v1449
  %v1451 = vpop.f32.mrf.mxu0
  %v1452 = vpop.f32.mrf.mxu0
  %v1453 = vadd.f32 %v1158, %v1452
  %v1454 = vpop.f32.mrf.mxu0
  %1455 = vmatprep.mubr.bf16.mxu0 0
  %1456 = vmatmul.mubr.bf16.gmra.mxu0 %v1103
  %v1457 = vpop.f32.mrf.mxu0
  %v1458 = vadd.f32 %v1158, %v1457
  %v1459 = vpop.f32.mrf.mxu0
  %v1460 = vpop.f32.mrf.mxu0
  %v1461 = vadd.f32 %v1158, %v1460
  %v1462 = vpop.f32.mrf.mxu0
  %1463 = vmatprep.mubr.bf16.mxu0 0
  %1464 = vmatmul.mubr.bf16.gmra.mxu0 %v1104
  %v1465 = vpop.f32.mrf.mxu0
  %v1466 = vadd.f32 %v1158, %v1465
  %v1467 = vpop.f32.mrf.mxu0
  %v1468 = vpop.f32.mrf.mxu0
  %v1469 = vadd.f32 %v1158, %v1468
  %v1470 = vpop.f32.mrf.mxu0
  %1471 = vmatprep.mubr.bf16.mxu0 0
  %1472 = vmatmul.mubr.bf16.gmra.mxu0 %v1105
  %v1473 = vpop.f32.mrf.mxu0
  %v1474 = vadd.f32 %v1158, %v1473
  %v1475 = vpop.f32.mrf.mxu0
  %v1476 = vpop.f32.mrf.mxu0
  %v1477 = vadd.f32 %v1158, %v1476
  %v1478 = vpop.f32.mrf.mxu0
  %1479 = vmatprep.mubr.bf16.mxu0 0
  %1480 = vmatmul.mubr.bf16.gmra.mxu0 %v1106
  %v1481 = vpop.f32.mrf.mxu0
  %v1482 = vadd.f32 %v1158, %v1481
  %v1483 = vpop.f32.mrf.mxu0
  %v1484 = vpop.f32.mrf.mxu0
  %v1485 = vadd.f32 %v1158, %v1484
  %v1486 = vpop.f32.mrf.mxu0
  %1487 = vmatprep.mubr.bf16.mxu0 0
  %1488 = vmatmul.mubr.bf16.gmra.mxu0 %v1107
  %v1489 = vpop.f32.mrf.mxu0
  %v1490 = vadd.f32 %v1158, %v1489
  %v1491 = vpop.f32.mrf.mxu0
  %v1492 = vpop.f32.mrf.mxu0
  %v1493 = vadd.f32 %v1158, %v1492
  %v1494 = vpop.f32.mrf.mxu0
  %1495 = vmatprep.mubr.bf16.mxu0 0
  %1496 = vmatmul.mubr.bf16.gmra.mxu0 %v1108
  %v1497 = vpop.f32.mrf.mxu0
  %v1498 = vadd.f32 %v1158, %v1497
  %v1499 = vpop.f32.mrf.mxu0
  %v1500 = vpop.f32.mrf.mxu0
  %v1501 = vadd.f32 %v1158, %v1500
  %v1502 = vpop.f32.mrf.mxu0
  %1503 = vmatprep.mubr.bf16.mxu0 0
  %1504 = vmatmul.mubr.bf16.gmra.mxu0 %v1109
  %v1505 = vpop.f32.mrf.mxu0
  %v1506 = vadd.f32 %v1158, %v1505
  %v1507 = vpop.f32.mrf.mxu0
  %v1508 = vpop.f32.mrf.mxu0
  %v1509 = vadd.f32 %v1158, %v1508
  %v1510 = vpop.f32.mrf.mxu0
  %1511 = vmatprep.mubr.bf16.mxu0 0
  %1512 = vmatmul.mubr.bf16.gmra.mxu0 %v1110
  %v1513 = vpop.f32.mrf.mxu0
  %v1514 = vadd.f32 %v1158, %v1513
  %v1515 = vpop.f32.mrf.mxu0
  %v1516 = vpop.f32.mrf.mxu0
  %v1517 = vadd.f32 %v1158, %v1516
  %v1518 = vpop.f32.mrf.mxu0
  %1519 = vmatprep.mubr.bf16.mxu0 0
  %1520 = vmatmul.mubr.bf16.gmra.mxu0 %v1111
  %v1521 = vpop.f32.mrf.mxu0
  %v1522 = vadd.f32 %v1158, %v1521
  %v1523 = vpop.f32.mrf.mxu0
  %v1524 = vpop.f32.mrf.mxu0
  %v1525 = vadd.f32 %v1158, %v1524
  %v1526 = vpop.f32.mrf.mxu0
  %1527 = vmatprep.mubr.bf16.mxu0 0
  %1528 = vmatmul.mubr.bf16.gmra.mxu0 %v1112
  %v1529 = vpop.f32.mrf.mxu0
  %v1530 = vadd.f32 %v1158, %v1529
  %v1531 = vpop.f32.mrf.mxu0
  %v1532 = vpop.f32.mrf.mxu0
  %v1533 = vadd.f32 %v1158, %v1532
  %v1534 = vpop.f32.mrf.mxu0
  %1535 = vmatprep.mubr.bf16.mxu0 0
  %1536 = vmatmul.mubr.bf16.gmra.mxu0 %v1113
  %v1537 = vpop.f32.mrf.mxu0
  %v1538 = vadd.f32 %v1158, %v1537
  %v1539 = vpop.f32.mrf.mxu0
  %v1540 = vpop.f32.mrf.mxu0
  %v1541 = vadd.f32 %v1158, %v1540
  %v1542 = vpop.f32.mrf.mxu0
  %1543 = vmatprep.mubr.bf16.mxu0 0
  %1544 = vmatmul.mubr.bf16.gmra.mxu0 %v1114
  %v1545 = vpop.f32.mrf.mxu0
  %v1546 = vadd.f32 %v1158, %v1545
  %v1547 = vpop.f32.mrf.mxu0
  %v1548 = vpop.f32.mrf.mxu0
  %v1549 = vadd.f32 %v1158, %v1548
  %v1550 = vpop.f32.mrf.mxu0
  %1551 = vmatprep.mubr.bf16.mxu0 0
  %1552 = vmatmul.mubr.bf16.gmra.mxu0 %v1115
  %v1553 = vpop.f32.mrf.mxu0
  %v1554 = vadd.f32 %v1158, %v1553
  %v1555 = vpop.f32.mrf.mxu0
  %v1556 = vpop.f32.mrf.mxu0
  %v1557 = vadd.f32 %v1158, %v1556
  %v1558 = vpop.f32.mrf.mxu0
  %1559 = vmatprep.mubr.bf16.mxu0 0
  %1560 = vmatmul.mubr.bf16.gmra.mxu0 %v1116
  %v1561 = vpop.f32.mrf.mxu0
  %v1562 = vadd.f32 %v1158, %v1561
  %v1563 = vpop.f32.mrf.mxu0
  %v1564 = vpop.f32.mrf.mxu0
  %v1565 = vadd.f32 %v1158, %v1564
  %v1566 = vpop.f32.mrf.mxu0
  %1567 = vmatprep.mubr.bf16.mxu0 0
  %1568 = vmatmul.mubr.bf16.gmra.mxu0 %v1117
  %v1569 = vpop.f32.mrf.mxu0
  %v1570 = vadd.f32 %v1158, %v1569
  %v1571 = vpop.f32.mrf.mxu0
  %v1572 = vpop.f32.mrf.mxu0
  %v1573 = vadd.f32 %v1158, %v1572
  %v1574 = vpop.f32.mrf.mxu0
  %1575 = vmatprep.mubr.bf16.mxu0 0
  %1576 = vmatmul.mubr.bf16.gmra.mxu0 %v1118
  %v1577 = vpop.f32.mrf.mxu0
  %v1578 = vadd.f32 %v1158, %v1577
  %v1579 = vpop.f32.mrf.mxu0
  %v1580 = vpop.f32.mrf.mxu0
  %v1581 = vadd.f32 %v1158, %v1580
  %v1582 = vpop.f32.mrf.mxu0
  %1583 = vmatprep.mubr.bf16.mxu0 0
  %1584 = vmatmul.mubr.bf16.gmra.mxu0 %v1119
  %v1585 = vpop.f32.mrf.mxu0
  %v1586 = vadd.f32 %v1158, %v1585
  %v1587 = vpop.f32.mrf.mxu0
  %v1588 = vpop.f32.mrf.mxu0
  %v1589 = vadd.f32 %v1158, %v1588
  %v1590 = vpop.f32.mrf.mxu0
  %1591 = vmatprep.mubr.bf16.mxu0 0
  %1592 = vmatmul.mubr.bf16.gmra.mxu0 %v1120
  %v1593 = vpop.f32.mrf.mxu0
  %v1594 = vadd.f32 %v1158, %v1593
  %v1595 = vpop.f32.mrf.mxu0
  %v1596 = vpop.f32.mrf.mxu0
  %v1597 = vadd.f32 %v1158, %v1596
  %v1598 = vpop.f32.mrf.mxu0
  %1599 = vmatprep.mubr.bf16.mxu0 0
  %1600 = vmatmul.mubr.bf16.gmra.mxu0 %v1121
  %v1601 = vpop.f32.mrf.mxu0
  %v1602 = vadd.f32 %v1158, %v1601
  %v1603 = vpop.f32.mrf.mxu0
  %v1604 = vpop.f32.mrf.mxu0
  %v1605 = vadd.f32 %v1158, %v1604
  %v1606 = vpop.f32.mrf.mxu0
  %1607 = vmatprep.mubr.bf16.mxu0 0
  %1608 = vmatmul.mubr.bf16.gmra.mxu0 %v1122
  %v1609 = vpop.f32.mrf.mxu0
  %v1610 = vadd.f32 %v1158, %v1609
  %v1611 = vpop.f32.mrf.mxu0
  %v1612 = vpop.f32.mrf.mxu0
  %v1613 = vadd.f32 %v1158, %v1612
  %v1614 = vpop.f32.mrf.mxu0
  %1615 = vmatprep.mubr.bf16.mxu0 0
  %1616 = vmatmul.mubr.bf16.gmra.mxu0 %v1123
  %v1617 = vpop.f32.mrf.mxu0
  %v1618 = vadd.f32 %v1158, %v1617
  %v1619 = vpop.f32.mrf.mxu0
  %v1620 = vpop.f32.mrf.mxu0
  %v1621 = vadd.f32 %v1158, %v1620
  %v1622 = vpop.f32.mrf.mxu0
  %1623 = vmatprep.mubr.bf16.mxu0 0
  %1624 = vmatmul.mubr.bf16.gmra.mxu0 %v1124
  %v1625 = vpop.f32.mrf.mxu0
  %v1626 = vadd.f32 %v1158, %v1625
  %v1627 = vpop.f32.mrf.mxu0
  %v1628 = vpop.f32.mrf.mxu0
  %v1629 = vadd.f32 %v1158, %v1628
  %v1630 = vpop.f32.mrf.mxu0
  %1631 = vmatprep.mubr.bf16.mxu0 0
  %1632 = vmatmul.mubr.bf16.gmra.mxu0 %v1125
  %v1633 = vpop.f32.mrf.mxu0
  %v1634 = vadd.f32 %v1158, %v1633
  %v1635 = vpop.f32.mrf.mxu0
  %v1636 = vpop.f32.mrf.mxu0
  %v1637 = vadd.f32 %v1158, %v1636
  %v1638 = vpop.f32.mrf.mxu0
  %1639 = vmatprep.mubr.bf16.mxu0 0
  %1640 = vmatmul.mubr.bf16.gmra.mxu0 %v1126
  %v1641 = vpop.f32.mrf.mxu0
  %v1642 = vadd.f32 %v1158, %v1641
  %v1643 = vpop.f32.mrf.mxu0
  %v1644 = vpop.f32.mrf.mxu0
  %v1645 = vadd.f32 %v1158, %v1644
  %v1646 = vpop.f32.mrf.mxu0
  %1647 = vmatprep.mubr.bf16.mxu0 0
  %1648 = vmatmul.mubr.bf16.gmra.mxu0 %v1127
  %v1649 = vpop.f32.mrf.mxu0
  %v1650 = vadd.f32 %v1158, %v1649
  %v1651 = vpop.f32.mrf.mxu0
  %v1652 = vpop.f32.mrf.mxu0
  %v1653 = vadd.f32 %v1158, %v1652
  %v1654 = vpop.f32.mrf.mxu0
  %1655 = vmatprep.mubr.bf16.mxu0 0
  %1656 = vmatmul.mubr.bf16.gmra.mxu0 %v1128
  %v1657 = vpop.f32.mrf.mxu0
  %v1658 = vadd.f32 %v1158, %v1657
  %v1659 = vpop.f32.mrf.mxu0
  %v1660 = vpop.f32.mrf.mxu0
  %v1661 = vadd.f32 %v1158, %v1660
  %v1662 = vpop.f32.mrf.mxu0
  %1663 = vmatprep.mubr.bf16.mxu0 0
  %1664 = vmatmul.mubr.bf16.gmra.mxu0 %v1129
  %v1665 = vpop.f32.mrf.mxu0
  %v1666 = vadd.f32 %v1158, %v1665
  %v1667 = vpop.f32.mrf.mxu0
  %v1668 = vpop.f32.mrf.mxu0
  %v1669 = vadd.f32 %v1158, %v1668
  %v1670 = vpop.f32.mrf.mxu0
  %1671 = vmatprep.mubr.bf16.mxu0 0
  %1672 = vmatmul.mubr.bf16.gmra.mxu0 %v1130
  %v1673 = vpop.f32.mrf.mxu0
  %v1674 = vadd.f32 %v1158, %v1673
  %v1675 = vpop.f32.mrf.mxu0
  %v1676 = vpop.f32.mrf.mxu0
  %v1677 = vadd.f32 %v1158, %v1676
  %v1678 = vpop.f32.mrf.mxu0
  %1679 = vmatprep.mubr.bf16.mxu0 0
  %1680 = vmatmul.mubr.bf16.gmra.mxu0 %v1131
  %v1681 = vpop.f32.mrf.mxu0
  %v1682 = vadd.f32 %v1158, %v1681
  %v1683 = vpop.f32.mrf.mxu0
  %v1684 = vpop.f32.mrf.mxu0
  %v1685 = vadd.f32 %v1158, %v1684
  %v1686 = vpop.f32.mrf.mxu0
  %1687 = vmatprep.mubr.bf16.mxu0 0
  %1688 = vmatmul.mubr.bf16.gmra.mxu0 %v1132
  %v1689 = vpop.f32.mrf.mxu0
  %v1690 = vadd.f32 %v1158, %v1689
  %v1691 = vpop.f32.mrf.mxu0
  %v1692 = vpop.f32.mrf.mxu0
  %v1693 = vadd.f32 %v1158, %v1692
  %v1694 = vpop.f32.mrf.mxu0
  %1695 = vmatprep.mubr.bf16.mxu0 0
  %1696 = vmatmul.mubr.bf16.gmra.mxu0 %v1133
  %v1697 = vpop.f32.mrf.mxu0
  %v1698 = vadd.f32 %v1158, %v1697
  %v1699 = vpop.f32.mrf.mxu0
  %v1700 = vpop.f32.mrf.mxu0
  %v1701 = vadd.f32 %v1158, %v1700
  %v1702 = vpop.f32.mrf.mxu0
  %1703 = vmatprep.mubr.bf16.mxu0 0
  %1704 = vmatmul.mubr.bf16.gmra.mxu0 %v1134
  %v1705 = vpop.f32.mrf.mxu0
  %v1706 = vadd.f32 %v1158, %v1705
  %v1707 = vpop.f32.mrf.mxu0
  %v1708 = vpop.f32.mrf.mxu0
  %v1709 = vadd.f32 %v1158, %v1708
  %v1710 = vpop.f32.mrf.mxu0
  %1711 = vmatprep.mubr.bf16.mxu0 0
  %1712 = vmatmul.mubr.bf16.gmra.mxu0 %v1135
  %v1713 = vpop.f32.mrf.mxu0
  %v1714 = vadd.f32 %v1158, %v1713
  %v1715 = vpop.f32.mrf.mxu0
  %v1716 = vpop.f32.mrf.mxu0
  %v1717 = vadd.f32 %v1158, %v1716
  %v1718 = vpop.f32.mrf.mxu0
  %1719 = vmatprep.mubr.bf16.mxu0 0
  %1720 = vmatmul.mubr.bf16.gmra.mxu0 %v1136
  %v1721 = vpop.f32.mrf.mxu0
  %v1722 = vadd.f32 %v1158, %v1721
  %v1723 = vpop.f32.mrf.mxu0
  %v1724 = vpop.f32.mrf.mxu0
  %v1725 = vadd.f32 %v1158, %v1724
  %v1726 = vpop.f32.mrf.mxu0
  %1727 = vmatprep.mubr.bf16.mxu0 0
  %1728 = vmatmul.mubr.bf16.gmra.mxu0 %v1137
  %v1729 = vpop.f32.mrf.mxu0
  %v1730 = vadd.f32 %v1158, %v1729
  %v1731 = vpop.f32.mrf.mxu0
  %v1732 = vpop.f32.mrf.mxu0
  %v1733 = vadd.f32 %v1158, %v1732
  %v1734 = vpop.f32.mrf.mxu0
  %1735 = vmatprep.mubr.bf16.mxu0 0
  %1736 = vmatmul.mubr.bf16.gmra.mxu0 %v1138
  %v1737 = vpop.f32.mrf.mxu0
  %v1738 = vadd.f32 %v1158, %v1737
  %v1739 = vpop.f32.mrf.mxu0
  %v1740 = vpop.f32.mrf.mxu0
  %v1741 = vpop.f32.mrf.mxu0
  %1742 = vdwg.mxu0
  %v1743 = vmax.f32 %v1242, 0.0
  %v1744 = vmax.f32 %v1245, 0.0
  %v1745 = vmax.f32 %v1250, 0.0
  %v1746 = vmax.f32 %v1253, 0.0
  %v1747 = vmax.f32 %v1258, 0.0
  %v1748 = vmax.f32 %v1261, 0.0
  %v1749 = vmax.f32 %v1266, 0.0
  %v1750 = vmax.f32 %v1269, 0.0
  %v1751 = vmax.f32 %v1274, 0.0
  %v1752 = vmax.f32 %v1277, 0.0
  %v1753 = vmax.f32 %v1282, 0.0
  %v1754 = vmax.f32 %v1285, 0.0
  %v1755 = vmax.f32 %v1290, 0.0
  %v1756 = vmax.f32 %v1293, 0.0
  %v1757 = vmax.f32 %v1298, 0.0
  %v1758 = vmax.f32 %v1301, 0.0
  %v1759 = vmax.f32 %v1306, 0.0
  %v1760 = vmax.f32 %v1309, 0.0
  %v1761 = vmax.f32 %v1314, 0.0
  %v1762 = vmax.f32 %v1317, 0.0
  %v1763 = vmax.f32 %v1322, 0.0
  %v1764 = vmax.f32 %v1325, 0.0
  %v1765 = vmax.f32 %v1330, 0.0
  %v1766 = vmax.f32 %v1333, 0.0
  %v1767 = vmax.f32 %v1338, 0.0
  %v1768 = vmax.f32 %v1341, 0.0
  %v1769 = vmax.f32 %v1346, 0.0
  %v1770 = vmax.f32 %v1349, 0.0
  %v1771 = vmax.f32 %v1354, 0.0
  %v1772 = vmax.f32 %v1357, 0.0
  %v1773 = vmax.f32 %v1362, 0.0
  %v1774 = vmax.f32 %v1365, 0.0
  %v1775 = vmax.f32 %v1370, 0.0
  %v1776 = vmax.f32 %v1373, 0.0
  %v1777 = vmax.f32 %v1378, 0.0
  %v1778 = vmax.f32 %v1381, 0.0
  %v1779 = vmax.f32 %v1386, 0.0
  %v1780 = vmax.f32 %v1389, 0.0
  %v1781 = vmax.f32 %v1394, 0.0
  %v1782 = vmax.f32 %v1397, 0.0
  %v1783 = vmax.f32 %v1402, 0.0
  %v1784 = vmax.f32 %v1405, 0.0
  %v1785 = vmax.f32 %v1410, 0.0
  %v1786 = vmax.f32 %v1413, 0.0
  %v1787 = vmax.f32 %v1418, 0.0
  %v1788 = vmax.f32 %v1421, 0.0
  %v1789 = vmax.f32 %v1426, 0.0
  %v1790 = vmax.f32 %v1429, 0.0
  %v1791 = vmax.f32 %v1434, 0.0
  %v1792 = vmax.f32 %v1437, 0.0
  %v1793 = vmax.f32 %v1442, 0.0
  %v1794 = vmax.f32 %v1445, 0.0
  %v1795 = vmax.f32 %v1450, 0.0
  %v1796 = vmax.f32 %v1453, 0.0
  %v1797 = vmax.f32 %v1458, 0.0
  %v1798 = vmax.f32 %v1461, 0.0
  %v1799 = vmax.f32 %v1466, 0.0
  %v1800 = vmax.f32 %v1469, 0.0
  %v1801 = vmax.f32 %v1474, 0.0
  %v1802 = vmax.f32 %v1477, 0.0
  %v1803 = vmax.f32 %v1482, 0.0
  %v1804 = vmax.f32 %v1485, 0.0
  %v1805 = vmax.f32 %v1490, 0.0
  %v1806 = vmax.f32 %v1493, 0.0
  %v1807 = vmax.f32 %v1498, 0.0
  %v1808 = vmax.f32 %v1501, 0.0
  %v1809 = vmax.f32 %v1506, 0.0
  %v1810 = vmax.f32 %v1509, 0.0
  %v1811 = vmax.f32 %v1514, 0.0
  %v1812 = vmax.f32 %v1517, 0.0
  %v1813 = vmax.f32 %v1522, 0.0
  %v1814 = vmax.f32 %v1525, 0.0
  %v1815 = vmax.f32 %v1530, 0.0
  %v1816 = vmax.f32 %v1533, 0.0
  %v1817 = vmax.f32 %v1538, 0.0
  %v1818 = vmax.f32 %v1541, 0.0
  %v1819 = vmax.f32 %v1546, 0.0
  %v1820 = vmax.f32 %v1549, 0.0
  %v1821 = vmax.f32 %v1554, 0.0
  %v1822 = vmax.f32 %v1557, 0.0
  %v1823 = vmax.f32 %v1562, 0.0
  %v1824 = vmax.f32 %v1565, 0.0
  %v1825 = vmax.f32 %v1570, 0.0
  %v1826 = vmax.f32 %v1573, 0.0
  %v1827 = vmax.f32 %v1578, 0.0
  %v1828 = vmax.f32 %v1581, 0.0
  %v1829 = vmax.f32 %v1586, 0.0
  %v1830 = vmax.f32 %v1589, 0.0
  %v1831 = vmax.f32 %v1594, 0.0
  %v1832 = vmax.f32 %v1597, 0.0
  %v1833 = vmax.f32 %v1602, 0.0
  %v1834 = vmax.f32 %v1605, 0.0
  %v1835 = vmax.f32 %v1610, 0.0
  %v1836 = vmax.f32 %v1613, 0.0
  %v1837 = vmax.f32 %v1618, 0.0
  %v1838 = vmax.f32 %v1621, 0.0
  %v1839 = vmax.f32 %v1626, 0.0
  %v1840 = vmax.f32 %v1629, 0.0
  %v1841 = vmax.f32 %v1634, 0.0
  %v1842 = vmax.f32 %v1637, 0.0
  %v1843 = vmax.f32 %v1642, 0.0
  %v1844 = vmax.f32 %v1645, 0.0
  %v1845 = vmax.f32 %v1650, 0.0
  %v1846 = vmax.f32 %v1653, 0.0
  %v1847 = vmax.f32 %v1658, 0.0
  %v1848 = vmax.f32 %v1661, 0.0
  %v1849 = vmax.f32 %v1666, 0.0
  %v1850 = vmax.f32 %v1669, 0.0
  %v1851 = vmax.f32 %v1674, 0.0
  %v1852 = vmax.f32 %v1677, 0.0
  %v1853 = vmax.f32 %v1682, 0.0
  %v1854 = vmax.f32 %v1685, 0.0
  %v1855 = vmax.f32 %v1690, 0.0
  %v1856 = vmax.f32 %v1693, 0.0
  %v1857 = vmax.f32 %v1698, 0.0
  %v1858 = vmax.f32 %v1701, 0.0
  %v1859 = vmax.f32 %v1706, 0.0
  %v1860 = vmax.f32 %v1709, 0.0
  %v1861 = vmax.f32 %v1714, 0.0
  %v1862 = vmax.f32 %v1717, 0.0
  %v1863 = vmax.f32 %v1722, 0.0
  %v1864 = vmax.f32 %v1725, 0.0
  %v1865 = vmax.f32 %v1730, 0.0
  %v1866 = vmax.f32 %v1733, 0.0
  %v1867 = vmax.f32 %v1738, 0.0
  %v1868 = vpack.c.bf16 %v1744, %v1743
  %v1869 = vpack.c.bf16 %v1746, %v1745
  %v1870 = vpack.c.bf16 %v1748, %v1747
  %v1871 = vpack.c.bf16 %v1750, %v1749
  %v1872 = vpack.c.bf16 %v1752, %v1751
  %v1873 = vpack.c.bf16 %v1754, %v1753
  %v1874 = vpack.c.bf16 %v1756, %v1755
  %v1875 = vpack.c.bf16 %v1758, %v1757
  %v1876 = vpack.c.bf16 %v1760, %v1759
  %v1877 = vpack.c.bf16 %v1762, %v1761
  %v1878 = vpack.c.bf16 %v1764, %v1763
  %v1879 = vpack.c.bf16 %v1766, %v1765
  %v1880 = vpack.c.bf16 %v1768, %v1767
  %v1881 = vpack.c.bf16 %v1770, %v1769
  %v1882 = vpack.c.bf16 %v1772, %v1771
  %v1883 = vpack.c.bf16 %v1774, %v1773
  %v1884 = vpack.c.bf16 %v1776, %v1775
  %v1885 = vpack.c.bf16 %v1778, %v1777
  %v1886 = vpack.c.bf16 %v1780, %v1779
  %v1887 = vpack.c.bf16 %v1782, %v1781
  %v1888 = vpack.c.bf16 %v1784, %v1783
  %v1889 = vpack.c.bf16 %v1786, %v1785
  %v1890 = vpack.c.bf16 %v1788, %v1787
  %v1891 = vpack.c.bf16 %v1790, %v1789
  %v1892 = vpack.c.bf16 %v1792, %v1791
  %v1893 = vpack.c.bf16 %v1794, %v1793
  %v1894 = vpack.c.bf16 %v1796, %v1795
  %v1895 = vpack.c.bf16 %v1798, %v1797
  %v1896 = vpack.c.bf16 %v1800, %v1799
  %v1897 = vpack.c.bf16 %v1802, %v1801
  %v1898 = vpack.c.bf16 %v1804, %v1803
  %v1899 = vpack.c.bf16 %v1806, %v1805
  %v1900 = vpack.c.bf16 %v1808, %v1807
  %v1901 = vpack.c.bf16 %v1810, %v1809
  %v1902 = vpack.c.bf16 %v1812, %v1811
  %v1903 = vpack.c.bf16 %v1814, %v1813
  %v1904 = vpack.c.bf16 %v1816, %v1815
  %v1905 = vpack.c.bf16 %v1818, %v1817
  %v1906 = vpack.c.bf16 %v1820, %v1819
  %v1907 = vpack.c.bf16 %v1822, %v1821
  %v1908 = vpack.c.bf16 %v1824, %v1823
  %v1909 = vpack.c.bf16 %v1826, %v1825
  %v1910 = vpack.c.bf16 %v1828, %v1827
  %v1911 = vpack.c.bf16 %v1830, %v1829
  %v1912 = vpack.c.bf16 %v1832, %v1831
  %v1913 = vpack.c.bf16 %v1834, %v1833
  %v1914 = vpack.c.bf16 %v1836, %v1835
  %v1915 = vpack.c.bf16 %v1838, %v1837
  %v1916 = vpack.c.bf16 %v1840, %v1839
  %v1917 = vpack.c.bf16 %v1842, %v1841
  %v1918 = vpack.c.bf16 %v1844, %v1843
  %v1919 = vpack.c.bf16 %v1846, %v1845
  %v1920 = vpack.c.bf16 %v1848, %v1847
  %v1921 = vpack.c.bf16 %v1850, %v1849
  %v1922 = vpack.c.bf16 %v1852, %v1851
  %v1923 = vpack.c.bf16 %v1854, %v1853
  %v1924 = vpack.c.bf16 %v1856, %v1855
  %v1925 = vpack.c.bf16 %v1858, %v1857
  %v1926 = vpack.c.bf16 %v1860, %v1859
  %v1927 = vpack.c.bf16 %v1862, %v1861
  %v1928 = vpack.c.bf16 %v1864, %v1863
  %v1929 = vpack.c.bf16 %v1866, %v1865
  %v1930 = vpack.c.bf16 %v1867, %v1867
  %v1931 = vld [vmem:[%s3] sm:$0xf]
  %v1932 = vld [vmem:[%s3 + $0x4] sm:$0xf]
  %v1933 = vld [vmem:[%s3 + $0x8] sm:$0xf]
  %v1934 = vld [vmem:[%s3 + $0xc] sm:$0xf]
  %v1935 = vld [vmem:[%s3 + $0x10] sm:$0xf]
  %v1936 = vld [vmem:[%s3 + $0x14] sm:$0xf]
  %v1937 = vld [vmem:[%s3 + $0x18] sm:$0xf]
  %v1938 = vld [vmem:[%s3 + $0x1c] sm:$0xf]
  %v1939 = vld [vmem:[%s3 + $0x20] sm:$0xf]
  %v1940 = vld [vmem:[%s3 + $0x24] sm:$0xf]
  %v1941 = vld [vmem:[%s3 + $0x28] sm:$0xf]
  %v1942 = vld [vmem:[%s3 + $0x2c] sm:$0xf]
  %v1943 = vld [vmem:[%s3 + $0x30] sm:$0xf]
  %v1944 = vld [vmem:[%s3 + $0x34] sm:$0xf]
  %v1945 = vld [vmem:[%s3 + $0x38] sm:$0xf]
  %v1946 = vld [vmem:[%s3 + $0x3c] sm:$0xf]
  %v1947 = vlaneseq
  %v1948 = vshrl.u32 %v1947, 7
  %v1949 = vsub.s32 2, %v1948
  %v1950 = vrot.slane %v21, %v1949
  %v1967 = vunpack.c.l.b16 %v1931
  %v1968 = vunpack.c.l.b16 %v1932
  %v1969 = vunpack.c.l.b16 %v1933
  %v1970 = vunpack.c.l.b16 %v1934
  %v1971 = vunpack.c.l.b16 %v1935
  %v1972 = vunpack.c.l.b16 %v1936
  %v1973 = vunpack.c.l.b16 %v1937
  %v1974 = vunpack.c.l.b16 %v1938
  %v1975 = vunpack.c.l.b16 %v1939
  %v1976 = vunpack.c.l.b16 %v1940
  %v1977 = vunpack.c.l.b16 %v1941
  %v1978 = vunpack.c.l.b16 %v1942
  %v1979 = vunpack.c.l.b16 %v1943
  %v1980 = vunpack.c.l.b16 %v1944
  %v1981 = vunpack.c.l.b16 %v1945
  %v1982 = vunpack.c.l.b16 %v1946
  %v1983 = vpack.c.b16 %v1968, %v1967
  %v1984 = vpack.c.b16 %v1970, %v1969
  %v1985 = vpack.c.b16 %v1972, %v1971
  %v1986 = vpack.c.b16 %v1974, %v1973
  %v1987 = vpack.c.b16 %v1976, %v1975
  %v1988 = vpack.c.b16 %v1978, %v1977
  %v1989 = vpack.c.b16 %v1980, %v1979
  %v1990 = vpack.c.b16 %v1982, %v1981
  %1999 = vmatprep.subr.bf16.mxu0 0
  %2000 = vmatpush1.bf16.msra.mxu0 %v1990
  %2001 = vmatprep.subr.bf16.mxu0 0
  %2002 = vmatpush1.bf16.msra.mxu0 %v1989
  %2003 = vmatprep.subr.bf16.mxu0 0
  %2004 = vmatpush1.bf16.msra.mxu0 %v1988
  %2005 = vmatprep.subr.bf16.mxu0 0
  %2006 = vmatpush1.bf16.msra.mxu0 %v1987
  %2007 = vmatprep.subr.bf16.mxu0 0
  %2008 = vmatpush1.bf16.msra.mxu0 %v1986
  %2009 = vmatprep.subr.bf16.mxu0 0
  %2010 = vmatpush1.bf16.msra.mxu0 %v1985
  %2011 = vmatprep.subr.bf16.mxu0 0
  %2012 = vmatpush1.bf16.msra.mxu0 %v1984
  %2013 = vmatprep.subr.bf16.mxu0 0
  %2014 = vmatpush1.bf16.msra.mxu0 %v1983
  %2015 = vmatprep.subr.bf16.mxu0 0
  %2016 = vmatpush2.bf16.msra.mxu0 0
  %2017 = vmatprep.subr.bf16.mxu0 0
  %2018 = vmatpush2.bf16.msra.mxu0 0
  %2019 = vmatprep.subr.bf16.mxu0 0
  %2020 = vmatpush2.bf16.msra.mxu0 0
  %2021 = vmatprep.subr.bf16.mxu0 0
  %2022 = vmatpush2.bf16.msra.mxu0 0
  %2023 = vmatprep.subr.bf16.mxu0 0
  %2024 = vmatpush2.bf16.msra.mxu0 0
  %2025 = vmatprep.subr.bf16.mxu0 0
  %2026 = vmatpush2.bf16.msra.mxu0 0
  %2027 = vmatprep.subr.bf16.mxu0 0
  %2028 = vmatpush2.bf16.msra.mxu0 0
  %2029 = vmatprep.subr.bf16.mxu0 0
  %2030 = vmatpush2.bf16.msra.mxu0 0
  %2031 = vmatprep.mubr.bf16.mxu0 0
  %2032 = vmatmul.mubr.bf16.gmra.mxu0 %v1868
  %v2033 = vpop.f32.mrf.mxu0
  %v2034 = vadd.f32 %v1950, %v2033
  %v2035 = vpop.f32.mrf.mxu0
  %v2036 = vpop.f32.mrf.mxu0
  %v2037 = vadd.f32 %v1950, %v2036
  %v2038 = vpop.f32.mrf.mxu0
  %2039 = vmatprep.mubr.bf16.mxu0 0
  %2040 = vmatmul.mubr.bf16.gmra.mxu0 %v1869
  %v2041 = vpop.f32.mrf.mxu0
  %v2042 = vadd.f32 %v1950, %v2041
  %v2043 = vpop.f32.mrf.mxu0
  %v2044 = vpop.f32.mrf.mxu0
  %v2045 = vadd.f32 %v1950, %v2044
  %v2046 = vpop.f32.mrf.mxu0
  %2047 = vmatprep.mubr.bf16.mxu0 0
  %2048 = vmatmul.mubr.bf16.gmra.mxu0 %v1870
  %v2049 = vpop.f32.mrf.mxu0
  %v2050 = vadd.f32 %v1950, %v2049
  %v2051 = vpop.f32.mrf.mxu0
  %v2052 = vpop.f32.mrf.mxu0
  %v2053 = vadd.f32 %v1950, %v2052
  %v2054 = vpop.f32.mrf.mxu0
  %2055 = vmatprep.mubr.bf16.mxu0 0
  %2056 = vmatmul.mubr.bf16.gmra.mxu0 %v1871
  %v2057 = vpop.f32.mrf.mxu0
  %v2058 = vadd.f32 %v1950, %v2057
  %v2059 = vpop.f32.mrf.mxu0
  %v2060 = vpop.f32.mrf.mxu0
  %v2061 = vadd.f32 %v1950, %v2060
  %v2062 = vpop.f32.mrf.mxu0
  %2063 = vmatprep.mubr.bf16.mxu0 0
  %2064 = vmatmul.mubr.bf16.gmra.mxu0 %v1872
  %v2065 = vpop.f32.mrf.mxu0
  %v2066 = vadd.f32 %v1950, %v2065
  %v2067 = vpop.f32.mrf.mxu0
  %v2068 = vpop.f32.mrf.mxu0
  %v2069 = vadd.f32 %v1950, %v2068
  %v2070 = vpop.f32.mrf.mxu0
  %2071 = vmatprep.mubr.bf16.mxu0 0
  %2072 = vmatmul.mubr.bf16.gmra.mxu0 %v1873
  %v2073 = vpop.f32.mrf.mxu0
  %v2074 = vadd.f32 %v1950, %v2073
  %v2075 = vpop.f32.mrf.mxu0
  %v2076 = vpop.f32.mrf.mxu0
  %v2077 = vadd.f32 %v1950, %v2076
  %v2078 = vpop.f32.mrf.mxu0
  %2079 = vmatprep.mubr.bf16.mxu0 0
  %2080 = vmatmul.mubr.bf16.gmra.mxu0 %v1874
  %v2081 = vpop.f32.mrf.mxu0
  %v2082 = vadd.f32 %v1950, %v2081
  %v2083 = vpop.f32.mrf.mxu0
  %v2084 = vpop.f32.mrf.mxu0
  %v2085 = vadd.f32 %v1950, %v2084
  %v2086 = vpop.f32.mrf.mxu0
  %2087 = vmatprep.mubr.bf16.mxu0 0
  %2088 = vmatmul.mubr.bf16.gmra.mxu0 %v1875
  %v2089 = vpop.f32.mrf.mxu0
  %v2090 = vadd.f32 %v1950, %v2089
  %v2091 = vpop.f32.mrf.mxu0
  %v2092 = vpop.f32.mrf.mxu0
  %v2093 = vadd.f32 %v1950, %v2092
  %v2094 = vpop.f32.mrf.mxu0
  %2095 = vmatprep.mubr.bf16.mxu0 0
  %2096 = vmatmul.mubr.bf16.gmra.mxu0 %v1876
  %v2097 = vpop.f32.mrf.mxu0
  %v2098 = vadd.f32 %v1950, %v2097
  %v2099 = vpop.f32.mrf.mxu0
  %v2100 = vpop.f32.mrf.mxu0
  %v2101 = vadd.f32 %v1950, %v2100
  %v2102 = vpop.f32.mrf.mxu0
  %2103 = vmatprep.mubr.bf16.mxu0 0
  %2104 = vmatmul.mubr.bf16.gmra.mxu0 %v1877
  %v2105 = vpop.f32.mrf.mxu0
  %v2106 = vadd.f32 %v1950, %v2105
  %v2107 = vpop.f32.mrf.mxu0
  %v2108 = vpop.f32.mrf.mxu0
  %v2109 = vadd.f32 %v1950, %v2108
  %v2110 = vpop.f32.mrf.mxu0
  %2111 = vmatprep.mubr.bf16.mxu0 0
  %2112 = vmatmul.mubr.bf16.gmra.mxu0 %v1878
  %v2113 = vpop.f32.mrf.mxu0
  %v2114 = vadd.f32 %v1950, %v2113
  %v2115 = vpop.f32.mrf.mxu0
  %v2116 = vpop.f32.mrf.mxu0
  %v2117 = vadd.f32 %v1950, %v2116
  %v2118 = vpop.f32.mrf.mxu0
  %2119 = vmatprep.mubr.bf16.mxu0 0
  %2120 = vmatmul.mubr.bf16.gmra.mxu0 %v1879
  %v2121 = vpop.f32.mrf.mxu0
  %v2122 = vadd.f32 %v1950, %v2121
  %v2123 = vpop.f32.mrf.mxu0
  %v2124 = vpop.f32.mrf.mxu0
  %v2125 = vadd.f32 %v1950, %v2124
  %v2126 = vpop.f32.mrf.mxu0
  %2127 = vmatprep.mubr.bf16.mxu0 0
  %2128 = vmatmul.mubr.bf16.gmra.mxu0 %v1880
  %v2129 = vpop.f32.mrf.mxu0
  %v2130 = vadd.f32 %v1950, %v2129
  %v2131 = vpop.f32.mrf.mxu0
  %v2132 = vpop.f32.mrf.mxu0
  %v2133 = vadd.f32 %v1950, %v2132
  %v2134 = vpop.f32.mrf.mxu0
  %2135 = vmatprep.mubr.bf16.mxu0 0
  %2136 = vmatmul.mubr.bf16.gmra.mxu0 %v1881
  %v2137 = vpop.f32.mrf.mxu0
  %v2138 = vadd.f32 %v1950, %v2137
  %v2139 = vpop.f32.mrf.mxu0
  %v2140 = vpop.f32.mrf.mxu0
  %v2141 = vadd.f32 %v1950, %v2140
  %v2142 = vpop.f32.mrf.mxu0
  %2143 = vmatprep.mubr.bf16.mxu0 0
  %2144 = vmatmul.mubr.bf16.gmra.mxu0 %v1882
  %v2145 = vpop.f32.mrf.mxu0
  %v2146 = vadd.f32 %v1950, %v2145
  %v2147 = vpop.f32.mrf.mxu0
  %v2148 = vpop.f32.mrf.mxu0
  %v2149 = vadd.f32 %v1950, %v2148
  %v2150 = vpop.f32.mrf.mxu0
  %2151 = vmatprep.mubr.bf16.mxu0 0
  %2152 = vmatmul.mubr.bf16.gmra.mxu0 %v1883
  %v2153 = vpop.f32.mrf.mxu0
  %v2154 = vadd.f32 %v1950, %v2153
  %v2155 = vpop.f32.mrf.mxu0
  %v2156 = vpop.f32.mrf.mxu0
  %v2157 = vadd.f32 %v1950, %v2156
  %v2158 = vpop.f32.mrf.mxu0
  %2159 = vmatprep.mubr.bf16.mxu0 0
  %2160 = vmatmul.mubr.bf16.gmra.mxu0 %v1884
  %v2161 = vpop.f32.mrf.mxu0
  %v2162 = vadd.f32 %v1950, %v2161
  %v2163 = vpop.f32.mrf.mxu0
  %v2164 = vpop.f32.mrf.mxu0
  %v2165 = vadd.f32 %v1950, %v2164
  %v2166 = vpop.f32.mrf.mxu0
  %2167 = vmatprep.mubr.bf16.mxu0 0
  %2168 = vmatmul.mubr.bf16.gmra.mxu0 %v1885
  %v2169 = vpop.f32.mrf.mxu0
  %v2170 = vadd.f32 %v1950, %v2169
  %v2171 = vpop.f32.mrf.mxu0
  %v2172 = vpop.f32.mrf.mxu0
  %v2173 = vadd.f32 %v1950, %v2172
  %v2174 = vpop.f32.mrf.mxu0
  %2175 = vmatprep.mubr.bf16.mxu0 0
  %2176 = vmatmul.mubr.bf16.gmra.mxu0 %v1886
  %v2177 = vpop.f32.mrf.mxu0
  %v2178 = vadd.f32 %v1950, %v2177
  %v2179 = vpop.f32.mrf.mxu0
  %v2180 = vpop.f32.mrf.mxu0
  %v2181 = vadd.f32 %v1950, %v2180
  %v2182 = vpop.f32.mrf.mxu0
  %2183 = vmatprep.mubr.bf16.mxu0 0
  %2184 = vmatmul.mubr.bf16.gmra.mxu0 %v1887
  %v2185 = vpop.f32.mrf.mxu0
  %v2186 = vadd.f32 %v1950, %v2185
  %v2187 = vpop.f32.mrf.mxu0
  %v2188 = vpop.f32.mrf.mxu0
  %v2189 = vadd.f32 %v1950, %v2188
  %v2190 = vpop.f32.mrf.mxu0
  %2191 = vmatprep.mubr.bf16.mxu0 0
  %2192 = vmatmul.mubr.bf16.gmra.mxu0 %v1888
  %v2193 = vpop.f32.mrf.mxu0
  %v2194 = vadd.f32 %v1950, %v2193
  %v2195 = vpop.f32.mrf.mxu0
  %v2196 = vpop.f32.mrf.mxu0
  %v2197 = vadd.f32 %v1950, %v2196
  %v2198 = vpop.f32.mrf.mxu0
  %2199 = vmatprep.mubr.bf16.mxu0 0
  %2200 = vmatmul.mubr.bf16.gmra.mxu0 %v1889
  %v2201 = vpop.f32.mrf.mxu0
  %v2202 = vadd.f32 %v1950, %v2201
  %v2203 = vpop.f32.mrf.mxu0
  %v2204 = vpop.f32.mrf.mxu0
  %v2205 = vadd.f32 %v1950, %v2204
  %v2206 = vpop.f32.mrf.mxu0
  %2207 = vmatprep.mubr.bf16.mxu0 0
  %2208 = vmatmul.mubr.bf16.gmra.mxu0 %v1890
  %v2209 = vpop.f32.mrf.mxu0
  %v2210 = vadd.f32 %v1950, %v2209
  %v2211 = vpop.f32.mrf.mxu0
  %v2212 = vpop.f32.mrf.mxu0
  %v2213 = vadd.f32 %v1950, %v2212
  %v2214 = vpop.f32.mrf.mxu0
  %2215 = vmatprep.mubr.bf16.mxu0 0
  %2216 = vmatmul.mubr.bf16.gmra.mxu0 %v1891
  %v2217 = vpop.f32.mrf.mxu0
  %v2218 = vadd.f32 %v1950, %v2217
  %v2219 = vpop.f32.mrf.mxu0
  %v2220 = vpop.f32.mrf.mxu0
  %v2221 = vadd.f32 %v1950, %v2220
  %v2222 = vpop.f32.mrf.mxu0
  %2223 = vmatprep.mubr.bf16.mxu0 0
  %2224 = vmatmul.mubr.bf16.gmra.mxu0 %v1892
  %v2225 = vpop.f32.mrf.mxu0
  %v2226 = vadd.f32 %v1950, %v2225
  %v2227 = vpop.f32.mrf.mxu0
  %v2228 = vpop.f32.mrf.mxu0
  %v2229 = vadd.f32 %v1950, %v2228
  %v2230 = vpop.f32.mrf.mxu0
  %2231 = vmatprep.mubr.bf16.mxu0 0
  %2232 = vmatmul.mubr.bf16.gmra.mxu0 %v1893
  %v2233 = vpop.f32.mrf.mxu0
  %v2234 = vadd.f32 %v1950, %v2233
  %v2235 = vpop.f32.mrf.mxu0
  %v2236 = vpop.f32.mrf.mxu0
  %v2237 = vadd.f32 %v1950, %v2236
  %v2238 = vpop.f32.mrf.mxu0
  %2239 = vmatprep.mubr.bf16.mxu0 0
  %2240 = vmatmul.mubr.bf16.gmra.mxu0 %v1894
  %v2241 = vpop.f32.mrf.mxu0
  %v2242 = vadd.f32 %v1950, %v2241
  %v2243 = vpop.f32.mrf.mxu0
  %v2244 = vpop.f32.mrf.mxu0
  %v2245 = vadd.f32 %v1950, %v2244
  %v2246 = vpop.f32.mrf.mxu0
  %2247 = vmatprep.mubr.bf16.mxu0 0
  %2248 = vmatmul.mubr.bf16.gmra.mxu0 %v1895
  %v2249 = vpop.f32.mrf.mxu0
  %v2250 = vadd.f32 %v1950, %v2249
  %v2251 = vpop.f32.mrf.mxu0
  %v2252 = vpop.f32.mrf.mxu0
  %v2253 = vadd.f32 %v1950, %v2252
  %v2254 = vpop.f32.mrf.mxu0
  %2255 = vmatprep.mubr.bf16.mxu0 0
  %2256 = vmatmul.mubr.bf16.gmra.mxu0 %v1896
  %v2257 = vpop.f32.mrf.mxu0
  %v2258 = vadd.f32 %v1950, %v2257
  %v2259 = vpop.f32.mrf.mxu0
  %v2260 = vpop.f32.mrf.mxu0
  %v2261 = vadd.f32 %v1950, %v2260
  %v2262 = vpop.f32.mrf.mxu0
  %2263 = vmatprep.mubr.bf16.mxu0 0
  %2264 = vmatmul.mubr.bf16.gmra.mxu0 %v1897
  %v2265 = vpop.f32.mrf.mxu0
  %v2266 = vadd.f32 %v1950, %v2265
  %v2267 = vpop.f32.mrf.mxu0
  %v2268 = vpop.f32.mrf.mxu0
  %v2269 = vadd.f32 %v1950, %v2268
  %v2270 = vpop.f32.mrf.mxu0
  %2271 = vmatprep.mubr.bf16.mxu0 0
  %2272 = vmatmul.mubr.bf16.gmra.mxu0 %v1898
  %v2273 = vpop.f32.mrf.mxu0
  %v2274 = vadd.f32 %v1950, %v2273
  %v2275 = vpop.f32.mrf.mxu0
  %v2276 = vpop.f32.mrf.mxu0
  %v2277 = vadd.f32 %v1950, %v2276
  %v2278 = vpop.f32.mrf.mxu0
  %2279 = vmatprep.mubr.bf16.mxu0 0
  %2280 = vmatmul.mubr.bf16.gmra.mxu0 %v1899
  %v2281 = vpop.f32.mrf.mxu0
  %v2282 = vadd.f32 %v1950, %v2281
  %v2283 = vpop.f32.mrf.mxu0
  %v2284 = vpop.f32.mrf.mxu0
  %v2285 = vadd.f32 %v1950, %v2284
  %v2286 = vpop.f32.mrf.mxu0
  %2287 = vmatprep.mubr.bf16.mxu0 0
  %2288 = vmatmul.mubr.bf16.gmra.mxu0 %v1900
  %v2289 = vpop.f32.mrf.mxu0
  %v2290 = vadd.f32 %v1950, %v2289
  %v2291 = vpop.f32.mrf.mxu0
  %v2292 = vpop.f32.mrf.mxu0
  %v2293 = vadd.f32 %v1950, %v2292
  %v2294 = vpop.f32.mrf.mxu0
  %2295 = vmatprep.mubr.bf16.mxu0 0
  %2296 = vmatmul.mubr.bf16.gmra.mxu0 %v1901
  %v2297 = vpop.f32.mrf.mxu0
  %v2298 = vadd.f32 %v1950, %v2297
  %v2299 = vpop.f32.mrf.mxu0
  %v2300 = vpop.f32.mrf.mxu0
  %v2301 = vadd.f32 %v1950, %v2300
  %v2302 = vpop.f32.mrf.mxu0
  %2303 = vmatprep.mubr.bf16.mxu0 0
  %2304 = vmatmul.mubr.bf16.gmra.mxu0 %v1902
  %v2305 = vpop.f32.mrf.mxu0
  %v2306 = vadd.f32 %v1950, %v2305
  %v2307 = vpop.f32.mrf.mxu0
  %v2308 = vpop.f32.mrf.mxu0
  %v2309 = vadd.f32 %v1950, %v2308
  %v2310 = vpop.f32.mrf.mxu0
  %2311 = vmatprep.mubr.bf16.mxu0 0
  %2312 = vmatmul.mubr.bf16.gmra.mxu0 %v1903
  %v2313 = vpop.f32.mrf.mxu0
  %v2314 = vadd.f32 %v1950, %v2313
  %v2315 = vpop.f32.mrf.mxu0
  %v2316 = vpop.f32.mrf.mxu0
  %v2317 = vadd.f32 %v1950, %v2316
  %v2318 = vpop.f32.mrf.mxu0
  %2319 = vmatprep.mubr.bf16.mxu0 0
  %2320 = vmatmul.mubr.bf16.gmra.mxu0 %v1904
  %v2321 = vpop.f32.mrf.mxu0
  %v2322 = vadd.f32 %v1950, %v2321
  %v2323 = vpop.f32.mrf.mxu0
  %v2324 = vpop.f32.mrf.mxu0
  %v2325 = vadd.f32 %v1950, %v2324
  %v2326 = vpop.f32.mrf.mxu0
  %2327 = vmatprep.mubr.bf16.mxu0 0
  %2328 = vmatmul.mubr.bf16.gmra.mxu0 %v1905
  %v2329 = vpop.f32.mrf.mxu0
  %v2330 = vadd.f32 %v1950, %v2329
  %v2331 = vpop.f32.mrf.mxu0
  %v2332 = vpop.f32.mrf.mxu0
  %v2333 = vadd.f32 %v1950, %v2332
  %v2334 = vpop.f32.mrf.mxu0
  %2335 = vmatprep.mubr.bf16.mxu0 0
  %2336 = vmatmul.mubr.bf16.gmra.mxu0 %v1906
  %v2337 = vpop.f32.mrf.mxu0
  %v2338 = vadd.f32 %v1950, %v2337
  %v2339 = vpop.f32.mrf.mxu0
  %v2340 = vpop.f32.mrf.mxu0
  %v2341 = vadd.f32 %v1950, %v2340
  %v2342 = vpop.f32.mrf.mxu0
  %2343 = vmatprep.mubr.bf16.mxu0 0
  %2344 = vmatmul.mubr.bf16.gmra.mxu0 %v1907
  %v2345 = vpop.f32.mrf.mxu0
  %v2346 = vadd.f32 %v1950, %v2345
  %v2347 = vpop.f32.mrf.mxu0
  %v2348 = vpop.f32.mrf.mxu0
  %v2349 = vadd.f32 %v1950, %v2348
  %v2350 = vpop.f32.mrf.mxu0
  %2351 = vmatprep.mubr.bf16.mxu0 0
  %2352 = vmatmul.mubr.bf16.gmra.mxu0 %v1908
  %v2353 = vpop.f32.mrf.mxu0
  %v2354 = vadd.f32 %v1950, %v2353
  %v2355 = vpop.f32.mrf.mxu0
  %v2356 = vpop.f32.mrf.mxu0
  %v2357 = vadd.f32 %v1950, %v2356
  %v2358 = vpop.f32.mrf.mxu0
  %2359 = vmatprep.mubr.bf16.mxu0 0
  %2360 = vmatmul.mubr.bf16.gmra.mxu0 %v1909
  %v2361 = vpop.f32.mrf.mxu0
  %v2362 = vadd.f32 %v1950, %v2361
  %v2363 = vpop.f32.mrf.mxu0
  %v2364 = vpop.f32.mrf.mxu0
  %v2365 = vadd.f32 %v1950, %v2364
  %v2366 = vpop.f32.mrf.mxu0
  %2367 = vmatprep.mubr.bf16.mxu0 0
  %2368 = vmatmul.mubr.bf16.gmra.mxu0 %v1910
  %v2369 = vpop.f32.mrf.mxu0
  %v2370 = vadd.f32 %v1950, %v2369
  %v2371 = vpop.f32.mrf.mxu0
  %v2372 = vpop.f32.mrf.mxu0
  %v2373 = vadd.f32 %v1950, %v2372
  %v2374 = vpop.f32.mrf.mxu0
  %2375 = vmatprep.mubr.bf16.mxu0 0
  %2376 = vmatmul.mubr.bf16.gmra.mxu0 %v1911
  %v2377 = vpop.f32.mrf.mxu0
  %v2378 = vadd.f32 %v1950, %v2377
  %v2379 = vpop.f32.mrf.mxu0
  %v2380 = vpop.f32.mrf.mxu0
  %v2381 = vadd.f32 %v1950, %v2380
  %v2382 = vpop.f32.mrf.mxu0
  %2383 = vmatprep.mubr.bf16.mxu0 0
  %2384 = vmatmul.mubr.bf16.gmra.mxu0 %v1912
  %v2385 = vpop.f32.mrf.mxu0
  %v2386 = vadd.f32 %v1950, %v2385
  %v2387 = vpop.f32.mrf.mxu0
  %v2388 = vpop.f32.mrf.mxu0
  %v2389 = vadd.f32 %v1950, %v2388
  %v2390 = vpop.f32.mrf.mxu0
  %2391 = vmatprep.mubr.bf16.mxu0 0
  %2392 = vmatmul.mubr.bf16.gmra.mxu0 %v1913
  %v2393 = vpop.f32.mrf.mxu0
  %v2394 = vadd.f32 %v1950, %v2393
  %v2395 = vpop.f32.mrf.mxu0
  %v2396 = vpop.f32.mrf.mxu0
  %v2397 = vadd.f32 %v1950, %v2396
  %v2398 = vpop.f32.mrf.mxu0
  %2399 = vmatprep.mubr.bf16.mxu0 0
  %2400 = vmatmul.mubr.bf16.gmra.mxu0 %v1914
  %v2401 = vpop.f32.mrf.mxu0
  %v2402 = vadd.f32 %v1950, %v2401
  %v2403 = vpop.f32.mrf.mxu0
  %v2404 = vpop.f32.mrf.mxu0
  %v2405 = vadd.f32 %v1950, %v2404
  %v2406 = vpop.f32.mrf.mxu0
  %2407 = vmatprep.mubr.bf16.mxu0 0
  %2408 = vmatmul.mubr.bf16.gmra.mxu0 %v1915
  %v2409 = vpop.f32.mrf.mxu0
  %v2410 = vadd.f32 %v1950, %v2409
  %v2411 = vpop.f32.mrf.mxu0
  %v2412 = vpop.f32.mrf.mxu0
  %v2413 = vadd.f32 %v1950, %v2412
  %v2414 = vpop.f32.mrf.mxu0
  %2415 = vmatprep.mubr.bf16.mxu0 0
  %2416 = vmatmul.mubr.bf16.gmra.mxu0 %v1916
  %v2417 = vpop.f32.mrf.mxu0
  %v2418 = vadd.f32 %v1950, %v2417
  %v2419 = vpop.f32.mrf.mxu0
  %v2420 = vpop.f32.mrf.mxu0
  %v2421 = vadd.f32 %v1950, %v2420
  %v2422 = vpop.f32.mrf.mxu0
  %2423 = vmatprep.mubr.bf16.mxu0 0
  %2424 = vmatmul.mubr.bf16.gmra.mxu0 %v1917
  %v2425 = vpop.f32.mrf.mxu0
  %v2426 = vadd.f32 %v1950, %v2425
  %v2427 = vpop.f32.mrf.mxu0
  %v2428 = vpop.f32.mrf.mxu0
  %v2429 = vadd.f32 %v1950, %v2428
  %v2430 = vpop.f32.mrf.mxu0
  %2431 = vmatprep.mubr.bf16.mxu0 0
  %2432 = vmatmul.mubr.bf16.gmra.mxu0 %v1918
  %v2433 = vpop.f32.mrf.mxu0
  %v2434 = vadd.f32 %v1950, %v2433
  %v2435 = vpop.f32.mrf.mxu0
  %v2436 = vpop.f32.mrf.mxu0
  %v2437 = vadd.f32 %v1950, %v2436
  %v2438 = vpop.f32.mrf.mxu0
  %2439 = vmatprep.mubr.bf16.mxu0 0
  %2440 = vmatmul.mubr.bf16.gmra.mxu0 %v1919
  %v2441 = vpop.f32.mrf.mxu0
  %v2442 = vadd.f32 %v1950, %v2441
  %v2443 = vpop.f32.mrf.mxu0
  %v2444 = vpop.f32.mrf.mxu0
  %v2445 = vadd.f32 %v1950, %v2444
  %v2446 = vpop.f32.mrf.mxu0
  %2447 = vmatprep.mubr.bf16.mxu0 0
  %2448 = vmatmul.mubr.bf16.gmra.mxu0 %v1920
  %v2449 = vpop.f32.mrf.mxu0
  %v2450 = vadd.f32 %v1950, %v2449
  %v2451 = vpop.f32.mrf.mxu0
  %v2452 = vpop.f32.mrf.mxu0
  %v2453 = vadd.f32 %v1950, %v2452
  %v2454 = vpop.f32.mrf.mxu0
  %2455 = vmatprep.mubr.bf16.mxu0 0
  %2456 = vmatmul.mubr.bf16.gmra.mxu0 %v1921
  %v2457 = vpop.f32.mrf.mxu0
  %v2458 = vadd.f32 %v1950, %v2457
  %v2459 = vpop.f32.mrf.mxu0
  %v2460 = vpop.f32.mrf.mxu0
  %v2461 = vadd.f32 %v1950, %v2460
  %v2462 = vpop.f32.mrf.mxu0
  %2463 = vmatprep.mubr.bf16.mxu0 0
  %2464 = vmatmul.mubr.bf16.gmra.mxu0 %v1922
  %v2465 = vpop.f32.mrf.mxu0
  %v2466 = vadd.f32 %v1950, %v2465
  %v2467 = vpop.f32.mrf.mxu0
  %v2468 = vpop.f32.mrf.mxu0
  %v2469 = vadd.f32 %v1950, %v2468
  %v2470 = vpop.f32.mrf.mxu0
  %2471 = vmatprep.mubr.bf16.mxu0 0
  %2472 = vmatmul.mubr.bf16.gmra.mxu0 %v1923
  %v2473 = vpop.f32.mrf.mxu0
  %v2474 = vadd.f32 %v1950, %v2473
  %v2475 = vpop.f32.mrf.mxu0
  %v2476 = vpop.f32.mrf.mxu0
  %v2477 = vadd.f32 %v1950, %v2476
  %v2478 = vpop.f32.mrf.mxu0
  %2479 = vmatprep.mubr.bf16.mxu0 0
  %2480 = vmatmul.mubr.bf16.gmra.mxu0 %v1924
  %v2481 = vpop.f32.mrf.mxu0
  %v2482 = vadd.f32 %v1950, %v2481
  %v2483 = vpop.f32.mrf.mxu0
  %v2484 = vpop.f32.mrf.mxu0
  %v2485 = vadd.f32 %v1950, %v2484
  %v2486 = vpop.f32.mrf.mxu0
  %2487 = vmatprep.mubr.bf16.mxu0 0
  %2488 = vmatmul.mubr.bf16.gmra.mxu0 %v1925
  %v2489 = vpop.f32.mrf.mxu0
  %v2490 = vadd.f32 %v1950, %v2489
  %v2491 = vpop.f32.mrf.mxu0
  %v2492 = vpop.f32.mrf.mxu0
  %v2493 = vadd.f32 %v1950, %v2492
  %v2494 = vpop.f32.mrf.mxu0
  %2495 = vmatprep.mubr.bf16.mxu0 0
  %2496 = vmatmul.mubr.bf16.gmra.mxu0 %v1926
  %v2497 = vpop.f32.mrf.mxu0
  %v2498 = vadd.f32 %v1950, %v2497
  %v2499 = vpop.f32.mrf.mxu0
  %v2500 = vpop.f32.mrf.mxu0
  %v2501 = vadd.f32 %v1950, %v2500
  %v2502 = vpop.f32.mrf.mxu0
  %2503 = vmatprep.mubr.bf16.mxu0 0
  %2504 = vmatmul.mubr.bf16.gmra.mxu0 %v1927
  %v2505 = vpop.f32.mrf.mxu0
  %v2506 = vadd.f32 %v1950, %v2505
  %v2507 = vpop.f32.mrf.mxu0
  %v2508 = vpop.f32.mrf.mxu0
  %v2509 = vadd.f32 %v1950, %v2508
  %v2510 = vpop.f32.mrf.mxu0
  %2511 = vmatprep.mubr.bf16.mxu0 0
  %2512 = vmatmul.mubr.bf16.gmra.mxu0 %v1928
  %v2513 = vpop.f32.mrf.mxu0
  %v2514 = vadd.f32 %v1950, %v2513
  %v2515 = vpop.f32.mrf.mxu0
  %v2516 = vpop.f32.mrf.mxu0
  %v2517 = vadd.f32 %v1950, %v2516
  %v2518 = vpop.f32.mrf.mxu0
  %2519 = vmatprep.mubr.bf16.mxu0 0
  %2520 = vmatmul.mubr.bf16.gmra.mxu0 %v1929
  %v2521 = vpop.f32.mrf.mxu0
  %v2522 = vadd.f32 %v1950, %v2521
  %v2523 = vpop.f32.mrf.mxu0
  %v2524 = vpop.f32.mrf.mxu0
  %v2525 = vadd.f32 %v1950, %v2524
  %v2526 = vpop.f32.mrf.mxu0
  %2527 = vmatprep.mubr.bf16.mxu0 0
  %2528 = vmatmul.mubr.bf16.gmra.mxu0 %v1930
  %v2529 = vpop.f32.mrf.mxu0
  %v2530 = vadd.f32 %v1950, %v2529
  %v2531 = vpop.f32.mrf.mxu0
  %v2532 = vpop.f32.mrf.mxu0
  %v2533 = vpop.f32.mrf.mxu0
  %2534 = vdwg.mxu0
  %vm2535 = vcmask 64512
  %v2536 = vsel %vm2535, %v2034, 0.0
  %2537 = vadd.xlane.f32.xlu0 %v2536
  %v2538 = vpop.xlane.xlu0 %2537
  %v2539 = vsel %vm2535, %v2037, 0.0
  %2540 = vadd.xlane.f32.xlu0 %v2539
  %v2541 = vpop.xlane.xlu0 %2540
  %v2542 = vsel %vm2535, %v2042, 0.0
  %2543 = vadd.xlane.f32.xlu0 %v2542
  %v2544 = vpop.xlane.xlu0 %2543
  %v2545 = vsel %vm2535, %v2045, 0.0
  %2546 = vadd.xlane.f32.xlu0 %v2545
  %v2547 = vpop.xlane.xlu0 %2546
  %v2548 = vsel %vm2535, %v2050, 0.0
  %2549 = vadd.xlane.f32.xlu0 %v2548
  %v2550 = vpop.xlane.xlu0 %2549
  %v2551 = vsel %vm2535, %v2053, 0.0
  %2552 = vadd.xlane.f32.xlu0 %v2551
  %v2553 = vpop.xlane.xlu0 %2552
  %v2554 = vsel %vm2535, %v2058, 0.0
  %2555 = vadd.xlane.f32.xlu0 %v2554
  %v2556 = vpop.xlane.xlu0 %2555
  %v2557 = vsel %vm2535, %v2061, 0.0
  %2558 = vadd.xlane.f32.xlu0 %v2557
  %v2559 = vpop.xlane.xlu0 %2558
  %v2560 = vsel %vm2535, %v2066, 0.0
  %2561 = vadd.xlane.f32.xlu0 %v2560
  %v2562 = vpop.xlane.xlu0 %2561
  %v2563 = vsel %vm2535, %v2069, 0.0
  %2564 = vadd.xlane.f32.xlu0 %v2563
  %v2565 = vpop.xlane.xlu0 %2564
  %v2566 = vsel %vm2535, %v2074, 0.0
  %2567 = vadd.xlane.f32.xlu0 %v2566
  %v2568 = vpop.xlane.xlu0 %2567
  %v2569 = vsel %vm2535, %v2077, 0.0
  %2570 = vadd.xlane.f32.xlu0 %v2569
  %v2571 = vpop.xlane.xlu0 %2570
  %v2572 = vsel %vm2535, %v2082, 0.0
  %2573 = vadd.xlane.f32.xlu0 %v2572
  %v2574 = vpop.xlane.xlu0 %2573
  %v2575 = vsel %vm2535, %v2085, 0.0
  %2576 = vadd.xlane.f32.xlu0 %v2575
  %v2577 = vpop.xlane.xlu0 %2576
  %v2578 = vsel %vm2535, %v2090, 0.0
  %2579 = vadd.xlane.f32.xlu0 %v2578
  %v2580 = vpop.xlane.xlu0 %2579
  %v2581 = vsel %vm2535, %v2093, 0.0
  %2582 = vadd.xlane.f32.xlu0 %v2581
  %v2583 = vpop.xlane.xlu0 %2582
  %v2584 = vsel %vm2535, %v2098, 0.0
  %2585 = vadd.xlane.f32.xlu0 %v2584
  %v2586 = vpop.xlane.xlu0 %2585
  %v2587 = vsel %vm2535, %v2101, 0.0
  %2588 = vadd.xlane.f32.xlu0 %v2587
  %v2589 = vpop.xlane.xlu0 %2588
  %v2590 = vsel %vm2535, %v2106, 0.0
  %2591 = vadd.xlane.f32.xlu0 %v2590
  %v2592 = vpop.xlane.xlu0 %2591
  %v2593 = vsel %vm2535, %v2109, 0.0
  %2594 = vadd.xlane.f32.xlu0 %v2593
  %v2595 = vpop.xlane.xlu0 %2594
  %v2596 = vsel %vm2535, %v2114, 0.0
  %2597 = vadd.xlane.f32.xlu0 %v2596
  %v2598 = vpop.xlane.xlu0 %2597
  %v2599 = vsel %vm2535, %v2117, 0.0
  %2600 = vadd.xlane.f32.xlu0 %v2599
  %v2601 = vpop.xlane.xlu0 %2600
  %v2602 = vsel %vm2535, %v2122, 0.0
  %2603 = vadd.xlane.f32.xlu0 %v2602
  %v2604 = vpop.xlane.xlu0 %2603
  %v2605 = vsel %vm2535, %v2125, 0.0
  %2606 = vadd.xlane.f32.xlu0 %v2605
  %v2607 = vpop.xlane.xlu0 %2606
  %v2608 = vsel %vm2535, %v2130, 0.0
  %2609 = vadd.xlane.f32.xlu0 %v2608
  %v2610 = vpop.xlane.xlu0 %2609
  %v2611 = vsel %vm2535, %v2133, 0.0
  %2612 = vadd.xlane.f32.xlu0 %v2611
  %v2613 = vpop.xlane.xlu0 %2612
  %v2614 = vsel %vm2535, %v2138, 0.0
  %2615 = vadd.xlane.f32.xlu0 %v2614
  %v2616 = vpop.xlane.xlu0 %2615
  %v2617 = vsel %vm2535, %v2141, 0.0
  %2618 = vadd.xlane.f32.xlu0 %v2617
  %v2619 = vpop.xlane.xlu0 %2618
  %v2620 = vsel %vm2535, %v2146, 0.0
  %2621 = vadd.xlane.f32.xlu0 %v2620
  %v2622 = vpop.xlane.xlu0 %2621
  %v2623 = vsel %vm2535, %v2149, 0.0
  %2624 = vadd.xlane.f32.xlu0 %v2623
  %v2625 = vpop.xlane.xlu0 %2624
  %v2626 = vsel %vm2535, %v2154, 0.0
  %2627 = vadd.xlane.f32.xlu0 %v2626
  %v2628 = vpop.xlane.xlu0 %2627
  %v2629 = vsel %vm2535, %v2157, 0.0
  %2630 = vadd.xlane.f32.xlu0 %v2629
  %v2631 = vpop.xlane.xlu0 %2630
  %v2632 = vsel %vm2535, %v2162, 0.0
  %2633 = vadd.xlane.f32.xlu0 %v2632
  %v2634 = vpop.xlane.xlu0 %2633
  %v2635 = vsel %vm2535, %v2165, 0.0
  %2636 = vadd.xlane.f32.xlu0 %v2635
  %v2637 = vpop.xlane.xlu0 %2636
  %v2638 = vsel %vm2535, %v2170, 0.0
  %2639 = vadd.xlane.f32.xlu0 %v2638
  %v2640 = vpop.xlane.xlu0 %2639
  %v2641 = vsel %vm2535, %v2173, 0.0
  %2642 = vadd.xlane.f32.xlu0 %v2641
  %v2643 = vpop.xlane.xlu0 %2642
  %v2644 = vsel %vm2535, %v2178, 0.0
  %2645 = vadd.xlane.f32.xlu0 %v2644
  %v2646 = vpop.xlane.xlu0 %2645
  %v2647 = vsel %vm2535, %v2181, 0.0
  %2648 = vadd.xlane.f32.xlu0 %v2647
  %v2649 = vpop.xlane.xlu0 %2648
  %v2650 = vsel %vm2535, %v2186, 0.0
  %2651 = vadd.xlane.f32.xlu0 %v2650
  %v2652 = vpop.xlane.xlu0 %2651
  %v2653 = vsel %vm2535, %v2189, 0.0
  %2654 = vadd.xlane.f32.xlu0 %v2653
  %v2655 = vpop.xlane.xlu0 %2654
  %v2656 = vsel %vm2535, %v2194, 0.0
  %2657 = vadd.xlane.f32.xlu0 %v2656
  %v2658 = vpop.xlane.xlu0 %2657
  %v2659 = vsel %vm2535, %v2197, 0.0
  %2660 = vadd.xlane.f32.xlu0 %v2659
  %v2661 = vpop.xlane.xlu0 %2660
  %v2662 = vsel %vm2535, %v2202, 0.0
  %2663 = vadd.xlane.f32.xlu0 %v2662
  %v2664 = vpop.xlane.xlu0 %2663
  %v2665 = vsel %vm2535, %v2205, 0.0
  %2666 = vadd.xlane.f32.xlu0 %v2665
  %v2667 = vpop.xlane.xlu0 %2666
  %v2668 = vsel %vm2535, %v2210, 0.0
  %2669 = vadd.xlane.f32.xlu0 %v2668
  %v2670 = vpop.xlane.xlu0 %2669
  %v2671 = vsel %vm2535, %v2213, 0.0
  %2672 = vadd.xlane.f32.xlu0 %v2671
  %v2673 = vpop.xlane.xlu0 %2672
  %v2674 = vsel %vm2535, %v2218, 0.0
  %2675 = vadd.xlane.f32.xlu0 %v2674
  %v2676 = vpop.xlane.xlu0 %2675
  %v2677 = vsel %vm2535, %v2221, 0.0
  %2678 = vadd.xlane.f32.xlu0 %v2677
  %v2679 = vpop.xlane.xlu0 %2678
  %v2680 = vsel %vm2535, %v2226, 0.0
  %2681 = vadd.xlane.f32.xlu0 %v2680
  %v2682 = vpop.xlane.xlu0 %2681
  %v2683 = vsel %vm2535, %v2229, 0.0
  %2684 = vadd.xlane.f32.xlu0 %v2683
  %v2685 = vpop.xlane.xlu0 %2684
  %v2686 = vsel %vm2535, %v2234, 0.0
  %2687 = vadd.xlane.f32.xlu0 %v2686
  %v2688 = vpop.xlane.xlu0 %2687
  %v2689 = vsel %vm2535, %v2237, 0.0
  %2690 = vadd.xlane.f32.xlu0 %v2689
  %v2691 = vpop.xlane.xlu0 %2690
  %v2692 = vsel %vm2535, %v2242, 0.0
  %2693 = vadd.xlane.f32.xlu0 %v2692
  %v2694 = vpop.xlane.xlu0 %2693
  %v2695 = vsel %vm2535, %v2245, 0.0
  %2696 = vadd.xlane.f32.xlu0 %v2695
  %v2697 = vpop.xlane.xlu0 %2696
  %v2698 = vsel %vm2535, %v2250, 0.0
  %2699 = vadd.xlane.f32.xlu0 %v2698
  %v2700 = vpop.xlane.xlu0 %2699
  %v2701 = vsel %vm2535, %v2253, 0.0
  %2702 = vadd.xlane.f32.xlu0 %v2701
  %v2703 = vpop.xlane.xlu0 %2702
  %v2704 = vsel %vm2535, %v2258, 0.0
  %2705 = vadd.xlane.f32.xlu0 %v2704
  %v2706 = vpop.xlane.xlu0 %2705
  %v2707 = vsel %vm2535, %v2261, 0.0
  %2708 = vadd.xlane.f32.xlu0 %v2707
  %v2709 = vpop.xlane.xlu0 %2708
  %v2710 = vsel %vm2535, %v2266, 0.0
  %2711 = vadd.xlane.f32.xlu0 %v2710
  %v2712 = vpop.xlane.xlu0 %2711
  %v2713 = vsel %vm2535, %v2269, 0.0
  %2714 = vadd.xlane.f32.xlu0 %v2713
  %v2715 = vpop.xlane.xlu0 %2714
  %v2716 = vsel %vm2535, %v2274, 0.0
  %2717 = vadd.xlane.f32.xlu0 %v2716
  %v2718 = vpop.xlane.xlu0 %2717
  %v2719 = vsel %vm2535, %v2277, 0.0
  %2720 = vadd.xlane.f32.xlu0 %v2719
  %v2721 = vpop.xlane.xlu0 %2720
  %v2722 = vsel %vm2535, %v2282, 0.0
  %2723 = vadd.xlane.f32.xlu0 %v2722
  %v2724 = vpop.xlane.xlu0 %2723
  %v2725 = vsel %vm2535, %v2285, 0.0
  %2726 = vadd.xlane.f32.xlu0 %v2725
  %v2727 = vpop.xlane.xlu0 %2726
  %v2728 = vsel %vm2535, %v2290, 0.0
  %2729 = vadd.xlane.f32.xlu0 %v2728
  %v2730 = vpop.xlane.xlu0 %2729
  %v2731 = vsel %vm2535, %v2293, 0.0
  %2732 = vadd.xlane.f32.xlu0 %v2731
  %v2733 = vpop.xlane.xlu0 %2732
  %v2734 = vsel %vm2535, %v2298, 0.0
  %2735 = vadd.xlane.f32.xlu0 %v2734
  %v2736 = vpop.xlane.xlu0 %2735
  %v2737 = vsel %vm2535, %v2301, 0.0
  %2738 = vadd.xlane.f32.xlu0 %v2737
  %v2739 = vpop.xlane.xlu0 %2738
  %v2740 = vsel %vm2535, %v2306, 0.0
  %2741 = vadd.xlane.f32.xlu0 %v2740
  %v2742 = vpop.xlane.xlu0 %2741
  %v2743 = vsel %vm2535, %v2309, 0.0
  %2744 = vadd.xlane.f32.xlu0 %v2743
  %v2745 = vpop.xlane.xlu0 %2744
  %v2746 = vsel %vm2535, %v2314, 0.0
  %2747 = vadd.xlane.f32.xlu0 %v2746
  %v2748 = vpop.xlane.xlu0 %2747
  %v2749 = vsel %vm2535, %v2317, 0.0
  %2750 = vadd.xlane.f32.xlu0 %v2749
  %v2751 = vpop.xlane.xlu0 %2750
  %v2752 = vsel %vm2535, %v2322, 0.0
  %2753 = vadd.xlane.f32.xlu0 %v2752
  %v2754 = vpop.xlane.xlu0 %2753
  %v2755 = vsel %vm2535, %v2325, 0.0
  %2756 = vadd.xlane.f32.xlu0 %v2755
  %v2757 = vpop.xlane.xlu0 %2756
  %v2758 = vsel %vm2535, %v2330, 0.0
  %2759 = vadd.xlane.f32.xlu0 %v2758
  %v2760 = vpop.xlane.xlu0 %2759
  %v2761 = vsel %vm2535, %v2333, 0.0
  %2762 = vadd.xlane.f32.xlu0 %v2761
  %v2763 = vpop.xlane.xlu0 %2762
  %v2764 = vsel %vm2535, %v2338, 0.0
  %2765 = vadd.xlane.f32.xlu0 %v2764
  %v2766 = vpop.xlane.xlu0 %2765
  %v2767 = vsel %vm2535, %v2341, 0.0
  %2768 = vadd.xlane.f32.xlu0 %v2767
  %v2769 = vpop.xlane.xlu0 %2768
  %v2770 = vsel %vm2535, %v2346, 0.0
  %2771 = vadd.xlane.f32.xlu0 %v2770
  %v2772 = vpop.xlane.xlu0 %2771
  %v2773 = vsel %vm2535, %v2349, 0.0
  %2774 = vadd.xlane.f32.xlu0 %v2773
  %v2775 = vpop.xlane.xlu0 %2774
  %v2776 = vsel %vm2535, %v2354, 0.0
  %2777 = vadd.xlane.f32.xlu0 %v2776
  %v2778 = vpop.xlane.xlu0 %2777
  %v2779 = vsel %vm2535, %v2357, 0.0
  %2780 = vadd.xlane.f32.xlu0 %v2779
  %v2781 = vpop.xlane.xlu0 %2780
  %v2782 = vsel %vm2535, %v2362, 0.0
  %2783 = vadd.xlane.f32.xlu0 %v2782
  %v2784 = vpop.xlane.xlu0 %2783
  %v2785 = vsel %vm2535, %v2365, 0.0
  %2786 = vadd.xlane.f32.xlu0 %v2785
  %v2787 = vpop.xlane.xlu0 %2786
  %v2788 = vsel %vm2535, %v2370, 0.0
  %2789 = vadd.xlane.f32.xlu0 %v2788
  %v2790 = vpop.xlane.xlu0 %2789
  %v2791 = vsel %vm2535, %v2373, 0.0
  %2792 = vadd.xlane.f32.xlu0 %v2791
  %v2793 = vpop.xlane.xlu0 %2792
  %v2794 = vsel %vm2535, %v2378, 0.0
  %2795 = vadd.xlane.f32.xlu0 %v2794
  %v2796 = vpop.xlane.xlu0 %2795
  %v2797 = vsel %vm2535, %v2381, 0.0
  %2798 = vadd.xlane.f32.xlu0 %v2797
  %v2799 = vpop.xlane.xlu0 %2798
  %v2800 = vsel %vm2535, %v2386, 0.0
  %2801 = vadd.xlane.f32.xlu0 %v2800
  %v2802 = vpop.xlane.xlu0 %2801
  %v2803 = vsel %vm2535, %v2389, 0.0
  %2804 = vadd.xlane.f32.xlu0 %v2803
  %v2805 = vpop.xlane.xlu0 %2804
  %v2806 = vsel %vm2535, %v2394, 0.0
  %2807 = vadd.xlane.f32.xlu0 %v2806
  %v2808 = vpop.xlane.xlu0 %2807
  %v2809 = vsel %vm2535, %v2397, 0.0
  %2810 = vadd.xlane.f32.xlu0 %v2809
  %v2811 = vpop.xlane.xlu0 %2810
  %v2812 = vsel %vm2535, %v2402, 0.0
  %2813 = vadd.xlane.f32.xlu0 %v2812
  %v2814 = vpop.xlane.xlu0 %2813
  %v2815 = vsel %vm2535, %v2405, 0.0
  %2816 = vadd.xlane.f32.xlu0 %v2815
  %v2817 = vpop.xlane.xlu0 %2816
  %v2818 = vsel %vm2535, %v2410, 0.0
  %2819 = vadd.xlane.f32.xlu0 %v2818
  %v2820 = vpop.xlane.xlu0 %2819
  %v2821 = vsel %vm2535, %v2413, 0.0
  %2822 = vadd.xlane.f32.xlu0 %v2821
  %v2823 = vpop.xlane.xlu0 %2822
  %v2824 = vsel %vm2535, %v2418, 0.0
  %2825 = vadd.xlane.f32.xlu0 %v2824
  %v2826 = vpop.xlane.xlu0 %2825
  %v2827 = vsel %vm2535, %v2421, 0.0
  %2828 = vadd.xlane.f32.xlu0 %v2827
  %v2829 = vpop.xlane.xlu0 %2828
  %v2830 = vsel %vm2535, %v2426, 0.0
  %2831 = vadd.xlane.f32.xlu0 %v2830
  %v2832 = vpop.xlane.xlu0 %2831
  %v2833 = vsel %vm2535, %v2429, 0.0
  %2834 = vadd.xlane.f32.xlu0 %v2833
  %v2835 = vpop.xlane.xlu0 %2834
  %v2836 = vsel %vm2535, %v2434, 0.0
  %2837 = vadd.xlane.f32.xlu0 %v2836
  %v2838 = vpop.xlane.xlu0 %2837
  %v2839 = vsel %vm2535, %v2437, 0.0
  %2840 = vadd.xlane.f32.xlu0 %v2839
  %v2841 = vpop.xlane.xlu0 %2840
  %v2842 = vsel %vm2535, %v2442, 0.0
  %2843 = vadd.xlane.f32.xlu0 %v2842
  %v2844 = vpop.xlane.xlu0 %2843
  %v2845 = vsel %vm2535, %v2445, 0.0
  %2846 = vadd.xlane.f32.xlu0 %v2845
  %v2847 = vpop.xlane.xlu0 %2846
  %v2848 = vsel %vm2535, %v2450, 0.0
  %2849 = vadd.xlane.f32.xlu0 %v2848
  %v2850 = vpop.xlane.xlu0 %2849
  %v2851 = vsel %vm2535, %v2453, 0.0
  %2852 = vadd.xlane.f32.xlu0 %v2851
  %v2853 = vpop.xlane.xlu0 %2852
  %v2854 = vsel %vm2535, %v2458, 0.0
  %2855 = vadd.xlane.f32.xlu0 %v2854
  %v2856 = vpop.xlane.xlu0 %2855
  %v2857 = vsel %vm2535, %v2461, 0.0
  %2858 = vadd.xlane.f32.xlu0 %v2857
  %v2859 = vpop.xlane.xlu0 %2858
  %v2860 = vsel %vm2535, %v2466, 0.0
  %2861 = vadd.xlane.f32.xlu0 %v2860
  %v2862 = vpop.xlane.xlu0 %2861
  %v2863 = vsel %vm2535, %v2469, 0.0
  %2864 = vadd.xlane.f32.xlu0 %v2863
  %v2865 = vpop.xlane.xlu0 %2864
  %v2866 = vsel %vm2535, %v2474, 0.0
  %2867 = vadd.xlane.f32.xlu0 %v2866
  %v2868 = vpop.xlane.xlu0 %2867
  %v2869 = vsel %vm2535, %v2477, 0.0
  %2870 = vadd.xlane.f32.xlu0 %v2869
  %v2871 = vpop.xlane.xlu0 %2870
  %v2872 = vsel %vm2535, %v2482, 0.0
  %2873 = vadd.xlane.f32.xlu0 %v2872
  %v2874 = vpop.xlane.xlu0 %2873
  %v2875 = vsel %vm2535, %v2485, 0.0
  %2876 = vadd.xlane.f32.xlu0 %v2875
  %v2877 = vpop.xlane.xlu0 %2876
  %v2878 = vsel %vm2535, %v2490, 0.0
  %2879 = vadd.xlane.f32.xlu0 %v2878
  %v2880 = vpop.xlane.xlu0 %2879
  %v2881 = vsel %vm2535, %v2493, 0.0
  %2882 = vadd.xlane.f32.xlu0 %v2881
  %v2883 = vpop.xlane.xlu0 %2882
  %v2884 = vsel %vm2535, %v2498, 0.0
  %2885 = vadd.xlane.f32.xlu0 %v2884
  %v2886 = vpop.xlane.xlu0 %2885
  %v2887 = vsel %vm2535, %v2501, 0.0
  %2888 = vadd.xlane.f32.xlu0 %v2887
  %v2889 = vpop.xlane.xlu0 %2888
  %v2890 = vsel %vm2535, %v2506, 0.0
  %2891 = vadd.xlane.f32.xlu0 %v2890
  %v2892 = vpop.xlane.xlu0 %2891
  %v2893 = vsel %vm2535, %v2509, 0.0
  %2894 = vadd.xlane.f32.xlu0 %v2893
  %v2895 = vpop.xlane.xlu0 %2894
  %v2896 = vsel %vm2535, %v2514, 0.0
  %2897 = vadd.xlane.f32.xlu0 %v2896
  %v2898 = vpop.xlane.xlu0 %2897
  %v2899 = vsel %vm2535, %v2517, 0.0
  %2900 = vadd.xlane.f32.xlu0 %v2899
  %v2901 = vpop.xlane.xlu0 %2900
  %v2902 = vsel %vm2535, %v2522, 0.0
  %2903 = vadd.xlane.f32.xlu0 %v2902
  %v2904 = vpop.xlane.xlu0 %2903
  %v2905 = vsel %vm2535, %v2525, 0.0
  %2906 = vadd.xlane.f32.xlu0 %v2905
  %v2907 = vpop.xlane.xlu0 %2906
  %v2908 = vsel %vm2535, %v2530, 0.0
  %2909 = vadd.xlane.f32.xlu0 %v2908
  %v2910 = vpop.xlane.xlu0 %2909
  %v2911 = vmul.f32 %v2538, 0.125
  %v2912 = vmul.f32 %v2541, 0.125
  %v2913 = vmul.f32 %v2544, 0.125
  %v2914 = vmul.f32 %v2547, 0.125
  %v2915 = vmul.f32 %v2550, 0.125
  %v2916 = vmul.f32 %v2553, 0.125
  %v2917 = vmul.f32 %v2556, 0.125
  %v2918 = vmul.f32 %v2559, 0.125
  %v2919 = vmul.f32 %v2562, 0.125
  %v2920 = vmul.f32 %v2565, 0.125
  %v2921 = vmul.f32 %v2568, 0.125
  %v2922 = vmul.f32 %v2571, 0.125
  %v2923 = vmul.f32 %v2574, 0.125
  %v2924 = vmul.f32 %v2577, 0.125
  %v2925 = vmul.f32 %v2580, 0.125
  %v2926 = vmul.f32 %v2583, 0.125
  %v2927 = vmul.f32 %v2586, 0.125
  %v2928 = vmul.f32 %v2589, 0.125
  %v2929 = vmul.f32 %v2592, 0.125
  %v2930 = vmul.f32 %v2595, 0.125
  %v2931 = vmul.f32 %v2598, 0.125
  %v2932 = vmul.f32 %v2601, 0.125
  %v2933 = vmul.f32 %v2604, 0.125
  %v2934 = vmul.f32 %v2607, 0.125
  %v2935 = vmul.f32 %v2610, 0.125
  %v2936 = vmul.f32 %v2613, 0.125
  %v2937 = vmul.f32 %v2616, 0.125
  %v2938 = vmul.f32 %v2619, 0.125
  %v2939 = vmul.f32 %v2622, 0.125
  %v2940 = vmul.f32 %v2625, 0.125
  %v2941 = vmul.f32 %v2628, 0.125
  %v2942 = vmul.f32 %v2631, 0.125
  %v2943 = vmul.f32 %v2634, 0.125
  %v2944 = vmul.f32 %v2637, 0.125
  %v2945 = vmul.f32 %v2640, 0.125
  %v2946 = vmul.f32 %v2643, 0.125
  %v2947 = vmul.f32 %v2646, 0.125
  %v2948 = vmul.f32 %v2649, 0.125
  %v2949 = vmul.f32 %v2652, 0.125
  %v2950 = vmul.f32 %v2655, 0.125
  %v2951 = vmul.f32 %v2658, 0.125
  %v2952 = vmul.f32 %v2661, 0.125
  %v2953 = vmul.f32 %v2664, 0.125
  %v2954 = vmul.f32 %v2667, 0.125
  %v2955 = vmul.f32 %v2670, 0.125
  %v2956 = vmul.f32 %v2673, 0.125
  %v2957 = vmul.f32 %v2676, 0.125
  %v2958 = vmul.f32 %v2679, 0.125
  %v2959 = vmul.f32 %v2682, 0.125
  %v2960 = vmul.f32 %v2685, 0.125
  %v2961 = vmul.f32 %v2688, 0.125
  %v2962 = vmul.f32 %v2691, 0.125
  %v2963 = vmul.f32 %v2694, 0.125
  %v2964 = vmul.f32 %v2697, 0.125
  %v2965 = vmul.f32 %v2700, 0.125
  %v2966 = vmul.f32 %v2703, 0.125
  %v2967 = vmul.f32 %v2706, 0.125
  %v2968 = vmul.f32 %v2709, 0.125
  %v2969 = vmul.f32 %v2712, 0.125
  %v2970 = vmul.f32 %v2715, 0.125
  %v2971 = vmul.f32 %v2718, 0.125
  %v2972 = vmul.f32 %v2721, 0.125
  %v2973 = vmul.f32 %v2724, 0.125
  %v2974 = vmul.f32 %v2727, 0.125
  %v2975 = vmul.f32 %v2730, 0.125
  %v2976 = vmul.f32 %v2733, 0.125
  %v2977 = vmul.f32 %v2736, 0.125
  %v2978 = vmul.f32 %v2739, 0.125
  %v2979 = vmul.f32 %v2742, 0.125
  %v2980 = vmul.f32 %v2745, 0.125
  %v2981 = vmul.f32 %v2748, 0.125
  %v2982 = vmul.f32 %v2751, 0.125
  %v2983 = vmul.f32 %v2754, 0.125
  %v2984 = vmul.f32 %v2757, 0.125
  %v2985 = vmul.f32 %v2760, 0.125
  %v2986 = vmul.f32 %v2763, 0.125
  %v2987 = vmul.f32 %v2766, 0.125
  %v2988 = vmul.f32 %v2769, 0.125
  %v2989 = vmul.f32 %v2772, 0.125
  %v2990 = vmul.f32 %v2775, 0.125
  %v2991 = vmul.f32 %v2778, 0.125
  %v2992 = vmul.f32 %v2781, 0.125
  %v2993 = vmul.f32 %v2784, 0.125
  %v2994 = vmul.f32 %v2787, 0.125
  %v2995 = vmul.f32 %v2790, 0.125
  %v2996 = vmul.f32 %v2793, 0.125
  %v2997 = vmul.f32 %v2796, 0.125
  %v2998 = vmul.f32 %v2799, 0.125
  %v2999 = vmul.f32 %v2802, 0.125
  %v3000 = vmul.f32 %v2805, 0.125
  %v3001 = vmul.f32 %v2808, 0.125
  %v3002 = vmul.f32 %v2811, 0.125
  %v3003 = vmul.f32 %v2814, 0.125
  %v3004 = vmul.f32 %v2817, 0.125
  %v3005 = vmul.f32 %v2820, 0.125
  %v3006 = vmul.f32 %v2823, 0.125
  %v3007 = vmul.f32 %v2826, 0.125
  %v3008 = vmul.f32 %v2829, 0.125
  %v3009 = vmul.f32 %v2832, 0.125
  %v3010 = vmul.f32 %v2835, 0.125
  %v3011 = vmul.f32 %v2838, 0.125
  %v3012 = vmul.f32 %v2841, 0.125
  %v3013 = vmul.f32 %v2844, 0.125
  %v3014 = vmul.f32 %v2847, 0.125
  %v3015 = vmul.f32 %v2850, 0.125
  %v3016 = vmul.f32 %v2853, 0.125
  %v3017 = vmul.f32 %v2856, 0.125
  %v3018 = vmul.f32 %v2859, 0.125
  %v3019 = vmul.f32 %v2862, 0.125
  %v3020 = vmul.f32 %v2865, 0.125
  %v3021 = vmul.f32 %v2868, 0.125
  %v3022 = vmul.f32 %v2871, 0.125
  %v3023 = vmul.f32 %v2874, 0.125
  %v3024 = vmul.f32 %v2877, 0.125
  %v3025 = vmul.f32 %v2880, 0.125
  %v3026 = vmul.f32 %v2883, 0.125
  %v3027 = vmul.f32 %v2886, 0.125
  %v3028 = vmul.f32 %v2889, 0.125
  %v3029 = vmul.f32 %v2892, 0.125
  %v3030 = vmul.f32 %v2895, 0.125
  %v3031 = vmul.f32 %v2898, 0.125
  %v3032 = vmul.f32 %v2901, 0.125
  %v3033 = vmul.f32 %v2904, 0.125
  %v3034 = vmul.f32 %v2907, 0.125
  %v3035 = vmul.f32 %v2910, 0.125
  %v3036 = vmul.f32 %v2034, %v2034
  %v3037 = vmul.f32 %v2037, %v2037
  %v3038 = vmul.f32 %v2042, %v2042
  %v3039 = vmul.f32 %v2045, %v2045
  %v3040 = vmul.f32 %v2050, %v2050
  %v3041 = vmul.f32 %v2053, %v2053
  %v3042 = vmul.f32 %v2058, %v2058
  %v3043 = vmul.f32 %v2061, %v2061
  %v3044 = vmul.f32 %v2066, %v2066
  %v3045 = vmul.f32 %v2069, %v2069
  %v3046 = vmul.f32 %v2074, %v2074
  %v3047 = vmul.f32 %v2077, %v2077
  %v3048 = vmul.f32 %v2082, %v2082
  %v3049 = vmul.f32 %v2085, %v2085
  %v3050 = vmul.f32 %v2090, %v2090
  %v3051 = vmul.f32 %v2093, %v2093
  %v3052 = vmul.f32 %v2098, %v2098
  %v3053 = vmul.f32 %v2101, %v2101
  %v3054 = vmul.f32 %v2106, %v2106
  %v3055 = vmul.f32 %v2109, %v2109
  %v3056 = vmul.f32 %v2114, %v2114
  %v3057 = vmul.f32 %v2117, %v2117
  %v3058 = vmul.f32 %v2122, %v2122
  %v3059 = vmul.f32 %v2125, %v2125
  %v3060 = vmul.f32 %v2130, %v2130
  %v3061 = vmul.f32 %v2133, %v2133
  %v3062 = vmul.f32 %v2138, %v2138
  %v3063 = vmul.f32 %v2141, %v2141
  %v3064 = vmul.f32 %v2146, %v2146
  %v3065 = vmul.f32 %v2149, %v2149
  %v3066 = vmul.f32 %v2154, %v2154
  %v3067 = vmul.f32 %v2157, %v2157
  %v3068 = vmul.f32 %v2162, %v2162
  %v3069 = vmul.f32 %v2165, %v2165
  %v3070 = vmul.f32 %v2170, %v2170
  %v3071 = vmul.f32 %v2173, %v2173
  %v3072 = vmul.f32 %v2178, %v2178
  %v3073 = vmul.f32 %v2181, %v2181
  %v3074 = vmul.f32 %v2186, %v2186
  %v3075 = vmul.f32 %v2189, %v2189
  %v3076 = vmul.f32 %v2194, %v2194
  %v3077 = vmul.f32 %v2197, %v2197
  %v3078 = vmul.f32 %v2202, %v2202
  %v3079 = vmul.f32 %v2205, %v2205
  %v3080 = vmul.f32 %v2210, %v2210
  %v3081 = vmul.f32 %v2213, %v2213
  %v3082 = vmul.f32 %v2218, %v2218
  %v3083 = vmul.f32 %v2221, %v2221
  %v3084 = vmul.f32 %v2226, %v2226
  %v3085 = vmul.f32 %v2229, %v2229
  %v3086 = vmul.f32 %v2234, %v2234
  %v3087 = vmul.f32 %v2237, %v2237
  %v3088 = vmul.f32 %v2242, %v2242
  %v3089 = vmul.f32 %v2245, %v2245
  %v3090 = vmul.f32 %v2250, %v2250
  %v3091 = vmul.f32 %v2253, %v2253
  %v3092 = vmul.f32 %v2258, %v2258
  %v3093 = vmul.f32 %v2261, %v2261
  %v3094 = vmul.f32 %v2266, %v2266
  %v3095 = vmul.f32 %v2269, %v2269
  %v3096 = vmul.f32 %v2274, %v2274
  %v3097 = vmul.f32 %v2277, %v2277
  %v3098 = vmul.f32 %v2282, %v2282
  %v3099 = vmul.f32 %v2285, %v2285
  %v3100 = vmul.f32 %v2290, %v2290
  %v3101 = vmul.f32 %v2293, %v2293
  %v3102 = vmul.f32 %v2298, %v2298
  %v3103 = vmul.f32 %v2301, %v2301
  %v3104 = vmul.f32 %v2306, %v2306
  %v3105 = vmul.f32 %v2309, %v2309
  %v3106 = vmul.f32 %v2314, %v2314
  %v3107 = vmul.f32 %v2317, %v2317
  %v3108 = vmul.f32 %v2322, %v2322
  %v3109 = vmul.f32 %v2325, %v2325
  %v3110 = vmul.f32 %v2330, %v2330
  %v3111 = vmul.f32 %v2333, %v2333
  %v3112 = vmul.f32 %v2338, %v2338
  %v3113 = vmul.f32 %v2341, %v2341
  %v3114 = vmul.f32 %v2346, %v2346
  %v3115 = vmul.f32 %v2349, %v2349
  %v3116 = vmul.f32 %v2354, %v2354
  %v3117 = vmul.f32 %v2357, %v2357
  %v3118 = vmul.f32 %v2362, %v2362
  %v3119 = vmul.f32 %v2365, %v2365
  %v3120 = vmul.f32 %v2370, %v2370
  %v3121 = vmul.f32 %v2373, %v2373
  %v3122 = vmul.f32 %v2378, %v2378
  %v3123 = vmul.f32 %v2381, %v2381
  %v3124 = vmul.f32 %v2386, %v2386
  %v3125 = vmul.f32 %v2389, %v2389
  %v3126 = vmul.f32 %v2394, %v2394
  %v3127 = vmul.f32 %v2397, %v2397
  %v3128 = vmul.f32 %v2402, %v2402
  %v3129 = vmul.f32 %v2405, %v2405
  %v3130 = vmul.f32 %v2410, %v2410
  %v3131 = vmul.f32 %v2413, %v2413
  %v3132 = vmul.f32 %v2418, %v2418
  %v3133 = vmul.f32 %v2421, %v2421
  %v3134 = vmul.f32 %v2426, %v2426
  %v3135 = vmul.f32 %v2429, %v2429
  %v3136 = vmul.f32 %v2434, %v2434
  %v3137 = vmul.f32 %v2437, %v2437
  %v3138 = vmul.f32 %v2442, %v2442
  %v3139 = vmul.f32 %v2445, %v2445
  %v3140 = vmul.f32 %v2450, %v2450
  %v3141 = vmul.f32 %v2453, %v2453
  %v3142 = vmul.f32 %v2458, %v2458
  %v3143 = vmul.f32 %v2461, %v2461
  %v3144 = vmul.f32 %v2466, %v2466
  %v3145 = vmul.f32 %v2469, %v2469
  %v3146 = vmul.f32 %v2474, %v2474
  %v3147 = vmul.f32 %v2477, %v2477
  %v3148 = vmul.f32 %v2482, %v2482
  %v3149 = vmul.f32 %v2485, %v2485
  %v3150 = vmul.f32 %v2490, %v2490
  %v3151 = vmul.f32 %v2493, %v2493
  %v3152 = vmul.f32 %v2498, %v2498
  %v3153 = vmul.f32 %v2501, %v2501
  %v3154 = vmul.f32 %v2506, %v2506
  %v3155 = vmul.f32 %v2509, %v2509
  %v3156 = vmul.f32 %v2514, %v2514
  %v3157 = vmul.f32 %v2517, %v2517
  %v3158 = vmul.f32 %v2522, %v2522
  %v3159 = vmul.f32 %v2525, %v2525
  %v3160 = vmul.f32 %v2530, %v2530
  %v3161 = vsel %vm2535, %v3036, 0.0
  %3162 = vadd.xlane.f32.xlu0 %v3161
  %v3163 = vpop.xlane.xlu0 %3162
  %v3164 = vsel %vm2535, %v3037, 0.0
  %3165 = vadd.xlane.f32.xlu0 %v3164
  %v3166 = vpop.xlane.xlu0 %3165
  %v3167 = vsel %vm2535, %v3038, 0.0
  %3168 = vadd.xlane.f32.xlu0 %v3167
  %v3169 = vpop.xlane.xlu0 %3168
  %v3170 = vsel %vm2535, %v3039, 0.0
  %3171 = vadd.xlane.f32.xlu0 %v3170
  %v3172 = vpop.xlane.xlu0 %3171
  %v3173 = vsel %vm2535, %v3040, 0.0
  %3174 = vadd.xlane.f32.xlu0 %v3173
  %v3175 = vpop.xlane.xlu0 %3174
  %v3176 = vsel %vm2535, %v3041, 0.0
  %3177 = vadd.xlane.f32.xlu0 %v3176
  %v3178 = vpop.xlane.xlu0 %3177
  %v3179 = vsel %vm2535, %v3042, 0.0
  %3180 = vadd.xlane.f32.xlu0 %v3179
  %v3181 = vpop.xlane.xlu0 %3180
  %v3182 = vsel %vm2535, %v3043, 0.0
  %3183 = vadd.xlane.f32.xlu0 %v3182
  %v3184 = vpop.xlane.xlu0 %3183
  %v3185 = vsel %vm2535, %v3044, 0.0
  %3186 = vadd.xlane.f32.xlu0 %v3185
  %v3187 = vpop.xlane.xlu0 %3186
  %v3188 = vsel %vm2535, %v3045, 0.0
  %3189 = vadd.xlane.f32.xlu0 %v3188
  %v3190 = vpop.xlane.xlu0 %3189
  %v3191 = vsel %vm2535, %v3046, 0.0
  %3192 = vadd.xlane.f32.xlu0 %v3191
  %v3193 = vpop.xlane.xlu0 %3192
  %v3194 = vsel %vm2535, %v3047, 0.0
  %3195 = vadd.xlane.f32.xlu0 %v3194
  %v3196 = vpop.xlane.xlu0 %3195
  %v3197 = vsel %vm2535, %v3048, 0.0
  %3198 = vadd.xlane.f32.xlu0 %v3197
  %v3199 = vpop.xlane.xlu0 %3198
  %v3200 = vsel %vm2535, %v3049, 0.0
  %3201 = vadd.xlane.f32.xlu0 %v3200
  %v3202 = vpop.xlane.xlu0 %3201
  %v3203 = vsel %vm2535, %v3050, 0.0
  %3204 = vadd.xlane.f32.xlu0 %v3203
  %v3205 = vpop.xlane.xlu0 %3204
  %v3206 = vsel %vm2535, %v3051, 0.0
  %3207 = vadd.xlane.f32.xlu0 %v3206
  %v3208 = vpop.xlane.xlu0 %3207
  %v3209 = vsel %vm2535, %v3052, 0.0
  %3210 = vadd.xlane.f32.xlu0 %v3209
  %v3211 = vpop.xlane.xlu0 %3210
  %v3212 = vsel %vm2535, %v3053, 0.0
  %3213 = vadd.xlane.f32.xlu0 %v3212
  %v3214 = vpop.xlane.xlu0 %3213
  %v3215 = vsel %vm2535, %v3054, 0.0
  %3216 = vadd.xlane.f32.xlu0 %v3215
  %v3217 = vpop.xlane.xlu0 %3216
  %v3218 = vsel %vm2535, %v3055, 0.0
  %3219 = vadd.xlane.f32.xlu0 %v3218
  %v3220 = vpop.xlane.xlu0 %3219
  %v3221 = vsel %vm2535, %v3056, 0.0
  %3222 = vadd.xlane.f32.xlu0 %v3221
  %v3223 = vpop.xlane.xlu0 %3222
  %v3224 = vsel %vm2535, %v3057, 0.0
  %3225 = vadd.xlane.f32.xlu0 %v3224
  %v3226 = vpop.xlane.xlu0 %3225
  %v3227 = vsel %vm2535, %v3058, 0.0
  %3228 = vadd.xlane.f32.xlu0 %v3227
  %v3229 = vpop.xlane.xlu0 %3228
  %v3230 = vsel %vm2535, %v3059, 0.0
  %3231 = vadd.xlane.f32.xlu0 %v3230
  %v3232 = vpop.xlane.xlu0 %3231
  %v3233 = vsel %vm2535, %v3060, 0.0
  %3234 = vadd.xlane.f32.xlu0 %v3233
  %v3235 = vpop.xlane.xlu0 %3234
  %v3236 = vsel %vm2535, %v3061, 0.0
  %3237 = vadd.xlane.f32.xlu0 %v3236
  %v3238 = vpop.xlane.xlu0 %3237
  %v3239 = vsel %vm2535, %v3062, 0.0
  %3240 = vadd.xlane.f32.xlu0 %v3239
  %v3241 = vpop.xlane.xlu0 %3240
  %v3242 = vsel %vm2535, %v3063, 0.0
  %3243 = vadd.xlane.f32.xlu0 %v3242
  %v3244 = vpop.xlane.xlu0 %3243
  %v3245 = vsel %vm2535, %v3064, 0.0
  %3246 = vadd.xlane.f32.xlu0 %v3245
  %v3247 = vpop.xlane.xlu0 %3246
  %v3248 = vsel %vm2535, %v3065, 0.0
  %3249 = vadd.xlane.f32.xlu0 %v3248
  %v3250 = vpop.xlane.xlu0 %3249
  %v3251 = vsel %vm2535, %v3066, 0.0
  %3252 = vadd.xlane.f32.xlu0 %v3251
  %v3253 = vpop.xlane.xlu0 %3252
  %v3254 = vsel %vm2535, %v3067, 0.0
  %3255 = vadd.xlane.f32.xlu0 %v3254
  %v3256 = vpop.xlane.xlu0 %3255
  %v3257 = vsel %vm2535, %v3068, 0.0
  %3258 = vadd.xlane.f32.xlu0 %v3257
  %v3259 = vpop.xlane.xlu0 %3258
  %v3260 = vsel %vm2535, %v3069, 0.0
  %3261 = vadd.xlane.f32.xlu0 %v3260
  %v3262 = vpop.xlane.xlu0 %3261
  %v3263 = vsel %vm2535, %v3070, 0.0
  %3264 = vadd.xlane.f32.xlu0 %v3263
  %v3265 = vpop.xlane.xlu0 %3264
  %v3266 = vsel %vm2535, %v3071, 0.0
  %3267 = vadd.xlane.f32.xlu0 %v3266
  %v3268 = vpop.xlane.xlu0 %3267
  %v3269 = vsel %vm2535, %v3072, 0.0
  %3270 = vadd.xlane.f32.xlu0 %v3269
  %v3271 = vpop.xlane.xlu0 %3270
  %v3272 = vsel %vm2535, %v3073, 0.0
  %3273 = vadd.xlane.f32.xlu0 %v3272
  %v3274 = vpop.xlane.xlu0 %3273
  %v3275 = vsel %vm2535, %v3074, 0.0
  %3276 = vadd.xlane.f32.xlu0 %v3275
  %v3277 = vpop.xlane.xlu0 %3276
  %v3278 = vsel %vm2535, %v3075, 0.0
  %3279 = vadd.xlane.f32.xlu0 %v3278
  %v3280 = vpop.xlane.xlu0 %3279
  %v3281 = vsel %vm2535, %v3076, 0.0
  %3282 = vadd.xlane.f32.xlu0 %v3281
  %v3283 = vpop.xlane.xlu0 %3282
  %v3284 = vsel %vm2535, %v3077, 0.0
  %3285 = vadd.xlane.f32.xlu0 %v3284
  %v3286 = vpop.xlane.xlu0 %3285
  %v3287 = vsel %vm2535, %v3078, 0.0
  %3288 = vadd.xlane.f32.xlu0 %v3287
  %v3289 = vpop.xlane.xlu0 %3288
  %v3290 = vsel %vm2535, %v3079, 0.0
  %3291 = vadd.xlane.f32.xlu0 %v3290
  %v3292 = vpop.xlane.xlu0 %3291
  %v3293 = vsel %vm2535, %v3080, 0.0
  %3294 = vadd.xlane.f32.xlu0 %v3293
  %v3295 = vpop.xlane.xlu0 %3294
  %v3296 = vsel %vm2535, %v3081, 0.0
  %3297 = vadd.xlane.f32.xlu0 %v3296
  %v3298 = vpop.xlane.xlu0 %3297
  %v3299 = vsel %vm2535, %v3082, 0.0
  %3300 = vadd.xlane.f32.xlu0 %v3299
  %v3301 = vpop.xlane.xlu0 %3300
  %v3302 = vsel %vm2535, %v3083, 0.0
  %3303 = vadd.xlane.f32.xlu0 %v3302
  %v3304 = vpop.xlane.xlu0 %3303
  %v3305 = vsel %vm2535, %v3084, 0.0
  %3306 = vadd.xlane.f32.xlu0 %v3305
  %v3307 = vpop.xlane.xlu0 %3306
  %v3308 = vsel %vm2535, %v3085, 0.0
  %3309 = vadd.xlane.f32.xlu0 %v3308
  %v3310 = vpop.xlane.xlu0 %3309
  %v3311 = vsel %vm2535, %v3086, 0.0
  %3312 = vadd.xlane.f32.xlu0 %v3311
  %v3313 = vpop.xlane.xlu0 %3312
  %v3314 = vsel %vm2535, %v3087, 0.0
  %3315 = vadd.xlane.f32.xlu0 %v3314
  %v3316 = vpop.xlane.xlu0 %3315
  %v3317 = vsel %vm2535, %v3088, 0.0
  %3318 = vadd.xlane.f32.xlu0 %v3317
  %v3319 = vpop.xlane.xlu0 %3318
  %v3320 = vsel %vm2535, %v3089, 0.0
  %3321 = vadd.xlane.f32.xlu0 %v3320
  %v3322 = vpop.xlane.xlu0 %3321
  %v3323 = vsel %vm2535, %v3090, 0.0
  %3324 = vadd.xlane.f32.xlu0 %v3323
  %v3325 = vpop.xlane.xlu0 %3324
  %v3326 = vsel %vm2535, %v3091, 0.0
  %3327 = vadd.xlane.f32.xlu0 %v3326
  %v3328 = vpop.xlane.xlu0 %3327
  %v3329 = vsel %vm2535, %v3092, 0.0
  %3330 = vadd.xlane.f32.xlu0 %v3329
  %v3331 = vpop.xlane.xlu0 %3330
  %v3332 = vsel %vm2535, %v3093, 0.0
  %3333 = vadd.xlane.f32.xlu0 %v3332
  %v3334 = vpop.xlane.xlu0 %3333
  %v3335 = vsel %vm2535, %v3094, 0.0
  %3336 = vadd.xlane.f32.xlu0 %v3335
  %v3337 = vpop.xlane.xlu0 %3336
  %v3338 = vsel %vm2535, %v3095, 0.0
  %3339 = vadd.xlane.f32.xlu0 %v3338
  %v3340 = vpop.xlane.xlu0 %3339
  %v3341 = vsel %vm2535, %v3096, 0.0
  %3342 = vadd.xlane.f32.xlu0 %v3341
  %v3343 = vpop.xlane.xlu0 %3342
  %v3344 = vsel %vm2535, %v3097, 0.0
  %3345 = vadd.xlane.f32.xlu0 %v3344
  %v3346 = vpop.xlane.xlu0 %3345
  %v3347 = vsel %vm2535, %v3098, 0.0
  %3348 = vadd.xlane.f32.xlu0 %v3347
  %v3349 = vpop.xlane.xlu0 %3348
  %v3350 = vsel %vm2535, %v3099, 0.0
  %3351 = vadd.xlane.f32.xlu0 %v3350
  %v3352 = vpop.xlane.xlu0 %3351
  %v3353 = vsel %vm2535, %v3100, 0.0
  %3354 = vadd.xlane.f32.xlu0 %v3353
  %v3355 = vpop.xlane.xlu0 %3354
  %v3356 = vsel %vm2535, %v3101, 0.0
  %3357 = vadd.xlane.f32.xlu0 %v3356
  %v3358 = vpop.xlane.xlu0 %3357
  %v3359 = vsel %vm2535, %v3102, 0.0
  %3360 = vadd.xlane.f32.xlu0 %v3359
  %v3361 = vpop.xlane.xlu0 %3360
  %v3362 = vsel %vm2535, %v3103, 0.0
  %3363 = vadd.xlane.f32.xlu0 %v3362
  %v3364 = vpop.xlane.xlu0 %3363
  %v3365 = vsel %vm2535, %v3104, 0.0
  %3366 = vadd.xlane.f32.xlu0 %v3365
  %v3367 = vpop.xlane.xlu0 %3366
  %v3368 = vsel %vm2535, %v3105, 0.0
  %3369 = vadd.xlane.f32.xlu0 %v3368
  %v3370 = vpop.xlane.xlu0 %3369
  %v3371 = vsel %vm2535, %v3106, 0.0
  %3372 = vadd.xlane.f32.xlu0 %v3371
  %v3373 = vpop.xlane.xlu0 %3372
  %v3374 = vsel %vm2535, %v3107, 0.0
  %3375 = vadd.xlane.f32.xlu0 %v3374
  %v3376 = vpop.xlane.xlu0 %3375
  %v3377 = vsel %vm2535, %v3108, 0.0
  %3378 = vadd.xlane.f32.xlu0 %v3377
  %v3379 = vpop.xlane.xlu0 %3378
  %v3380 = vsel %vm2535, %v3109, 0.0
  %3381 = vadd.xlane.f32.xlu0 %v3380
  %v3382 = vpop.xlane.xlu0 %3381
  %v3383 = vsel %vm2535, %v3110, 0.0
  %3384 = vadd.xlane.f32.xlu0 %v3383
  %v3385 = vpop.xlane.xlu0 %3384
  %v3386 = vsel %vm2535, %v3111, 0.0
  %3387 = vadd.xlane.f32.xlu0 %v3386
  %v3388 = vpop.xlane.xlu0 %3387
  %v3389 = vsel %vm2535, %v3112, 0.0
  %3390 = vadd.xlane.f32.xlu0 %v3389
  %v3391 = vpop.xlane.xlu0 %3390
  %v3392 = vsel %vm2535, %v3113, 0.0
  %3393 = vadd.xlane.f32.xlu0 %v3392
  %v3394 = vpop.xlane.xlu0 %3393
  %v3395 = vsel %vm2535, %v3114, 0.0
  %3396 = vadd.xlane.f32.xlu0 %v3395
  %v3397 = vpop.xlane.xlu0 %3396
  %v3398 = vsel %vm2535, %v3115, 0.0
  %3399 = vadd.xlane.f32.xlu0 %v3398
  %v3400 = vpop.xlane.xlu0 %3399
  %v3401 = vsel %vm2535, %v3116, 0.0
  %3402 = vadd.xlane.f32.xlu0 %v3401
  %v3403 = vpop.xlane.xlu0 %3402
  %v3404 = vsel %vm2535, %v3117, 0.0
  %3405 = vadd.xlane.f32.xlu0 %v3404
  %v3406 = vpop.xlane.xlu0 %3405
  %v3407 = vsel %vm2535, %v3118, 0.0
  %3408 = vadd.xlane.f32.xlu0 %v3407
  %v3409 = vpop.xlane.xlu0 %3408
  %v3410 = vsel %vm2535, %v3119, 0.0
  %3411 = vadd.xlane.f32.xlu0 %v3410
  %v3412 = vpop.xlane.xlu0 %3411
  %v3413 = vsel %vm2535, %v3120, 0.0
  %3414 = vadd.xlane.f32.xlu0 %v3413
  %v3415 = vpop.xlane.xlu0 %3414
  %v3416 = vsel %vm2535, %v3121, 0.0
  %3417 = vadd.xlane.f32.xlu0 %v3416
  %v3418 = vpop.xlane.xlu0 %3417
  %v3419 = vsel %vm2535, %v3122, 0.0
  %3420 = vadd.xlane.f32.xlu0 %v3419
  %v3421 = vpop.xlane.xlu0 %3420
  %v3422 = vsel %vm2535, %v3123, 0.0
  %3423 = vadd.xlane.f32.xlu0 %v3422
  %v3424 = vpop.xlane.xlu0 %3423
  %v3425 = vsel %vm2535, %v3124, 0.0
  %3426 = vadd.xlane.f32.xlu0 %v3425
  %v3427 = vpop.xlane.xlu0 %3426
  %v3428 = vsel %vm2535, %v3125, 0.0
  %3429 = vadd.xlane.f32.xlu0 %v3428
  %v3430 = vpop.xlane.xlu0 %3429
  %v3431 = vsel %vm2535, %v3126, 0.0
  %3432 = vadd.xlane.f32.xlu0 %v3431
  %v3433 = vpop.xlane.xlu0 %3432
  %v3434 = vsel %vm2535, %v3127, 0.0
  %3435 = vadd.xlane.f32.xlu0 %v3434
  %v3436 = vpop.xlane.xlu0 %3435
  %v3437 = vsel %vm2535, %v3128, 0.0
  %3438 = vadd.xlane.f32.xlu0 %v3437
  %v3439 = vpop.xlane.xlu0 %3438
  %v3440 = vsel %vm2535, %v3129, 0.0
  %3441 = vadd.xlane.f32.xlu0 %v3440
  %v3442 = vpop.xlane.xlu0 %3441
  %v3443 = vsel %vm2535, %v3130, 0.0
  %3444 = vadd.xlane.f32.xlu0 %v3443
  %v3445 = vpop.xlane.xlu0 %3444
  %v3446 = vsel %vm2535, %v3131, 0.0
  %3447 = vadd.xlane.f32.xlu0 %v3446
  %v3448 = vpop.xlane.xlu0 %3447
  %v3449 = vsel %vm2535, %v3132, 0.0
  %3450 = vadd.xlane.f32.xlu0 %v3449
  %v3451 = vpop.xlane.xlu0 %3450
  %v3452 = vsel %vm2535, %v3133, 0.0
  %3453 = vadd.xlane.f32.xlu0 %v3452
  %v3454 = vpop.xlane.xlu0 %3453
  %v3455 = vsel %vm2535, %v3134, 0.0
  %3456 = vadd.xlane.f32.xlu0 %v3455
  %v3457 = vpop.xlane.xlu0 %3456
  %v3458 = vsel %vm2535, %v3135, 0.0
  %3459 = vadd.xlane.f32.xlu0 %v3458
  %v3460 = vpop.xlane.xlu0 %3459
  %v3461 = vsel %vm2535, %v3136, 0.0
  %3462 = vadd.xlane.f32.xlu0 %v3461
  %v3463 = vpop.xlane.xlu0 %3462
  %v3464 = vsel %vm2535, %v3137, 0.0
  %3465 = vadd.xlane.f32.xlu0 %v3464
  %v3466 = vpop.xlane.xlu0 %3465
  %v3467 = vsel %vm2535, %v3138, 0.0
  %3468 = vadd.xlane.f32.xlu0 %v3467
  %v3469 = vpop.xlane.xlu0 %3468
  %v3470 = vsel %vm2535, %v3139, 0.0
  %3471 = vadd.xlane.f32.xlu0 %v3470
  %v3472 = vpop.xlane.xlu0 %3471
  %v3473 = vsel %vm2535, %v3140, 0.0
  %3474 = vadd.xlane.f32.xlu0 %v3473
  %v3475 = vpop.xlane.xlu0 %3474
  %v3476 = vsel %vm2535, %v3141, 0.0
  %3477 = vadd.xlane.f32.xlu0 %v3476
  %v3478 = vpop.xlane.xlu0 %3477
  %v3479 = vsel %vm2535, %v3142, 0.0
  %3480 = vadd.xlane.f32.xlu0 %v3479
  %v3481 = vpop.xlane.xlu0 %3480
  %v3482 = vsel %vm2535, %v3143, 0.0
  %3483 = vadd.xlane.f32.xlu0 %v3482
  %v3484 = vpop.xlane.xlu0 %3483
  %v3485 = vsel %vm2535, %v3144, 0.0
  %3486 = vadd.xlane.f32.xlu0 %v3485
  %v3487 = vpop.xlane.xlu0 %3486
  %v3488 = vsel %vm2535, %v3145, 0.0
  %3489 = vadd.xlane.f32.xlu0 %v3488
  %v3490 = vpop.xlane.xlu0 %3489
  %v3491 = vsel %vm2535, %v3146, 0.0
  %3492 = vadd.xlane.f32.xlu0 %v3491
  %v3493 = vpop.xlane.xlu0 %3492
  %v3494 = vsel %vm2535, %v3147, 0.0
  %3495 = vadd.xlane.f32.xlu0 %v3494
  %v3496 = vpop.xlane.xlu0 %3495
  %v3497 = vsel %vm2535, %v3148, 0.0
  %3498 = vadd.xlane.f32.xlu0 %v3497
  %v3499 = vpop.xlane.xlu0 %3498
  %v3500 = vsel %vm2535, %v3149, 0.0
  %3501 = vadd.xlane.f32.xlu0 %v3500
  %v3502 = vpop.xlane.xlu0 %3501
  %v3503 = vsel %vm2535, %v3150, 0.0
  %3504 = vadd.xlane.f32.xlu0 %v3503
  %v3505 = vpop.xlane.xlu0 %3504
  %v3506 = vsel %vm2535, %v3151, 0.0
  %3507 = vadd.xlane.f32.xlu0 %v3506
  %v3508 = vpop.xlane.xlu0 %3507
  %v3509 = vsel %vm2535, %v3152, 0.0
  %3510 = vadd.xlane.f32.xlu0 %v3509
  %v3511 = vpop.xlane.xlu0 %3510
  %v3512 = vsel %vm2535, %v3153, 0.0
  %3513 = vadd.xlane.f32.xlu0 %v3512
  %v3514 = vpop.xlane.xlu0 %3513
  %v3515 = vsel %vm2535, %v3154, 0.0
  %3516 = vadd.xlane.f32.xlu0 %v3515
  %v3517 = vpop.xlane.xlu0 %3516
  %v3518 = vsel %vm2535, %v3155, 0.0
  %3519 = vadd.xlane.f32.xlu0 %v3518
  %v3520 = vpop.xlane.xlu0 %3519
  %v3521 = vsel %vm2535, %v3156, 0.0
  %3522 = vadd.xlane.f32.xlu0 %v3521
  %v3523 = vpop.xlane.xlu0 %3522
  %v3524 = vsel %vm2535, %v3157, 0.0
  %3525 = vadd.xlane.f32.xlu0 %v3524
  %v3526 = vpop.xlane.xlu0 %3525
  %v3527 = vsel %vm2535, %v3158, 0.0
  %3528 = vadd.xlane.f32.xlu0 %v3527
  %v3529 = vpop.xlane.xlu0 %3528
  %v3530 = vsel %vm2535, %v3159, 0.0
  %3531 = vadd.xlane.f32.xlu0 %v3530
  %v3532 = vpop.xlane.xlu0 %3531
  %v3533 = vsel %vm2535, %v3160, 0.0
  %3534 = vadd.xlane.f32.xlu0 %v3533
  %v3535 = vpop.xlane.xlu0 %3534
  %v3536 = vmul.f32 %v3163, 0.125
  %v3537 = vmul.f32 %v3166, 0.125
  %v3538 = vmul.f32 %v3169, 0.125
  %v3539 = vmul.f32 %v3172, 0.125
  %v3540 = vmul.f32 %v3175, 0.125
  %v3541 = vmul.f32 %v3178, 0.125
  %v3542 = vmul.f32 %v3181, 0.125
  %v3543 = vmul.f32 %v3184, 0.125
  %v3544 = vmul.f32 %v3187, 0.125
  %v3545 = vmul.f32 %v3190, 0.125
  %v3546 = vmul.f32 %v3193, 0.125
  %v3547 = vmul.f32 %v3196, 0.125
  %v3548 = vmul.f32 %v3199, 0.125
  %v3549 = vmul.f32 %v3202, 0.125
  %v3550 = vmul.f32 %v3205, 0.125
  %v3551 = vmul.f32 %v3208, 0.125
  %v3552 = vmul.f32 %v3211, 0.125
  %v3553 = vmul.f32 %v3214, 0.125
  %v3554 = vmul.f32 %v3217, 0.125
  %v3555 = vmul.f32 %v3220, 0.125
  %v3556 = vmul.f32 %v3223, 0.125
  %v3557 = vmul.f32 %v3226, 0.125
  %v3558 = vmul.f32 %v3229, 0.125
  %v3559 = vmul.f32 %v3232, 0.125
  %v3560 = vmul.f32 %v3235, 0.125
  %v3561 = vmul.f32 %v3238, 0.125
  %v3562 = vmul.f32 %v3241, 0.125
  %v3563 = vmul.f32 %v3244, 0.125
  %v3564 = vmul.f32 %v3247, 0.125
  %v3565 = vmul.f32 %v3250, 0.125
  %v3566 = vmul.f32 %v3253, 0.125
  %v3567 = vmul.f32 %v3256, 0.125
  %v3568 = vmul.f32 %v3259, 0.125
  %v3569 = vmul.f32 %v3262, 0.125
  %v3570 = vmul.f32 %v3265, 0.125
  %v3571 = vmul.f32 %v3268, 0.125
  %v3572 = vmul.f32 %v3271, 0.125
  %v3573 = vmul.f32 %v3274, 0.125
  %v3574 = vmul.f32 %v3277, 0.125
  %v3575 = vmul.f32 %v3280, 0.125
  %v3576 = vmul.f32 %v3283, 0.125
  %v3577 = vmul.f32 %v3286, 0.125
  %v3578 = vmul.f32 %v3289, 0.125
  %v3579 = vmul.f32 %v3292, 0.125
  %v3580 = vmul.f32 %v3295, 0.125
  %v3581 = vmul.f32 %v3298, 0.125
  %v3582 = vmul.f32 %v3301, 0.125
  %v3583 = vmul.f32 %v3304, 0.125
  %v3584 = vmul.f32 %v3307, 0.125
  %v3585 = vmul.f32 %v3310, 0.125
  %v3586 = vmul.f32 %v3313, 0.125
  %v3587 = vmul.f32 %v3316, 0.125
  %v3588 = vmul.f32 %v3319, 0.125
  %v3589 = vmul.f32 %v3322, 0.125
  %v3590 = vmul.f32 %v3325, 0.125
  %v3591 = vmul.f32 %v3328, 0.125
  %v3592 = vmul.f32 %v3331, 0.125
  %v3593 = vmul.f32 %v3334, 0.125
  %v3594 = vmul.f32 %v3337, 0.125
  %v3595 = vmul.f32 %v3340, 0.125
  %v3596 = vmul.f32 %v3343, 0.125
  %v3597 = vmul.f32 %v3346, 0.125
  %v3598 = vmul.f32 %v3349, 0.125
  %v3599 = vmul.f32 %v3352, 0.125
  %v3600 = vmul.f32 %v3355, 0.125
  %v3601 = vmul.f32 %v3358, 0.125
  %v3602 = vmul.f32 %v3361, 0.125
  %v3603 = vmul.f32 %v3364, 0.125
  %v3604 = vmul.f32 %v3367, 0.125
  %v3605 = vmul.f32 %v3370, 0.125
  %v3606 = vmul.f32 %v3373, 0.125
  %v3607 = vmul.f32 %v3376, 0.125
  %v3608 = vmul.f32 %v3379, 0.125
  %v3609 = vmul.f32 %v3382, 0.125
  %v3610 = vmul.f32 %v3385, 0.125
  %v3611 = vmul.f32 %v3388, 0.125
  %v3612 = vmul.f32 %v3391, 0.125
  %v3613 = vmul.f32 %v3394, 0.125
  %v3614 = vmul.f32 %v3397, 0.125
  %v3615 = vmul.f32 %v3400, 0.125
  %v3616 = vmul.f32 %v3403, 0.125
  %v3617 = vmul.f32 %v3406, 0.125
  %v3618 = vmul.f32 %v3409, 0.125
  %v3619 = vmul.f32 %v3412, 0.125
  %v3620 = vmul.f32 %v3415, 0.125
  %v3621 = vmul.f32 %v3418, 0.125
  %v3622 = vmul.f32 %v3421, 0.125
  %v3623 = vmul.f32 %v3424, 0.125
  %v3624 = vmul.f32 %v3427, 0.125
  %v3625 = vmul.f32 %v3430, 0.125
  %v3626 = vmul.f32 %v3433, 0.125
  %v3627 = vmul.f32 %v3436, 0.125
  %v3628 = vmul.f32 %v3439, 0.125
  %v3629 = vmul.f32 %v3442, 0.125
  %v3630 = vmul.f32 %v3445, 0.125
  %v3631 = vmul.f32 %v3448, 0.125
  %v3632 = vmul.f32 %v3451, 0.125
  %v3633 = vmul.f32 %v3454, 0.125
  %v3634 = vmul.f32 %v3457, 0.125
  %v3635 = vmul.f32 %v3460, 0.125
  %v3636 = vmul.f32 %v3463, 0.125
  %v3637 = vmul.f32 %v3466, 0.125
  %v3638 = vmul.f32 %v3469, 0.125
  %v3639 = vmul.f32 %v3472, 0.125
  %v3640 = vmul.f32 %v3475, 0.125
  %v3641 = vmul.f32 %v3478, 0.125
  %v3642 = vmul.f32 %v3481, 0.125
  %v3643 = vmul.f32 %v3484, 0.125
  %v3644 = vmul.f32 %v3487, 0.125
  %v3645 = vmul.f32 %v3490, 0.125
  %v3646 = vmul.f32 %v3493, 0.125
  %v3647 = vmul.f32 %v3496, 0.125
  %v3648 = vmul.f32 %v3499, 0.125
  %v3649 = vmul.f32 %v3502, 0.125
  %v3650 = vmul.f32 %v3505, 0.125
  %v3651 = vmul.f32 %v3508, 0.125
  %v3652 = vmul.f32 %v3511, 0.125
  %v3653 = vmul.f32 %v3514, 0.125
  %v3654 = vmul.f32 %v3517, 0.125
  %v3655 = vmul.f32 %v3520, 0.125
  %v3656 = vmul.f32 %v3523, 0.125
  %v3657 = vmul.f32 %v3526, 0.125
  %v3658 = vmul.f32 %v3529, 0.125
  %v3659 = vmul.f32 %v3532, 0.125
  %v3660 = vmul.f32 %v3535, 0.125
  %v3661 = vmul.f32 %v2911, %v2911
  %v3662 = vmul.f32 %v2912, %v2912
  %v3663 = vmul.f32 %v2913, %v2913
  %v3664 = vmul.f32 %v2914, %v2914
  %v3665 = vmul.f32 %v2915, %v2915
  %v3666 = vmul.f32 %v2916, %v2916
  %v3667 = vmul.f32 %v2917, %v2917
  %v3668 = vmul.f32 %v2918, %v2918
  %v3669 = vmul.f32 %v2919, %v2919
  %v3670 = vmul.f32 %v2920, %v2920
  %v3671 = vmul.f32 %v2921, %v2921
  %v3672 = vmul.f32 %v2922, %v2922
  %v3673 = vmul.f32 %v2923, %v2923
  %v3674 = vmul.f32 %v2924, %v2924
  %v3675 = vmul.f32 %v2925, %v2925
  %v3676 = vmul.f32 %v2926, %v2926
  %v3677 = vmul.f32 %v2927, %v2927
  %v3678 = vmul.f32 %v2928, %v2928
  %v3679 = vmul.f32 %v2929, %v2929
  %v3680 = vmul.f32 %v2930, %v2930
  %v3681 = vmul.f32 %v2931, %v2931
  %v3682 = vmul.f32 %v2932, %v2932
  %v3683 = vmul.f32 %v2933, %v2933
  %v3684 = vmul.f32 %v2934, %v2934
  %v3685 = vmul.f32 %v2935, %v2935
  %v3686 = vmul.f32 %v2936, %v2936
  %v3687 = vmul.f32 %v2937, %v2937
  %v3688 = vmul.f32 %v2938, %v2938
  %v3689 = vmul.f32 %v2939, %v2939
  %v3690 = vmul.f32 %v2940, %v2940
  %v3691 = vmul.f32 %v2941, %v2941
  %v3692 = vmul.f32 %v2942, %v2942
  %v3693 = vmul.f32 %v2943, %v2943
  %v3694 = vmul.f32 %v2944, %v2944
  %v3695 = vmul.f32 %v2945, %v2945
  %v3696 = vmul.f32 %v2946, %v2946
  %v3697 = vmul.f32 %v2947, %v2947
  %v3698 = vmul.f32 %v2948, %v2948
  %v3699 = vmul.f32 %v2949, %v2949
  %v3700 = vmul.f32 %v2950, %v2950
  %v3701 = vmul.f32 %v2951, %v2951
  %v3702 = vmul.f32 %v2952, %v2952
  %v3703 = vmul.f32 %v2953, %v2953
  %v3704 = vmul.f32 %v2954, %v2954
  %v3705 = vmul.f32 %v2955, %v2955
  %v3706 = vmul.f32 %v2956, %v2956
  %v3707 = vmul.f32 %v2957, %v2957
  %v3708 = vmul.f32 %v2958, %v2958
  %v3709 = vmul.f32 %v2959, %v2959
  %v3710 = vmul.f32 %v2960, %v2960
  %v3711 = vmul.f32 %v2961, %v2961
  %v3712 = vmul.f32 %v2962, %v2962
  %v3713 = vmul.f32 %v2963, %v2963
  %v3714 = vmul.f32 %v2964, %v2964
  %v3715 = vmul.f32 %v2965, %v2965
  %v3716 = vmul.f32 %v2966, %v2966
  %v3717 = vmul.f32 %v2967, %v2967
  %v3718 = vmul.f32 %v2968, %v2968
  %v3719 = vmul.f32 %v2969, %v2969
  %v3720 = vmul.f32 %v2970, %v2970
  %v3721 = vmul.f32 %v2971, %v2971
  %v3722 = vmul.f32 %v2972, %v2972
  %v3723 = vmul.f32 %v2973, %v2973
  %v3724 = vmul.f32 %v2974, %v2974
  %v3725 = vmul.f32 %v2975, %v2975
  %v3726 = vmul.f32 %v2976, %v2976
  %v3727 = vmul.f32 %v2977, %v2977
  %v3728 = vmul.f32 %v2978, %v2978
  %v3729 = vmul.f32 %v2979, %v2979
  %v3730 = vmul.f32 %v2980, %v2980
  %v3731 = vmul.f32 %v2981, %v2981
  %v3732 = vmul.f32 %v2982, %v2982
  %v3733 = vmul.f32 %v2983, %v2983
  %v3734 = vmul.f32 %v2984, %v2984
  %v3735 = vmul.f32 %v2985, %v2985
  %v3736 = vmul.f32 %v2986, %v2986
  %v3737 = vmul.f32 %v2987, %v2987
  %v3738 = vmul.f32 %v2988, %v2988
  %v3739 = vmul.f32 %v2989, %v2989
  %v3740 = vmul.f32 %v2990, %v2990
  %v3741 = vmul.f32 %v2991, %v2991
  %v3742 = vmul.f32 %v2992, %v2992
  %v3743 = vmul.f32 %v2993, %v2993
  %v3744 = vmul.f32 %v2994, %v2994
  %v3745 = vmul.f32 %v2995, %v2995
  %v3746 = vmul.f32 %v2996, %v2996
  %v3747 = vmul.f32 %v2997, %v2997
  %v3748 = vmul.f32 %v2998, %v2998
  %v3749 = vmul.f32 %v2999, %v2999
  %v3750 = vmul.f32 %v3000, %v3000
  %v3751 = vmul.f32 %v3001, %v3001
  %v3752 = vmul.f32 %v3002, %v3002
  %v3753 = vmul.f32 %v3003, %v3003
  %v3754 = vmul.f32 %v3004, %v3004
  %v3755 = vmul.f32 %v3005, %v3005
  %v3756 = vmul.f32 %v3006, %v3006
  %v3757 = vmul.f32 %v3007, %v3007
  %v3758 = vmul.f32 %v3008, %v3008
  %v3759 = vmul.f32 %v3009, %v3009
  %v3760 = vmul.f32 %v3010, %v3010
  %v3761 = vmul.f32 %v3011, %v3011
  %v3762 = vmul.f32 %v3012, %v3012
  %v3763 = vmul.f32 %v3013, %v3013
  %v3764 = vmul.f32 %v3014, %v3014
  %v3765 = vmul.f32 %v3015, %v3015
  %v3766 = vmul.f32 %v3016, %v3016
  %v3767 = vmul.f32 %v3017, %v3017
  %v3768 = vmul.f32 %v3018, %v3018
  %v3769 = vmul.f32 %v3019, %v3019
  %v3770 = vmul.f32 %v3020, %v3020
  %v3771 = vmul.f32 %v3021, %v3021
  %v3772 = vmul.f32 %v3022, %v3022
  %v3773 = vmul.f32 %v3023, %v3023
  %v3774 = vmul.f32 %v3024, %v3024
  %v3775 = vmul.f32 %v3025, %v3025
  %v3776 = vmul.f32 %v3026, %v3026
  %v3777 = vmul.f32 %v3027, %v3027
  %v3778 = vmul.f32 %v3028, %v3028
  %v3779 = vmul.f32 %v3029, %v3029
  %v3780 = vmul.f32 %v3030, %v3030
  %v3781 = vmul.f32 %v3031, %v3031
  %v3782 = vmul.f32 %v3032, %v3032
  %v3783 = vmul.f32 %v3033, %v3033
  %v3784 = vmul.f32 %v3034, %v3034
  %v3785 = vmul.f32 %v3035, %v3035
  %v3786 = vsub.f32 %v3536, %v3661
  %v3787 = vsub.f32 %v3537, %v3662
  %v3788 = vsub.f32 %v3538, %v3663
  %v3789 = vsub.f32 %v3539, %v3664
  %v3790 = vsub.f32 %v3540, %v3665
  %v3791 = vsub.f32 %v3541, %v3666
  %v3792 = vsub.f32 %v3542, %v3667
  %v3793 = vsub.f32 %v3543, %v3668
  %v3794 = vsub.f32 %v3544, %v3669
  %v3795 = vsub.f32 %v3545, %v3670
  %v3796 = vsub.f32 %v3546, %v3671
  %v3797 = vsub.f32 %v3547, %v3672
  %v3798 = vsub.f32 %v3548, %v3673
  %v3799 = vsub.f32 %v3549, %v3674
  %v3800 = vsub.f32 %v3550, %v3675
  %v3801 = vsub.f32 %v3551, %v3676
  %v3802 = vsub.f32 %v3552, %v3677
  %v3803 = vsub.f32 %v3553, %v3678
  %v3804 = vsub.f32 %v3554, %v3679
  %v3805 = vsub.f32 %v3555, %v3680
  %v3806 = vsub.f32 %v3556, %v3681
  %v3807 = vsub.f32 %v3557, %v3682
  %v3808 = vsub.f32 %v3558, %v3683
  %v3809 = vsub.f32 %v3559, %v3684
  %v3810 = vsub.f32 %v3560, %v3685
  %v3811 = vsub.f32 %v3561, %v3686
  %v3812 = vsub.f32 %v3562, %v3687
  %v3813 = vsub.f32 %v3563, %v3688
  %v3814 = vsub.f32 %v3564, %v3689
  %v3815 = vsub.f32 %v3565, %v3690
  %v3816 = vsub.f32 %v3566, %v3691
  %v3817 = vsub.f32 %v3567, %v3692
  %v3818 = vsub.f32 %v3568, %v3693
  %v3819 = vsub.f32 %v3569, %v3694
  %v3820 = vsub.f32 %v3570, %v3695
  %v3821 = vsub.f32 %v3571, %v3696
  %v3822 = vsub.f32 %v3572, %v3697
  %v3823 = vsub.f32 %v3573, %v3698
  %v3824 = vsub.f32 %v3574, %v3699
  %v3825 = vsub.f32 %v3575, %v3700
  %v3826 = vsub.f32 %v3576, %v3701
  %v3827 = vsub.f32 %v3577, %v3702
  %v3828 = vsub.f32 %v3578, %v3703
  %v3829 = vsub.f32 %v3579, %v3704
  %v3830 = vsub.f32 %v3580, %v3705
  %v3831 = vsub.f32 %v3581, %v3706
  %v3832 = vsub.f32 %v3582, %v3707
  %v3833 = vsub.f32 %v3583, %v3708
  %v3834 = vsub.f32 %v3584, %v3709
  %v3835 = vsub.f32 %v3585, %v3710
  %v3836 = vsub.f32 %v3586, %v3711
  %v3837 = vsub.f32 %v3587, %v3712
  %v3838 = vsub.f32 %v3588, %v3713
  %v3839 = vsub.f32 %v3589, %v3714
  %v3840 = vsub.f32 %v3590, %v3715
  %v3841 = vsub.f32 %v3591, %v3716
  %v3842 = vsub.f32 %v3592, %v3717
  %v3843 = vsub.f32 %v3593, %v3718
  %v3844 = vsub.f32 %v3594, %v3719
  %v3845 = vsub.f32 %v3595, %v3720
  %v3846 = vsub.f32 %v3596, %v3721
  %v3847 = vsub.f32 %v3597, %v3722
  %v3848 = vsub.f32 %v3598, %v3723
  %v3849 = vsub.f32 %v3599, %v3724
  %v3850 = vsub.f32 %v3600, %v3725
  %v3851 = vsub.f32 %v3601, %v3726
  %v3852 = vsub.f32 %v3602, %v3727
  %v3853 = vsub.f32 %v3603, %v3728
  %v3854 = vsub.f32 %v3604, %v3729
  %v3855 = vsub.f32 %v3605, %v3730
  %v3856 = vsub.f32 %v3606, %v3731
  %v3857 = vsub.f32 %v3607, %v3732
  %v3858 = vsub.f32 %v3608, %v3733
  %v3859 = vsub.f32 %v3609, %v3734
  %v3860 = vsub.f32 %v3610, %v3735
  %v3861 = vsub.f32 %v3611, %v3736
  %v3862 = vsub.f32 %v3612, %v3737
  %v3863 = vsub.f32 %v3613, %v3738
  %v3864 = vsub.f32 %v3614, %v3739
  %v3865 = vsub.f32 %v3615, %v3740
  %v3866 = vsub.f32 %v3616, %v3741
  %v3867 = vsub.f32 %v3617, %v3742
  %v3868 = vsub.f32 %v3618, %v3743
  %v3869 = vsub.f32 %v3619, %v3744
  %v3870 = vsub.f32 %v3620, %v3745
  %v3871 = vsub.f32 %v3621, %v3746
  %v3872 = vsub.f32 %v3622, %v3747
  %v3873 = vsub.f32 %v3623, %v3748
  %v3874 = vsub.f32 %v3624, %v3749
  %v3875 = vsub.f32 %v3625, %v3750
  %v3876 = vsub.f32 %v3626, %v3751
  %v3877 = vsub.f32 %v3627, %v3752
  %v3878 = vsub.f32 %v3628, %v3753
  %v3879 = vsub.f32 %v3629, %v3754
  %v3880 = vsub.f32 %v3630, %v3755
  %v3881 = vsub.f32 %v3631, %v3756
  %v3882 = vsub.f32 %v3632, %v3757
  %v3883 = vsub.f32 %v3633, %v3758
  %v3884 = vsub.f32 %v3634, %v3759
  %v3885 = vsub.f32 %v3635, %v3760
  %v3886 = vsub.f32 %v3636, %v3761
  %v3887 = vsub.f32 %v3637, %v3762
  %v3888 = vsub.f32 %v3638, %v3763
  %v3889 = vsub.f32 %v3639, %v3764
  %v3890 = vsub.f32 %v3640, %v3765
  %v3891 = vsub.f32 %v3641, %v3766
  %v3892 = vsub.f32 %v3642, %v3767
  %v3893 = vsub.f32 %v3643, %v3768
  %v3894 = vsub.f32 %v3644, %v3769
  %v3895 = vsub.f32 %v3645, %v3770
  %v3896 = vsub.f32 %v3646, %v3771
  %v3897 = vsub.f32 %v3647, %v3772
  %v3898 = vsub.f32 %v3648, %v3773
  %v3899 = vsub.f32 %v3649, %v3774
  %v3900 = vsub.f32 %v3650, %v3775
  %v3901 = vsub.f32 %v3651, %v3776
  %v3902 = vsub.f32 %v3652, %v3777
  %v3903 = vsub.f32 %v3653, %v3778
  %v3904 = vsub.f32 %v3654, %v3779
  %v3905 = vsub.f32 %v3655, %v3780
  %v3906 = vsub.f32 %v3656, %v3781
  %v3907 = vsub.f32 %v3657, %v3782
  %v3908 = vsub.f32 %v3658, %v3783
  %v3909 = vsub.f32 %v3659, %v3784
  %v3910 = vsub.f32 %v3660, %v3785
  %v3911 = vmax.f32 %v3786, 0.0
  %v3912 = vmax.f32 %v3787, 0.0
  %v3913 = vmax.f32 %v3788, 0.0
  %v3914 = vmax.f32 %v3789, 0.0
  %v3915 = vmax.f32 %v3790, 0.0
  %v3916 = vmax.f32 %v3791, 0.0
  %v3917 = vmax.f32 %v3792, 0.0
  %v3918 = vmax.f32 %v3793, 0.0
  %v3919 = vmax.f32 %v3794, 0.0
  %v3920 = vmax.f32 %v3795, 0.0
  %v3921 = vmax.f32 %v3796, 0.0
  %v3922 = vmax.f32 %v3797, 0.0
  %v3923 = vmax.f32 %v3798, 0.0
  %v3924 = vmax.f32 %v3799, 0.0
  %v3925 = vmax.f32 %v3800, 0.0
  %v3926 = vmax.f32 %v3801, 0.0
  %v3927 = vmax.f32 %v3802, 0.0
  %v3928 = vmax.f32 %v3803, 0.0
  %v3929 = vmax.f32 %v3804, 0.0
  %v3930 = vmax.f32 %v3805, 0.0
  %v3931 = vmax.f32 %v3806, 0.0
  %v3932 = vmax.f32 %v3807, 0.0
  %v3933 = vmax.f32 %v3808, 0.0
  %v3934 = vmax.f32 %v3809, 0.0
  %v3935 = vmax.f32 %v3810, 0.0
  %v3936 = vmax.f32 %v3811, 0.0
  %v3937 = vmax.f32 %v3812, 0.0
  %v3938 = vmax.f32 %v3813, 0.0
  %v3939 = vmax.f32 %v3814, 0.0
  %v3940 = vmax.f32 %v3815, 0.0
  %v3941 = vmax.f32 %v3816, 0.0
  %v3942 = vmax.f32 %v3817, 0.0
  %v3943 = vmax.f32 %v3818, 0.0
  %v3944 = vmax.f32 %v3819, 0.0
  %v3945 = vmax.f32 %v3820, 0.0
  %v3946 = vmax.f32 %v3821, 0.0
  %v3947 = vmax.f32 %v3822, 0.0
  %v3948 = vmax.f32 %v3823, 0.0
  %v3949 = vmax.f32 %v3824, 0.0
  %v3950 = vmax.f32 %v3825, 0.0
  %v3951 = vmax.f32 %v3826, 0.0
  %v3952 = vmax.f32 %v3827, 0.0
  %v3953 = vmax.f32 %v3828, 0.0
  %v3954 = vmax.f32 %v3829, 0.0
  %v3955 = vmax.f32 %v3830, 0.0
  %v3956 = vmax.f32 %v3831, 0.0
  %v3957 = vmax.f32 %v3832, 0.0
  %v3958 = vmax.f32 %v3833, 0.0
  %v3959 = vmax.f32 %v3834, 0.0
  %v3960 = vmax.f32 %v3835, 0.0
  %v3961 = vmax.f32 %v3836, 0.0
  %v3962 = vmax.f32 %v3837, 0.0
  %v3963 = vmax.f32 %v3838, 0.0
  %v3964 = vmax.f32 %v3839, 0.0
  %v3965 = vmax.f32 %v3840, 0.0
  %v3966 = vmax.f32 %v3841, 0.0
  %v3967 = vmax.f32 %v3842, 0.0
  %v3968 = vmax.f32 %v3843, 0.0
  %v3969 = vmax.f32 %v3844, 0.0
  %v3970 = vmax.f32 %v3845, 0.0
  %v3971 = vmax.f32 %v3846, 0.0
  %v3972 = vmax.f32 %v3847, 0.0
  %v3973 = vmax.f32 %v3848, 0.0
  %v3974 = vmax.f32 %v3849, 0.0
  %v3975 = vmax.f32 %v3850, 0.0
  %v3976 = vmax.f32 %v3851, 0.0
  %v3977 = vmax.f32 %v3852, 0.0
  %v3978 = vmax.f32 %v3853, 0.0
  %v3979 = vmax.f32 %v3854, 0.0
  %v3980 = vmax.f32 %v3855, 0.0
  %v3981 = vmax.f32 %v3856, 0.0
  %v3982 = vmax.f32 %v3857, 0.0
  %v3983 = vmax.f32 %v3858, 0.0
  %v3984 = vmax.f32 %v3859, 0.0
  %v3985 = vmax.f32 %v3860, 0.0
  %v3986 = vmax.f32 %v3861, 0.0
  %v3987 = vmax.f32 %v3862, 0.0
  %v3988 = vmax.f32 %v3863, 0.0
  %v3989 = vmax.f32 %v3864, 0.0
  %v3990 = vmax.f32 %v3865, 0.0
  %v3991 = vmax.f32 %v3866, 0.0
  %v3992 = vmax.f32 %v3867, 0.0
  %v3993 = vmax.f32 %v3868, 0.0
  %v3994 = vmax.f32 %v3869, 0.0
  %v3995 = vmax.f32 %v3870, 0.0
  %v3996 = vmax.f32 %v3871, 0.0
  %v3997 = vmax.f32 %v3872, 0.0
  %v3998 = vmax.f32 %v3873, 0.0
  %v3999 = vmax.f32 %v3874, 0.0
  %v4000 = vmax.f32 %v3875, 0.0
  %v4001 = vmax.f32 %v3876, 0.0
  %v4002 = vmax.f32 %v3877, 0.0
  %v4003 = vmax.f32 %v3878, 0.0
  %v4004 = vmax.f32 %v3879, 0.0
  %v4005 = vmax.f32 %v3880, 0.0
  %v4006 = vmax.f32 %v3881, 0.0
  %v4007 = vmax.f32 %v3882, 0.0
  %v4008 = vmax.f32 %v3883, 0.0
  %v4009 = vmax.f32 %v3884, 0.0
  %v4010 = vmax.f32 %v3885, 0.0
  %v4011 = vmax.f32 %v3886, 0.0
  %v4012 = vmax.f32 %v3887, 0.0
  %v4013 = vmax.f32 %v3888, 0.0
  %v4014 = vmax.f32 %v3889, 0.0
  %v4015 = vmax.f32 %v3890, 0.0
  %v4016 = vmax.f32 %v3891, 0.0
  %v4017 = vmax.f32 %v3892, 0.0
  %v4018 = vmax.f32 %v3893, 0.0
  %v4019 = vmax.f32 %v3894, 0.0
  %v4020 = vmax.f32 %v3895, 0.0
  %v4021 = vmax.f32 %v3896, 0.0
  %v4022 = vmax.f32 %v3897, 0.0
  %v4023 = vmax.f32 %v3898, 0.0
  %v4024 = vmax.f32 %v3899, 0.0
  %v4025 = vmax.f32 %v3900, 0.0
  %v4026 = vmax.f32 %v3901, 0.0
  %v4027 = vmax.f32 %v3902, 0.0
  %v4028 = vmax.f32 %v3903, 0.0
  %v4029 = vmax.f32 %v3904, 0.0
  %v4030 = vmax.f32 %v3905, 0.0
  %v4031 = vmax.f32 %v3906, 0.0
  %v4032 = vmax.f32 %v3907, 0.0
  %v4033 = vmax.f32 %v3908, 0.0
  %v4034 = vmax.f32 %v3909, 0.0
  %v4035 = vmax.f32 %v3910, 0.0
  %v4036 = vsub.f32 %v2034, %v2911
  %v4037 = vsub.f32 %v2037, %v2912
  %v4038 = vsub.f32 %v2042, %v2913
  %v4039 = vsub.f32 %v2045, %v2914
  %v4040 = vsub.f32 %v2050, %v2915
  %v4041 = vsub.f32 %v2053, %v2916
  %v4042 = vsub.f32 %v2058, %v2917
  %v4043 = vsub.f32 %v2061, %v2918
  %v4044 = vsub.f32 %v2066, %v2919
  %v4045 = vsub.f32 %v2069, %v2920
  %v4046 = vsub.f32 %v2074, %v2921
  %v4047 = vsub.f32 %v2077, %v2922
  %v4048 = vsub.f32 %v2082, %v2923
  %v4049 = vsub.f32 %v2085, %v2924
  %v4050 = vsub.f32 %v2090, %v2925
  %v4051 = vsub.f32 %v2093, %v2926
  %v4052 = vsub.f32 %v2098, %v2927
  %v4053 = vsub.f32 %v2101, %v2928
  %v4054 = vsub.f32 %v2106, %v2929
  %v4055 = vsub.f32 %v2109, %v2930
  %v4056 = vsub.f32 %v2114, %v2931
  %v4057 = vsub.f32 %v2117, %v2932
  %v4058 = vsub.f32 %v2122, %v2933
  %v4059 = vsub.f32 %v2125, %v2934
  %v4060 = vsub.f32 %v2130, %v2935
  %v4061 = vsub.f32 %v2133, %v2936
  %v4062 = vsub.f32 %v2138, %v2937
  %v4063 = vsub.f32 %v2141, %v2938
  %v4064 = vsub.f32 %v2146, %v2939
  %v4065 = vsub.f32 %v2149, %v2940
  %v4066 = vsub.f32 %v2154, %v2941
  %v4067 = vsub.f32 %v2157, %v2942
  %v4068 = vsub.f32 %v2162, %v2943
  %v4069 = vsub.f32 %v2165, %v2944
  %v4070 = vsub.f32 %v2170, %v2945
  %v4071 = vsub.f32 %v2173, %v2946
  %v4072 = vsub.f32 %v2178, %v2947
  %v4073 = vsub.f32 %v2181, %v2948
  %v4074 = vsub.f32 %v2186, %v2949
  %v4075 = vsub.f32 %v2189, %v2950
  %v4076 = vsub.f32 %v2194, %v2951
  %v4077 = vsub.f32 %v2197, %v2952
  %v4078 = vsub.f32 %v2202, %v2953
  %v4079 = vsub.f32 %v2205, %v2954
  %v4080 = vsub.f32 %v2210, %v2955
  %v4081 = vsub.f32 %v2213, %v2956
  %v4082 = vsub.f32 %v2218, %v2957
  %v4083 = vsub.f32 %v2221, %v2958
  %v4084 = vsub.f32 %v2226, %v2959
  %v4085 = vsub.f32 %v2229, %v2960
  %v4086 = vsub.f32 %v2234, %v2961
  %v4087 = vsub.f32 %v2237, %v2962
  %v4088 = vsub.f32 %v2242, %v2963
  %v4089 = vsub.f32 %v2245, %v2964
  %v4090 = vsub.f32 %v2250, %v2965
  %v4091 = vsub.f32 %v2253, %v2966
  %v4092 = vsub.f32 %v2258, %v2967
  %v4093 = vsub.f32 %v2261, %v2968
  %v4094 = vsub.f32 %v2266, %v2969
  %v4095 = vsub.f32 %v2269, %v2970
  %v4096 = vsub.f32 %v2274, %v2971
  %v4097 = vsub.f32 %v2277, %v2972
  %v4098 = vsub.f32 %v2282, %v2973
  %v4099 = vsub.f32 %v2285, %v2974
  %v4100 = vsub.f32 %v2290, %v2975
  %v4101 = vsub.f32 %v2293, %v2976
  %v4102 = vsub.f32 %v2298, %v2977
  %v4103 = vsub.f32 %v2301, %v2978
  %v4104 = vsub.f32 %v2306, %v2979
  %v4105 = vsub.f32 %v2309, %v2980
  %v4106 = vsub.f32 %v2314, %v2981
  %v4107 = vsub.f32 %v2317, %v2982
  %v4108 = vsub.f32 %v2322, %v2983
  %v4109 = vsub.f32 %v2325, %v2984
  %v4110 = vsub.f32 %v2330, %v2985
  %v4111 = vsub.f32 %v2333, %v2986
  %v4112 = vsub.f32 %v2338, %v2987
  %v4113 = vsub.f32 %v2341, %v2988
  %v4114 = vsub.f32 %v2346, %v2989
  %v4115 = vsub.f32 %v2349, %v2990
  %v4116 = vsub.f32 %v2354, %v2991
  %v4117 = vsub.f32 %v2357, %v2992
  %v4118 = vsub.f32 %v2362, %v2993
  %v4119 = vsub.f32 %v2365, %v2994
  %v4120 = vsub.f32 %v2370, %v2995
  %v4121 = vsub.f32 %v2373, %v2996
  %v4122 = vsub.f32 %v2378, %v2997
  %v4123 = vsub.f32 %v2381, %v2998
  %v4124 = vsub.f32 %v2386, %v2999
  %v4125 = vsub.f32 %v2389, %v3000
  %v4126 = vsub.f32 %v2394, %v3001
  %v4127 = vsub.f32 %v2397, %v3002
  %v4128 = vsub.f32 %v2402, %v3003
  %v4129 = vsub.f32 %v2405, %v3004
  %v4130 = vsub.f32 %v2410, %v3005
  %v4131 = vsub.f32 %v2413, %v3006
  %v4132 = vsub.f32 %v2418, %v3007
  %v4133 = vsub.f32 %v2421, %v3008
  %v4134 = vsub.f32 %v2426, %v3009
  %v4135 = vsub.f32 %v2429, %v3010
  %v4136 = vsub.f32 %v2434, %v3011
  %v4137 = vsub.f32 %v2437, %v3012
  %v4138 = vsub.f32 %v2442, %v3013
  %v4139 = vsub.f32 %v2445, %v3014
  %v4140 = vsub.f32 %v2450, %v3015
  %v4141 = vsub.f32 %v2453, %v3016
  %v4142 = vsub.f32 %v2458, %v3017
  %v4143 = vsub.f32 %v2461, %v3018
  %v4144 = vsub.f32 %v2466, %v3019
  %v4145 = vsub.f32 %v2469, %v3020
  %v4146 = vsub.f32 %v2474, %v3021
  %v4147 = vsub.f32 %v2477, %v3022
  %v4148 = vsub.f32 %v2482, %v3023
  %v4149 = vsub.f32 %v2485, %v3024
  %v4150 = vsub.f32 %v2490, %v3025
  %v4151 = vsub.f32 %v2493, %v3026
  %v4152 = vsub.f32 %v2498, %v3027
  %v4153 = vsub.f32 %v2501, %v3028
  %v4154 = vsub.f32 %v2506, %v3029
  %v4155 = vsub.f32 %v2509, %v3030
  %v4156 = vsub.f32 %v2514, %v3031
  %v4157 = vsub.f32 %v2517, %v3032
  %v4158 = vsub.f32 %v2522, %v3033
  %v4159 = vsub.f32 %v2525, %v3034
  %v4160 = vsub.f32 %v2530, %v3035
  %v4161 = vadd.f32 %v3911, 1e-05
  %v4162 = vadd.f32 %v3912, 1e-05
  %v4163 = vadd.f32 %v3913, 1e-05
  %v4164 = vadd.f32 %v3914, 1e-05
  %v4165 = vadd.f32 %v3915, 1e-05
  %v4166 = vadd.f32 %v3916, 1e-05
  %v4167 = vadd.f32 %v3917, 1e-05
  %v4168 = vadd.f32 %v3918, 1e-05
  %v4169 = vadd.f32 %v3919, 1e-05
  %v4170 = vadd.f32 %v3920, 1e-05
  %v4171 = vadd.f32 %v3921, 1e-05
  %v4172 = vadd.f32 %v3922, 1e-05
  %v4173 = vadd.f32 %v3923, 1e-05
  %v4174 = vadd.f32 %v3924, 1e-05
  %v4175 = vadd.f32 %v3925, 1e-05
  %v4176 = vadd.f32 %v3926, 1e-05
  %v4177 = vadd.f32 %v3927, 1e-05
  %v4178 = vadd.f32 %v3928, 1e-05
  %v4179 = vadd.f32 %v3929, 1e-05
  %v4180 = vadd.f32 %v3930, 1e-05
  %v4181 = vadd.f32 %v3931, 1e-05
  %v4182 = vadd.f32 %v3932, 1e-05
  %v4183 = vadd.f32 %v3933, 1e-05
  %v4184 = vadd.f32 %v3934, 1e-05
  %v4185 = vadd.f32 %v3935, 1e-05
  %v4186 = vadd.f32 %v3936, 1e-05
  %v4187 = vadd.f32 %v3937, 1e-05
  %v4188 = vadd.f32 %v3938, 1e-05
  %v4189 = vadd.f32 %v3939, 1e-05
  %v4190 = vadd.f32 %v3940, 1e-05
  %v4191 = vadd.f32 %v3941, 1e-05
  %v4192 = vadd.f32 %v3942, 1e-05
  %v4193 = vadd.f32 %v3943, 1e-05
  %v4194 = vadd.f32 %v3944, 1e-05
  %v4195 = vadd.f32 %v3945, 1e-05
  %v4196 = vadd.f32 %v3946, 1e-05
  %v4197 = vadd.f32 %v3947, 1e-05
  %v4198 = vadd.f32 %v3948, 1e-05
  %v4199 = vadd.f32 %v3949, 1e-05
  %v4200 = vadd.f32 %v3950, 1e-05
  %v4201 = vadd.f32 %v3951, 1e-05
  %v4202 = vadd.f32 %v3952, 1e-05
  %v4203 = vadd.f32 %v3953, 1e-05
  %v4204 = vadd.f32 %v3954, 1e-05
  %v4205 = vadd.f32 %v3955, 1e-05
  %v4206 = vadd.f32 %v3956, 1e-05
  %v4207 = vadd.f32 %v3957, 1e-05
  %v4208 = vadd.f32 %v3958, 1e-05
  %v4209 = vadd.f32 %v3959, 1e-05
  %v4210 = vadd.f32 %v3960, 1e-05
  %v4211 = vadd.f32 %v3961, 1e-05
  %v4212 = vadd.f32 %v3962, 1e-05
  %v4213 = vadd.f32 %v3963, 1e-05
  %v4214 = vadd.f32 %v3964, 1e-05
  %v4215 = vadd.f32 %v3965, 1e-05
  %v4216 = vadd.f32 %v3966, 1e-05
  %v4217 = vadd.f32 %v3967, 1e-05
  %v4218 = vadd.f32 %v3968, 1e-05
  %v4219 = vadd.f32 %v3969, 1e-05
  %v4220 = vadd.f32 %v3970, 1e-05
  %v4221 = vadd.f32 %v3971, 1e-05
  %v4222 = vadd.f32 %v3972, 1e-05
  %v4223 = vadd.f32 %v3973, 1e-05
  %v4224 = vadd.f32 %v3974, 1e-05
  %v4225 = vadd.f32 %v3975, 1e-05
  %v4226 = vadd.f32 %v3976, 1e-05
  %v4227 = vadd.f32 %v3977, 1e-05
  %v4228 = vadd.f32 %v3978, 1e-05
  %v4229 = vadd.f32 %v3979, 1e-05
  %v4230 = vadd.f32 %v3980, 1e-05
  %v4231 = vadd.f32 %v3981, 1e-05
  %v4232 = vadd.f32 %v3982, 1e-05
  %v4233 = vadd.f32 %v3983, 1e-05
  %v4234 = vadd.f32 %v3984, 1e-05
  %v4235 = vadd.f32 %v3985, 1e-05
  %v4236 = vadd.f32 %v3986, 1e-05
  %v4237 = vadd.f32 %v3987, 1e-05
  %v4238 = vadd.f32 %v3988, 1e-05
  %v4239 = vadd.f32 %v3989, 1e-05
  %v4240 = vadd.f32 %v3990, 1e-05
  %v4241 = vadd.f32 %v3991, 1e-05
  %v4242 = vadd.f32 %v3992, 1e-05
  %v4243 = vadd.f32 %v3993, 1e-05
  %v4244 = vadd.f32 %v3994, 1e-05
  %v4245 = vadd.f32 %v3995, 1e-05
  %v4246 = vadd.f32 %v3996, 1e-05
  %v4247 = vadd.f32 %v3997, 1e-05
  %v4248 = vadd.f32 %v3998, 1e-05
  %v4249 = vadd.f32 %v3999, 1e-05
  %v4250 = vadd.f32 %v4000, 1e-05
  %v4251 = vadd.f32 %v4001, 1e-05
  %v4252 = vadd.f32 %v4002, 1e-05
  %v4253 = vadd.f32 %v4003, 1e-05
  %v4254 = vadd.f32 %v4004, 1e-05
  %v4255 = vadd.f32 %v4005, 1e-05
  %v4256 = vadd.f32 %v4006, 1e-05
  %v4257 = vadd.f32 %v4007, 1e-05
  %v4258 = vadd.f32 %v4008, 1e-05
  %v4259 = vadd.f32 %v4009, 1e-05
  %v4260 = vadd.f32 %v4010, 1e-05
  %v4261 = vadd.f32 %v4011, 1e-05
  %v4262 = vadd.f32 %v4012, 1e-05
  %v4263 = vadd.f32 %v4013, 1e-05
  %v4264 = vadd.f32 %v4014, 1e-05
  %v4265 = vadd.f32 %v4015, 1e-05
  %v4266 = vadd.f32 %v4016, 1e-05
  %v4267 = vadd.f32 %v4017, 1e-05
  %v4268 = vadd.f32 %v4018, 1e-05
  %v4269 = vadd.f32 %v4019, 1e-05
  %v4270 = vadd.f32 %v4020, 1e-05
  %v4271 = vadd.f32 %v4021, 1e-05
  %v4272 = vadd.f32 %v4022, 1e-05
  %v4273 = vadd.f32 %v4023, 1e-05
  %v4274 = vadd.f32 %v4024, 1e-05
  %v4275 = vadd.f32 %v4025, 1e-05
  %v4276 = vadd.f32 %v4026, 1e-05
  %v4277 = vadd.f32 %v4027, 1e-05
  %v4278 = vadd.f32 %v4028, 1e-05
  %v4279 = vadd.f32 %v4029, 1e-05
  %v4280 = vadd.f32 %v4030, 1e-05
  %v4281 = vadd.f32 %v4031, 1e-05
  %v4282 = vadd.f32 %v4032, 1e-05
  %v4283 = vadd.f32 %v4033, 1e-05
  %v4284 = vadd.f32 %v4034, 1e-05
  %v4285 = vadd.f32 %v4035, 1e-05
  %v4286 = vrsqrt.pop %v4161
  %v4287 = vrsqrt.pop %v4162
  %v4288 = vrsqrt.pop %v4163
  %v4289 = vrsqrt.pop %v4164
  %v4290 = vrsqrt.pop %v4165
  %v4291 = vrsqrt.pop %v4166
  %v4292 = vrsqrt.pop %v4167
  %v4293 = vrsqrt.pop %v4168
  %v4294 = vrsqrt.pop %v4169
  %v4295 = vrsqrt.pop %v4170
  %v4296 = vrsqrt.pop %v4171
  %v4297 = vrsqrt.pop %v4172
  %v4298 = vrsqrt.pop %v4173
  %v4299 = vrsqrt.pop %v4174
  %v4300 = vrsqrt.pop %v4175
  %v4301 = vrsqrt.pop %v4176
  %v4302 = vrsqrt.pop %v4177
  %v4303 = vrsqrt.pop %v4178
  %v4304 = vrsqrt.pop %v4179
  %v4305 = vrsqrt.pop %v4180
  %v4306 = vrsqrt.pop %v4181
  %v4307 = vrsqrt.pop %v4182
  %v4308 = vrsqrt.pop %v4183
  %v4309 = vrsqrt.pop %v4184
  %v4310 = vrsqrt.pop %v4185
  %v4311 = vrsqrt.pop %v4186
  %v4312 = vrsqrt.pop %v4187
  %v4313 = vrsqrt.pop %v4188
  %v4314 = vrsqrt.pop %v4189
  %v4315 = vrsqrt.pop %v4190
  %v4316 = vrsqrt.pop %v4191
  %v4317 = vrsqrt.pop %v4192
  %v4318 = vrsqrt.pop %v4193
  %v4319 = vrsqrt.pop %v4194
  %v4320 = vrsqrt.pop %v4195
  %v4321 = vrsqrt.pop %v4196
  %v4322 = vrsqrt.pop %v4197
  %v4323 = vrsqrt.pop %v4198
  %v4324 = vrsqrt.pop %v4199
  %v4325 = vrsqrt.pop %v4200
  %v4326 = vrsqrt.pop %v4201
  %v4327 = vrsqrt.pop %v4202
  %v4328 = vrsqrt.pop %v4203
  %v4329 = vrsqrt.pop %v4204
  %v4330 = vrsqrt.pop %v4205
  %v4331 = vrsqrt.pop %v4206
  %v4332 = vrsqrt.pop %v4207
  %v4333 = vrsqrt.pop %v4208
  %v4334 = vrsqrt.pop %v4209
  %v4335 = vrsqrt.pop %v4210
  %v4336 = vrsqrt.pop %v4211
  %v4337 = vrsqrt.pop %v4212
  %v4338 = vrsqrt.pop %v4213
  %v4339 = vrsqrt.pop %v4214
  %v4340 = vrsqrt.pop %v4215
  %v4341 = vrsqrt.pop %v4216
  %v4342 = vrsqrt.pop %v4217
  %v4343 = vrsqrt.pop %v4218
  %v4344 = vrsqrt.pop %v4219
  %v4345 = vrsqrt.pop %v4220
  %v4346 = vrsqrt.pop %v4221
  %v4347 = vrsqrt.pop %v4222
  %v4348 = vrsqrt.pop %v4223
  %v4349 = vrsqrt.pop %v4224
  %v4350 = vrsqrt.pop %v4225
  %v4351 = vrsqrt.pop %v4226
  %v4352 = vrsqrt.pop %v4227
  %v4353 = vrsqrt.pop %v4228
  %v4354 = vrsqrt.pop %v4229
  %v4355 = vrsqrt.pop %v4230
  %v4356 = vrsqrt.pop %v4231
  %v4357 = vrsqrt.pop %v4232
  %v4358 = vrsqrt.pop %v4233
  %v4359 = vrsqrt.pop %v4234
  %v4360 = vrsqrt.pop %v4235
  %v4361 = vrsqrt.pop %v4236
  %v4362 = vrsqrt.pop %v4237
  %v4363 = vrsqrt.pop %v4238
  %v4364 = vrsqrt.pop %v4239
  %v4365 = vrsqrt.pop %v4240
  %v4366 = vrsqrt.pop %v4241
  %v4367 = vrsqrt.pop %v4242
  %v4368 = vrsqrt.pop %v4243
  %v4369 = vrsqrt.pop %v4244
  %v4370 = vrsqrt.pop %v4245
  %v4371 = vrsqrt.pop %v4246
  %v4372 = vrsqrt.pop %v4247
  %v4373 = vrsqrt.pop %v4248
  %v4374 = vrsqrt.pop %v4249
  %v4375 = vrsqrt.pop %v4250
  %v4376 = vrsqrt.pop %v4251
  %v4377 = vrsqrt.pop %v4252
  %v4378 = vrsqrt.pop %v4253
  %v4379 = vrsqrt.pop %v4254
  %v4380 = vrsqrt.pop %v4255
  %v4381 = vrsqrt.pop %v4256
  %v4382 = vrsqrt.pop %v4257
  %v4383 = vrsqrt.pop %v4258
  %v4384 = vrsqrt.pop %v4259
  %v4385 = vrsqrt.pop %v4260
  %v4386 = vrsqrt.pop %v4261
  %v4387 = vrsqrt.pop %v4262
  %v4388 = vrsqrt.pop %v4263
  %v4389 = vrsqrt.pop %v4264
  %v4390 = vrsqrt.pop %v4265
  %v4391 = vrsqrt.pop %v4266
  %v4392 = vrsqrt.pop %v4267
  %v4393 = vrsqrt.pop %v4268
  %v4394 = vrsqrt.pop %v4269
  %v4395 = vrsqrt.pop %v4270
  %v4396 = vrsqrt.pop %v4271
  %v4397 = vrsqrt.pop %v4272
  %v4398 = vrsqrt.pop %v4273
  %v4399 = vrsqrt.pop %v4274
  %v4400 = vrsqrt.pop %v4275
  %v4401 = vrsqrt.pop %v4276
  %v4402 = vrsqrt.pop %v4277
  %v4403 = vrsqrt.pop %v4278
  %v4404 = vrsqrt.pop %v4279
  %v4405 = vrsqrt.pop %v4280
  %v4406 = vrsqrt.pop %v4281
  %v4407 = vrsqrt.pop %v4282
  %v4408 = vrsqrt.pop %v4283
  %v4409 = vrsqrt.pop %v4284
  %v4410 = vrsqrt.pop %v4285
  %v4411 = vmul.f32 %v4036, %v4286
  %v4412 = vmul.f32 %v4037, %v4287
  %v4413 = vmul.f32 %v4038, %v4288
  %v4414 = vmul.f32 %v4039, %v4289
  %v4415 = vmul.f32 %v4040, %v4290
  %v4416 = vmul.f32 %v4041, %v4291
  %v4417 = vmul.f32 %v4042, %v4292
  %v4418 = vmul.f32 %v4043, %v4293
  %v4419 = vmul.f32 %v4044, %v4294
  %v4420 = vmul.f32 %v4045, %v4295
  %v4421 = vmul.f32 %v4046, %v4296
  %v4422 = vmul.f32 %v4047, %v4297
  %v4423 = vmul.f32 %v4048, %v4298
  %v4424 = vmul.f32 %v4049, %v4299
  %v4425 = vmul.f32 %v4050, %v4300
  %v4426 = vmul.f32 %v4051, %v4301
  %v4427 = vmul.f32 %v4052, %v4302
  %v4428 = vmul.f32 %v4053, %v4303
  %v4429 = vmul.f32 %v4054, %v4304
  %v4430 = vmul.f32 %v4055, %v4305
  %v4431 = vmul.f32 %v4056, %v4306
  %v4432 = vmul.f32 %v4057, %v4307
  %v4433 = vmul.f32 %v4058, %v4308
  %v4434 = vmul.f32 %v4059, %v4309
  %v4435 = vmul.f32 %v4060, %v4310
  %v4436 = vmul.f32 %v4061, %v4311
  %v4437 = vmul.f32 %v4062, %v4312
  %v4438 = vmul.f32 %v4063, %v4313
  %v4439 = vmul.f32 %v4064, %v4314
  %v4440 = vmul.f32 %v4065, %v4315
  %v4441 = vmul.f32 %v4066, %v4316
  %v4442 = vmul.f32 %v4067, %v4317
  %v4443 = vmul.f32 %v4068, %v4318
  %v4444 = vmul.f32 %v4069, %v4319
  %v4445 = vmul.f32 %v4070, %v4320
  %v4446 = vmul.f32 %v4071, %v4321
  %v4447 = vmul.f32 %v4072, %v4322
  %v4448 = vmul.f32 %v4073, %v4323
  %v4449 = vmul.f32 %v4074, %v4324
  %v4450 = vmul.f32 %v4075, %v4325
  %v4451 = vmul.f32 %v4076, %v4326
  %v4452 = vmul.f32 %v4077, %v4327
  %v4453 = vmul.f32 %v4078, %v4328
  %v4454 = vmul.f32 %v4079, %v4329
  %v4455 = vmul.f32 %v4080, %v4330
  %v4456 = vmul.f32 %v4081, %v4331
  %v4457 = vmul.f32 %v4082, %v4332
  %v4458 = vmul.f32 %v4083, %v4333
  %v4459 = vmul.f32 %v4084, %v4334
  %v4460 = vmul.f32 %v4085, %v4335
  %v4461 = vmul.f32 %v4086, %v4336
  %v4462 = vmul.f32 %v4087, %v4337
  %v4463 = vmul.f32 %v4088, %v4338
  %v4464 = vmul.f32 %v4089, %v4339
  %v4465 = vmul.f32 %v4090, %v4340
  %v4466 = vmul.f32 %v4091, %v4341
  %v4467 = vmul.f32 %v4092, %v4342
  %v4468 = vmul.f32 %v4093, %v4343
  %v4469 = vmul.f32 %v4094, %v4344
  %v4470 = vmul.f32 %v4095, %v4345
  %v4471 = vmul.f32 %v4096, %v4346
  %v4472 = vmul.f32 %v4097, %v4347
  %v4473 = vmul.f32 %v4098, %v4348
  %v4474 = vmul.f32 %v4099, %v4349
  %v4475 = vmul.f32 %v4100, %v4350
  %v4476 = vmul.f32 %v4101, %v4351
  %v4477 = vmul.f32 %v4102, %v4352
  %v4478 = vmul.f32 %v4103, %v4353
  %v4479 = vmul.f32 %v4104, %v4354
  %v4480 = vmul.f32 %v4105, %v4355
  %v4481 = vmul.f32 %v4106, %v4356
  %v4482 = vmul.f32 %v4107, %v4357
  %v4483 = vmul.f32 %v4108, %v4358
  %v4484 = vmul.f32 %v4109, %v4359
  %v4485 = vmul.f32 %v4110, %v4360
  %v4486 = vmul.f32 %v4111, %v4361
  %v4487 = vmul.f32 %v4112, %v4362
  %v4488 = vmul.f32 %v4113, %v4363
  %v4489 = vmul.f32 %v4114, %v4364
  %v4490 = vmul.f32 %v4115, %v4365
  %v4491 = vmul.f32 %v4116, %v4366
  %v4492 = vmul.f32 %v4117, %v4367
  %v4493 = vmul.f32 %v4118, %v4368
  %v4494 = vmul.f32 %v4119, %v4369
  %v4495 = vmul.f32 %v4120, %v4370
  %v4496 = vmul.f32 %v4121, %v4371
  %v4497 = vmul.f32 %v4122, %v4372
  %v4498 = vmul.f32 %v4123, %v4373
  %v4499 = vmul.f32 %v4124, %v4374
  %v4500 = vmul.f32 %v4125, %v4375
  %v4501 = vmul.f32 %v4126, %v4376
  %v4502 = vmul.f32 %v4127, %v4377
  %v4503 = vmul.f32 %v4128, %v4378
  %v4504 = vmul.f32 %v4129, %v4379
  %v4505 = vmul.f32 %v4130, %v4380
  %v4506 = vmul.f32 %v4131, %v4381
  %v4507 = vmul.f32 %v4132, %v4382
  %v4508 = vmul.f32 %v4133, %v4383
  %v4509 = vmul.f32 %v4134, %v4384
  %v4510 = vmul.f32 %v4135, %v4385
  %v4511 = vmul.f32 %v4136, %v4386
  %v4512 = vmul.f32 %v4137, %v4387
  %v4513 = vmul.f32 %v4138, %v4388
  %v4514 = vmul.f32 %v4139, %v4389
  %v4515 = vmul.f32 %v4140, %v4390
  %v4516 = vmul.f32 %v4141, %v4391
  %v4517 = vmul.f32 %v4142, %v4392
  %v4518 = vmul.f32 %v4143, %v4393
  %v4519 = vmul.f32 %v4144, %v4394
  %v4520 = vmul.f32 %v4145, %v4395
  %v4521 = vmul.f32 %v4146, %v4396
  %v4522 = vmul.f32 %v4147, %v4397
  %v4523 = vmul.f32 %v4148, %v4398
  %v4524 = vmul.f32 %v4149, %v4399
  %v4525 = vmul.f32 %v4150, %v4400
  %v4526 = vmul.f32 %v4151, %v4401
  %v4527 = vmul.f32 %v4152, %v4402
  %v4528 = vmul.f32 %v4153, %v4403
  %v4529 = vmul.f32 %v4154, %v4404
  %v4530 = vmul.f32 %v4155, %v4405
  %v4531 = vmul.f32 %v4156, %v4406
  %v4532 = vmul.f32 %v4157, %v4407
  %v4533 = vmul.f32 %v4158, %v4408
  %v4534 = vmul.f32 %v4159, %v4409
  %v4535 = vmul.f32 %v4160, %v4410
  %v4536 = vlaneseq
  %v4537 = vshrl.u32 %v4536, 7
  %v4538 = vsub.s32 3, %v4537
  %v4539 = vrot.slane %v21, %v4538
  %v4540 = vmul.f32 %v4411, %v4539
  %v4541 = vmul.f32 %v4412, %v4539
  %v4542 = vmul.f32 %v4413, %v4539
  %v4543 = vmul.f32 %v4414, %v4539
  %v4544 = vmul.f32 %v4415, %v4539
  %v4545 = vmul.f32 %v4416, %v4539
  %v4546 = vmul.f32 %v4417, %v4539
  %v4547 = vmul.f32 %v4418, %v4539
  %v4548 = vmul.f32 %v4419, %v4539
  %v4549 = vmul.f32 %v4420, %v4539
  %v4550 = vmul.f32 %v4421, %v4539
  %v4551 = vmul.f32 %v4422, %v4539
  %v4552 = vmul.f32 %v4423, %v4539
  %v4553 = vmul.f32 %v4424, %v4539
  %v4554 = vmul.f32 %v4425, %v4539
  %v4555 = vmul.f32 %v4426, %v4539
  %v4556 = vmul.f32 %v4427, %v4539
  %v4557 = vmul.f32 %v4428, %v4539
  %v4558 = vmul.f32 %v4429, %v4539
  %v4559 = vmul.f32 %v4430, %v4539
  %v4560 = vmul.f32 %v4431, %v4539
  %v4561 = vmul.f32 %v4432, %v4539
  %v4562 = vmul.f32 %v4433, %v4539
  %v4563 = vmul.f32 %v4434, %v4539
  %v4564 = vmul.f32 %v4435, %v4539
  %v4565 = vmul.f32 %v4436, %v4539
  %v4566 = vmul.f32 %v4437, %v4539
  %v4567 = vmul.f32 %v4438, %v4539
  %v4568 = vmul.f32 %v4439, %v4539
  %v4569 = vmul.f32 %v4440, %v4539
  %v4570 = vmul.f32 %v4441, %v4539
  %v4571 = vmul.f32 %v4442, %v4539
  %v4572 = vmul.f32 %v4443, %v4539
  %v4573 = vmul.f32 %v4444, %v4539
  %v4574 = vmul.f32 %v4445, %v4539
  %v4575 = vmul.f32 %v4446, %v4539
  %v4576 = vmul.f32 %v4447, %v4539
  %v4577 = vmul.f32 %v4448, %v4539
  %v4578 = vmul.f32 %v4449, %v4539
  %v4579 = vmul.f32 %v4450, %v4539
  %v4580 = vmul.f32 %v4451, %v4539
  %v4581 = vmul.f32 %v4452, %v4539
  %v4582 = vmul.f32 %v4453, %v4539
  %v4583 = vmul.f32 %v4454, %v4539
  %v4584 = vmul.f32 %v4455, %v4539
  %v4585 = vmul.f32 %v4456, %v4539
  %v4586 = vmul.f32 %v4457, %v4539
  %v4587 = vmul.f32 %v4458, %v4539
  %v4588 = vmul.f32 %v4459, %v4539
  %v4589 = vmul.f32 %v4460, %v4539
  %v4590 = vmul.f32 %v4461, %v4539
  %v4591 = vmul.f32 %v4462, %v4539
  %v4592 = vmul.f32 %v4463, %v4539
  %v4593 = vmul.f32 %v4464, %v4539
  %v4594 = vmul.f32 %v4465, %v4539
  %v4595 = vmul.f32 %v4466, %v4539
  %v4596 = vmul.f32 %v4467, %v4539
  %v4597 = vmul.f32 %v4468, %v4539
  %v4598 = vmul.f32 %v4469, %v4539
  %v4599 = vmul.f32 %v4470, %v4539
  %v4600 = vmul.f32 %v4471, %v4539
  %v4601 = vmul.f32 %v4472, %v4539
  %v4602 = vmul.f32 %v4473, %v4539
  %v4603 = vmul.f32 %v4474, %v4539
  %v4604 = vmul.f32 %v4475, %v4539
  %v4605 = vmul.f32 %v4476, %v4539
  %v4606 = vmul.f32 %v4477, %v4539
  %v4607 = vmul.f32 %v4478, %v4539
  %v4608 = vmul.f32 %v4479, %v4539
  %v4609 = vmul.f32 %v4480, %v4539
  %v4610 = vmul.f32 %v4481, %v4539
  %v4611 = vmul.f32 %v4482, %v4539
  %v4612 = vmul.f32 %v4483, %v4539
  %v4613 = vmul.f32 %v4484, %v4539
  %v4614 = vmul.f32 %v4485, %v4539
  %v4615 = vmul.f32 %v4486, %v4539
  %v4616 = vmul.f32 %v4487, %v4539
  %v4617 = vmul.f32 %v4488, %v4539
  %v4618 = vmul.f32 %v4489, %v4539
  %v4619 = vmul.f32 %v4490, %v4539
  %v4620 = vmul.f32 %v4491, %v4539
  %v4621 = vmul.f32 %v4492, %v4539
  %v4622 = vmul.f32 %v4493, %v4539
  %v4623 = vmul.f32 %v4494, %v4539
  %v4624 = vmul.f32 %v4495, %v4539
  %v4625 = vmul.f32 %v4496, %v4539
  %v4626 = vmul.f32 %v4497, %v4539
  %v4627 = vmul.f32 %v4498, %v4539
  %v4628 = vmul.f32 %v4499, %v4539
  %v4629 = vmul.f32 %v4500, %v4539
  %v4630 = vmul.f32 %v4501, %v4539
  %v4631 = vmul.f32 %v4502, %v4539
  %v4632 = vmul.f32 %v4503, %v4539
  %v4633 = vmul.f32 %v4504, %v4539
  %v4634 = vmul.f32 %v4505, %v4539
  %v4635 = vmul.f32 %v4506, %v4539
  %v4636 = vmul.f32 %v4507, %v4539
  %v4637 = vmul.f32 %v4508, %v4539
  %v4638 = vmul.f32 %v4509, %v4539
  %v4639 = vmul.f32 %v4510, %v4539
  %v4640 = vmul.f32 %v4511, %v4539
  %v4641 = vmul.f32 %v4512, %v4539
  %v4642 = vmul.f32 %v4513, %v4539
  %v4643 = vmul.f32 %v4514, %v4539
  %v4644 = vmul.f32 %v4515, %v4539
  %v4645 = vmul.f32 %v4516, %v4539
  %v4646 = vmul.f32 %v4517, %v4539
  %v4647 = vmul.f32 %v4518, %v4539
  %v4648 = vmul.f32 %v4519, %v4539
  %v4649 = vmul.f32 %v4520, %v4539
  %v4650 = vmul.f32 %v4521, %v4539
  %v4651 = vmul.f32 %v4522, %v4539
  %v4652 = vmul.f32 %v4523, %v4539
  %v4653 = vmul.f32 %v4524, %v4539
  %v4654 = vmul.f32 %v4525, %v4539
  %v4655 = vmul.f32 %v4526, %v4539
  %v4656 = vmul.f32 %v4527, %v4539
  %v4657 = vmul.f32 %v4528, %v4539
  %v4658 = vmul.f32 %v4529, %v4539
  %v4659 = vmul.f32 %v4530, %v4539
  %v4660 = vmul.f32 %v4531, %v4539
  %v4661 = vmul.f32 %v4532, %v4539
  %v4662 = vmul.f32 %v4533, %v4539
  %v4663 = vmul.f32 %v4534, %v4539
  %v4664 = vmul.f32 %v4535, %v4539
  %v4665 = vlaneseq
  %v4666 = vshrl.u32 %v4665, 7
  %v4667 = vsub.s32 4, %v4666
  %v4668 = vrot.slane %v21, %v4667
  %v4669 = vadd.f32 %v4540, %v4668
  %v4670 = vadd.f32 %v4541, %v4668
  %v4671 = vadd.f32 %v4542, %v4668
  %v4672 = vadd.f32 %v4543, %v4668
  %v4673 = vadd.f32 %v4544, %v4668
  %v4674 = vadd.f32 %v4545, %v4668
  %v4675 = vadd.f32 %v4546, %v4668
  %v4676 = vadd.f32 %v4547, %v4668
  %v4677 = vadd.f32 %v4548, %v4668
  %v4678 = vadd.f32 %v4549, %v4668
  %v4679 = vadd.f32 %v4550, %v4668
  %v4680 = vadd.f32 %v4551, %v4668
  %v4681 = vadd.f32 %v4552, %v4668
  %v4682 = vadd.f32 %v4553, %v4668
  %v4683 = vadd.f32 %v4554, %v4668
  %v4684 = vadd.f32 %v4555, %v4668
  %v4685 = vadd.f32 %v4556, %v4668
  %v4686 = vadd.f32 %v4557, %v4668
  %v4687 = vadd.f32 %v4558, %v4668
  %v4688 = vadd.f32 %v4559, %v4668
  %v4689 = vadd.f32 %v4560, %v4668
  %v4690 = vadd.f32 %v4561, %v4668
  %v4691 = vadd.f32 %v4562, %v4668
  %v4692 = vadd.f32 %v4563, %v4668
  %v4693 = vadd.f32 %v4564, %v4668
  %v4694 = vadd.f32 %v4565, %v4668
  %v4695 = vadd.f32 %v4566, %v4668
  %v4696 = vadd.f32 %v4567, %v4668
  %v4697 = vadd.f32 %v4568, %v4668
  %v4698 = vadd.f32 %v4569, %v4668
  %v4699 = vadd.f32 %v4570, %v4668
  %v4700 = vadd.f32 %v4571, %v4668
  %v4701 = vadd.f32 %v4572, %v4668
  %v4702 = vadd.f32 %v4573, %v4668
  %v4703 = vadd.f32 %v4574, %v4668
  %v4704 = vadd.f32 %v4575, %v4668
  %v4705 = vadd.f32 %v4576, %v4668
  %v4706 = vadd.f32 %v4577, %v4668
  %v4707 = vadd.f32 %v4578, %v4668
  %v4708 = vadd.f32 %v4579, %v4668
  %v4709 = vadd.f32 %v4580, %v4668
  %v4710 = vadd.f32 %v4581, %v4668
  %v4711 = vadd.f32 %v4582, %v4668
  %v4712 = vadd.f32 %v4583, %v4668
  %v4713 = vadd.f32 %v4584, %v4668
  %v4714 = vadd.f32 %v4585, %v4668
  %v4715 = vadd.f32 %v4586, %v4668
  %v4716 = vadd.f32 %v4587, %v4668
  %v4717 = vadd.f32 %v4588, %v4668
  %v4718 = vadd.f32 %v4589, %v4668
  %v4719 = vadd.f32 %v4590, %v4668
  %v4720 = vadd.f32 %v4591, %v4668
  %v4721 = vadd.f32 %v4592, %v4668
  %v4722 = vadd.f32 %v4593, %v4668
  %v4723 = vadd.f32 %v4594, %v4668
  %v4724 = vadd.f32 %v4595, %v4668
  %v4725 = vadd.f32 %v4596, %v4668
  %v4726 = vadd.f32 %v4597, %v4668
  %v4727 = vadd.f32 %v4598, %v4668
  %v4728 = vadd.f32 %v4599, %v4668
  %v4729 = vadd.f32 %v4600, %v4668
  %v4730 = vadd.f32 %v4601, %v4668
  %v4731 = vadd.f32 %v4602, %v4668
  %v4732 = vadd.f32 %v4603, %v4668
  %v4733 = vadd.f32 %v4604, %v4668
  %v4734 = vadd.f32 %v4605, %v4668
  %v4735 = vadd.f32 %v4606, %v4668
  %v4736 = vadd.f32 %v4607, %v4668
  %v4737 = vadd.f32 %v4608, %v4668
  %v4738 = vadd.f32 %v4609, %v4668
  %v4739 = vadd.f32 %v4610, %v4668
  %v4740 = vadd.f32 %v4611, %v4668
  %v4741 = vadd.f32 %v4612, %v4668
  %v4742 = vadd.f32 %v4613, %v4668
  %v4743 = vadd.f32 %v4614, %v4668
  %v4744 = vadd.f32 %v4615, %v4668
  %v4745 = vadd.f32 %v4616, %v4668
  %v4746 = vadd.f32 %v4617, %v4668
  %v4747 = vadd.f32 %v4618, %v4668
  %v4748 = vadd.f32 %v4619, %v4668
  %v4749 = vadd.f32 %v4620, %v4668
  %v4750 = vadd.f32 %v4621, %v4668
  %v4751 = vadd.f32 %v4622, %v4668
  %v4752 = vadd.f32 %v4623, %v4668
  %v4753 = vadd.f32 %v4624, %v4668
  %v4754 = vadd.f32 %v4625, %v4668
  %v4755 = vadd.f32 %v4626, %v4668
  %v4756 = vadd.f32 %v4627, %v4668
  %v4757 = vadd.f32 %v4628, %v4668
  %v4758 = vadd.f32 %v4629, %v4668
  %v4759 = vadd.f32 %v4630, %v4668
  %v4760 = vadd.f32 %v4631, %v4668
  %v4761 = vadd.f32 %v4632, %v4668
  %v4762 = vadd.f32 %v4633, %v4668
  %v4763 = vadd.f32 %v4634, %v4668
  %v4764 = vadd.f32 %v4635, %v4668
  %v4765 = vadd.f32 %v4636, %v4668
  %v4766 = vadd.f32 %v4637, %v4668
  %v4767 = vadd.f32 %v4638, %v4668
  %v4768 = vadd.f32 %v4639, %v4668
  %v4769 = vadd.f32 %v4640, %v4668
  %v4770 = vadd.f32 %v4641, %v4668
  %v4771 = vadd.f32 %v4642, %v4668
  %v4772 = vadd.f32 %v4643, %v4668
  %v4773 = vadd.f32 %v4644, %v4668
  %v4774 = vadd.f32 %v4645, %v4668
  %v4775 = vadd.f32 %v4646, %v4668
  %v4776 = vadd.f32 %v4647, %v4668
  %v4777 = vadd.f32 %v4648, %v4668
  %v4778 = vadd.f32 %v4649, %v4668
  %v4779 = vadd.f32 %v4650, %v4668
  %v4780 = vadd.f32 %v4651, %v4668
  %v4781 = vadd.f32 %v4652, %v4668
  %v4782 = vadd.f32 %v4653, %v4668
  %v4783 = vadd.f32 %v4654, %v4668
  %v4784 = vadd.f32 %v4655, %v4668
  %v4785 = vadd.f32 %v4656, %v4668
  %v4786 = vadd.f32 %v4657, %v4668
  %v4787 = vadd.f32 %v4658, %v4668
  %v4788 = vadd.f32 %v4659, %v4668
  %v4789 = vadd.f32 %v4660, %v4668
  %v4790 = vadd.f32 %v4661, %v4668
  %v4791 = vadd.f32 %v4662, %v4668
  %v4792 = vadd.f32 %v4663, %v4668
  %v4793 = vadd.f32 %v4664, %v4668
  %4794 = vst.msk [vmem:[%s5] sm:$0xff] %vm2535, %v4669
  %4795 = vst.msk [vmem:[%s5 + $0x8] sm:$0xff] %vm2535, %v4670
  %4796 = vst.msk [vmem:[%s5 + $0x10] sm:$0xff] %vm2535, %v4671
  %4797 = vst.msk [vmem:[%s5 + $0x18] sm:$0xff] %vm2535, %v4672
  %4798 = vst.msk [vmem:[%s5 + $0x20] sm:$0xff] %vm2535, %v4673
  %4799 = vst.msk [vmem:[%s5 + $0x28] sm:$0xff] %vm2535, %v4674
  %4800 = vst.msk [vmem:[%s5 + $0x30] sm:$0xff] %vm2535, %v4675
  %4801 = vst.msk [vmem:[%s5 + $0x38] sm:$0xff] %vm2535, %v4676
  %4802 = vst.msk [vmem:[%s5 + $0x40] sm:$0xff] %vm2535, %v4677
  %4803 = vst.msk [vmem:[%s5 + $0x48] sm:$0xff] %vm2535, %v4678
  %4804 = vst.msk [vmem:[%s5 + $0x50] sm:$0xff] %vm2535, %v4679
  %4805 = vst.msk [vmem:[%s5 + $0x58] sm:$0xff] %vm2535, %v4680
  %4806 = vst.msk [vmem:[%s5 + $0x60] sm:$0xff] %vm2535, %v4681
  %4807 = vst.msk [vmem:[%s5 + $0x68] sm:$0xff] %vm2535, %v4682
  %4808 = vst.msk [vmem:[%s5 + $0x70] sm:$0xff] %vm2535, %v4683
  %4809 = vst.msk [vmem:[%s5 + $0x78] sm:$0xff] %vm2535, %v4684
  %4810 = vst.msk [vmem:[%s5 + $0x80] sm:$0xff] %vm2535, %v4685
  %4811 = vst.msk [vmem:[%s5 + $0x88] sm:$0xff] %vm2535, %v4686
  %4812 = vst.msk [vmem:[%s5 + $0x90] sm:$0xff] %vm2535, %v4687
  %4813 = vst.msk [vmem:[%s5 + $0x98] sm:$0xff] %vm2535, %v4688
  %4814 = vst.msk [vmem:[%s5 + $0xa0] sm:$0xff] %vm2535, %v4689
  %4815 = vst.msk [vmem:[%s5 + $0xa8] sm:$0xff] %vm2535, %v4690
  %4816 = vst.msk [vmem:[%s5 + $0xb0] sm:$0xff] %vm2535, %v4691
  %4817 = vst.msk [vmem:[%s5 + $0xb8] sm:$0xff] %vm2535, %v4692
  %4818 = vst.msk [vmem:[%s5 + $0xc0] sm:$0xff] %vm2535, %v4693
  %4819 = vst.msk [vmem:[%s5 + $0xc8] sm:$0xff] %vm2535, %v4694
  %4820 = vst.msk [vmem:[%s5 + $0xd0] sm:$0xff] %vm2535, %v4695
  %4821 = vst.msk [vmem:[%s5 + $0xd8] sm:$0xff] %vm2535, %v4696
  %4822 = vst.msk [vmem:[%s5 + $0xe0] sm:$0xff] %vm2535, %v4697
  %4823 = vst.msk [vmem:[%s5 + $0xe8] sm:$0xff] %vm2535, %v4698
  %4824 = vst.msk [vmem:[%s5 + $0xf0] sm:$0xff] %vm2535, %v4699
  %4825 = vst.msk [vmem:[%s5 + $0xf8] sm:$0xff] %vm2535, %v4700
  %4826 = vst.msk [vmem:[%s5 + $0x100] sm:$0xff] %vm2535, %v4701
  %4827 = vst.msk [vmem:[%s5 + $0x108] sm:$0xff] %vm2535, %v4702
  %4828 = vst.msk [vmem:[%s5 + $0x110] sm:$0xff] %vm2535, %v4703
  %4829 = vst.msk [vmem:[%s5 + $0x118] sm:$0xff] %vm2535, %v4704
  %4830 = vst.msk [vmem:[%s5 + $0x120] sm:$0xff] %vm2535, %v4705
  %4831 = vst.msk [vmem:[%s5 + $0x128] sm:$0xff] %vm2535, %v4706
  %4832 = vst.msk [vmem:[%s5 + $0x130] sm:$0xff] %vm2535, %v4707
  %4833 = vst.msk [vmem:[%s5 + $0x138] sm:$0xff] %vm2535, %v4708
  %4834 = vst.msk [vmem:[%s5 + $0x140] sm:$0xff] %vm2535, %v4709
  %4835 = vst.msk [vmem:[%s5 + $0x148] sm:$0xff] %vm2535, %v4710
  %4836 = vst.msk [vmem:[%s5 + $0x150] sm:$0xff] %vm2535, %v4711
  %4837 = vst.msk [vmem:[%s5 + $0x158] sm:$0xff] %vm2535, %v4712
  %4838 = vst.msk [vmem:[%s5 + $0x160] sm:$0xff] %vm2535, %v4713
  %4839 = vst.msk [vmem:[%s5 + $0x168] sm:$0xff] %vm2535, %v4714
  %4840 = vst.msk [vmem:[%s5 + $0x170] sm:$0xff] %vm2535, %v4715
  %4841 = vst.msk [vmem:[%s5 + $0x178] sm:$0xff] %vm2535, %v4716
  %4842 = vst.msk [vmem:[%s5 + $0x180] sm:$0xff] %vm2535, %v4717
  %4843 = vst.msk [vmem:[%s5 + $0x188] sm:$0xff] %vm2535, %v4718
  %4844 = vst.msk [vmem:[%s5 + $0x190] sm:$0xff] %vm2535, %v4719
  %4845 = vst.msk [vmem:[%s5 + $0x198] sm:$0xff] %vm2535, %v4720
  %4846 = vst.msk [vmem:[%s5 + $0x1a0] sm:$0xff] %vm2535, %v4721
  %4847 = vst.msk [vmem:[%s5 + $0x1a8] sm:$0xff] %vm2535, %v4722
  %4848 = vst.msk [vmem:[%s5 + $0x1b0] sm:$0xff] %vm2535, %v4723
  %4849 = vst.msk [vmem:[%s5 + $0x1b8] sm:$0xff] %vm2535, %v4724
  %4850 = vst.msk [vmem:[%s5 + $0x1c0] sm:$0xff] %vm2535, %v4725
  %4851 = vst.msk [vmem:[%s5 + $0x1c8] sm:$0xff] %vm2535, %v4726
  %4852 = vst.msk [vmem:[%s5 + $0x1d0] sm:$0xff] %vm2535, %v4727
  %4853 = vst.msk [vmem:[%s5 + $0x1d8] sm:$0xff] %vm2535, %v4728
  %4854 = vst.msk [vmem:[%s5 + $0x1e0] sm:$0xff] %vm2535, %v4729
  %4855 = vst.msk [vmem:[%s5 + $0x1e8] sm:$0xff] %vm2535, %v4730
  %4856 = vst.msk [vmem:[%s5 + $0x1f0] sm:$0xff] %vm2535, %v4731
  %4857 = vst.msk [vmem:[%s5 + $0x1f8] sm:$0xff] %vm2535, %v4732
  %4858 = vst.msk [vmem:[%s5 + $0x200] sm:$0xff] %vm2535, %v4733
  %4859 = vst.msk [vmem:[%s5 + $0x208] sm:$0xff] %vm2535, %v4734
  %4860 = vst.msk [vmem:[%s5 + $0x210] sm:$0xff] %vm2535, %v4735
  %4861 = vst.msk [vmem:[%s5 + $0x218] sm:$0xff] %vm2535, %v4736
  %4862 = vst.msk [vmem:[%s5 + $0x220] sm:$0xff] %vm2535, %v4737
  %4863 = vst.msk [vmem:[%s5 + $0x228] sm:$0xff] %vm2535, %v4738
  %4864 = vst.msk [vmem:[%s5 + $0x230] sm:$0xff] %vm2535, %v4739
  %4865 = vst.msk [vmem:[%s5 + $0x238] sm:$0xff] %vm2535, %v4740
  %4866 = vst.msk [vmem:[%s5 + $0x240] sm:$0xff] %vm2535, %v4741
  %4867 = vst.msk [vmem:[%s5 + $0x248] sm:$0xff] %vm2535, %v4742
  %4868 = vst.msk [vmem:[%s5 + $0x250] sm:$0xff] %vm2535, %v4743
  %4869 = vst.msk [vmem:[%s5 + $0x258] sm:$0xff] %vm2535, %v4744
  %4870 = vst.msk [vmem:[%s5 + $0x260] sm:$0xff] %vm2535, %v4745
  %4871 = vst.msk [vmem:[%s5 + $0x268] sm:$0xff] %vm2535, %v4746
  %4872 = vst.msk [vmem:[%s5 + $0x270] sm:$0xff] %vm2535, %v4747
  %4873 = vst.msk [vmem:[%s5 + $0x278] sm:$0xff] %vm2535, %v4748
  %4874 = vst.msk [vmem:[%s5 + $0x280] sm:$0xff] %vm2535, %v4749
  %4875 = vst.msk [vmem:[%s5 + $0x288] sm:$0xff] %vm2535, %v4750
  %4876 = vst.msk [vmem:[%s5 + $0x290] sm:$0xff] %vm2535, %v4751
  %4877 = vst.msk [vmem:[%s5 + $0x298] sm:$0xff] %vm2535, %v4752
  %4878 = vst.msk [vmem:[%s5 + $0x2a0] sm:$0xff] %vm2535, %v4753
  %4879 = vst.msk [vmem:[%s5 + $0x2a8] sm:$0xff] %vm2535, %v4754
  %4880 = vst.msk [vmem:[%s5 + $0x2b0] sm:$0xff] %vm2535, %v4755
  %4881 = vst.msk [vmem:[%s5 + $0x2b8] sm:$0xff] %vm2535, %v4756
  %4882 = vst.msk [vmem:[%s5 + $0x2c0] sm:$0xff] %vm2535, %v4757
  %4883 = vst.msk [vmem:[%s5 + $0x2c8] sm:$0xff] %vm2535, %v4758
  %4884 = vst.msk [vmem:[%s5 + $0x2d0] sm:$0xff] %vm2535, %v4759
  %4885 = vst.msk [vmem:[%s5 + $0x2d8] sm:$0xff] %vm2535, %v4760
  %4886 = vst.msk [vmem:[%s5 + $0x2e0] sm:$0xff] %vm2535, %v4761
  %4887 = vst.msk [vmem:[%s5 + $0x2e8] sm:$0xff] %vm2535, %v4762
  %4888 = vst.msk [vmem:[%s5 + $0x2f0] sm:$0xff] %vm2535, %v4763
  %4889 = vst.msk [vmem:[%s5 + $0x2f8] sm:$0xff] %vm2535, %v4764
  %4890 = vst.msk [vmem:[%s5 + $0x300] sm:$0xff] %vm2535, %v4765
  %4891 = vst.msk [vmem:[%s5 + $0x308] sm:$0xff] %vm2535, %v4766
  %4892 = vst.msk [vmem:[%s5 + $0x310] sm:$0xff] %vm2535, %v4767
  %4893 = vst.msk [vmem:[%s5 + $0x318] sm:$0xff] %vm2535, %v4768
  %4894 = vst.msk [vmem:[%s5 + $0x320] sm:$0xff] %vm2535, %v4769
  %4895 = vst.msk [vmem:[%s5 + $0x328] sm:$0xff] %vm2535, %v4770
  %4896 = vst.msk [vmem:[%s5 + $0x330] sm:$0xff] %vm2535, %v4771
  %4897 = vst.msk [vmem:[%s5 + $0x338] sm:$0xff] %vm2535, %v4772
  %4898 = vst.msk [vmem:[%s5 + $0x340] sm:$0xff] %vm2535, %v4773
  %4899 = vst.msk [vmem:[%s5 + $0x348] sm:$0xff] %vm2535, %v4774
  %4900 = vst.msk [vmem:[%s5 + $0x350] sm:$0xff] %vm2535, %v4775
  %4901 = vst.msk [vmem:[%s5 + $0x358] sm:$0xff] %vm2535, %v4776
  %4902 = vst.msk [vmem:[%s5 + $0x360] sm:$0xff] %vm2535, %v4777
  %4903 = vst.msk [vmem:[%s5 + $0x368] sm:$0xff] %vm2535, %v4778
  %4904 = vst.msk [vmem:[%s5 + $0x370] sm:$0xff] %vm2535, %v4779
  %4905 = vst.msk [vmem:[%s5 + $0x378] sm:$0xff] %vm2535, %v4780
  %4906 = vst.msk [vmem:[%s5 + $0x380] sm:$0xff] %vm2535, %v4781
  %4907 = vst.msk [vmem:[%s5 + $0x388] sm:$0xff] %vm2535, %v4782
  %4908 = vst.msk [vmem:[%s5 + $0x390] sm:$0xff] %vm2535, %v4783
  %4909 = vst.msk [vmem:[%s5 + $0x398] sm:$0xff] %vm2535, %v4784
  %4910 = vst.msk [vmem:[%s5 + $0x3a0] sm:$0xff] %vm2535, %v4785
  %4911 = vst.msk [vmem:[%s5 + $0x3a8] sm:$0xff] %vm2535, %v4786
  %4912 = vst.msk [vmem:[%s5 + $0x3b0] sm:$0xff] %vm2535, %v4787
  %4913 = vst.msk [vmem:[%s5 + $0x3b8] sm:$0xff] %vm2535, %v4788
  %4914 = vst.msk [vmem:[%s5 + $0x3c0] sm:$0xff] %vm2535, %v4789
  %4915 = vst.msk [vmem:[%s5 + $0x3c8] sm:$0xff] %vm2535, %v4790
  %4916 = vst.msk [vmem:[%s5 + $0x3d0] sm:$0xff] %vm2535, %v4791
  %4917 = vst.msk [vmem:[%s5 + $0x3d8] sm:$0xff] %vm2535, %v4792
  %4918 = vst.msk [vmem:[%s5 + $0x3e0] sm:$0xff] %vm2535, %v4793
  // Predicated region
  $region22: #{mlp_pallas.1} parent=0 // pred_check
    _
  $region23: #{mlp_pallas.1} parent=0 // pred_check_branch
    %4920 = sbr.rel (0) target = $region25
  $region24: #{mlp_pallas.1} parent=0 // pred_region
    _
  $region25: #{mlp_pallas.1} parent=0 // pred_fallthru
    _
  // Predicated region
  $region26: #{mlp_pallas.1} parent=0 // pred_check
    _
  $region27: #{mlp_pallas.1} parent=0 // pred_check_branch
    %4922 = sbr.rel (0) target = $region29
  $region28: #{mlp_pallas.1} parent=0 // pred_region
    _
  $region29: #{mlp_pallas.1} parent=0 // pred_fallthru
    _

</llo_original>
